<compile_context>
chip_gen: v6e
topology: v6e:2x2x1
jax: 0.10.0
libtpu: 0.0.40
codegen_flags: <defaults>
</compile_context>

<pallas_src>
import math

import jax
import jax.numpy as jnp
from jax.experimental import pallas as pl
from jax.experimental.pallas import tpu as pltpu

NUM_HEADS = 4
LN_EPS = 1e-5


def _layernorm_cm(x, gamma, beta):
    """LayerNorm over channels for a channel-major (C, N) activation."""
    mu = jnp.mean(x, axis=0, keepdims=True)
    var = jnp.mean((x - mu) ** 2, axis=0, keepdims=True)
    return (x - mu) * jax.lax.rsqrt(var + LN_EPS) * gamma + beta


def self_attention_kernel(
    x_ref,                   # (BT, C, N) f32   channel-major input block
    ln1_g_ref, ln1_b_ref,    # (C, 1)     f32
    wqkv_ref,                # (3C, C)    bf16  rows [Q|K|V]; Q pre-scaled by 1/sqrt(D)
    bqkv_ref,                # (3C, 1)    f32
    wo_ref,                  # (C, C)     bf16
    bo_ref,                  # (C, 1)     f32
    ln2_g_ref, ln2_b_ref,    # (C, 1)     f32
    w1_ref, b1_ref,          # (C, C) bf16, (C, 1) f32
    w2_ref, b2_ref,          # (C, C) bf16, (C, 1) f32
    o_ref,                   # (BT, C, N) f32   channel-major output block
):
    bt, C, N = x_ref.shape
    H = NUM_HEADS
    D = C // H

    def one_item(b):
        x = x_ref[b]                                              # (C, N) f32

        # ---- pre-attention LayerNorm (self.ln); channels = sublane axis ----
        x_ln = _layernorm_cm(x, ln1_g_ref[...], ln1_b_ref[...])

        # ---- fused QKV: single (3C, C) @ (C, N) matmul, 256-lane-dense out ----
        qkv = jnp.dot(wqkv_ref[...], x_ln.astype(jnp.bfloat16),
                      preferred_element_type=jnp.float32) + bqkv_ref[...]
        # Head split = sublane-aligned slices/reshapes (free relayout); only Q
        # needs a small (H, D, N) -> (H, N, D) transpose for the score matmul.
        q = jnp.swapaxes(qkv[0:C].reshape(H, D, N), 1, 2).astype(jnp.bfloat16)
        k = qkv[C:2 * C].reshape(H, D, N).astype(jnp.bfloat16)    # (H, D, N)
        v = qkv[2 * C:3 * C].reshape(H, D, N).astype(jnp.bfloat16)

        # ---- attention core: softmax over keys (lane axis) ----
        s = jnp.einsum("hnd,hdm->hnm", q, k,
                       preferred_element_type=jnp.float32)        # (H, N, N)
        s = s - jnp.max(s, axis=-1, keepdims=True)
        p = jnp.exp(s)                                            # unnormalized
        l = jnp.sum(p, axis=-1)                                   # (H, N)
        o_h = jnp.einsum("hdm,hnm->hdn", v, p.astype(jnp.bfloat16),
                         preferred_element_type=jnp.float32)      # (H, D, N)
        # Deferred softmax normalization on the small (H, D, N) output.
        o_h = o_h * pl.reciprocal(l, approx=False)[:, None, :]

        # ---- output projection: single (C, C) @ (H*D, N) matmul ----
        attn = jnp.dot(wo_ref[...], o_h.reshape(C, N).astype(jnp.bfloat16),
                       preferred_element_type=jnp.float32) + bo_ref[...]

        # ---- residual with the pre-LN input ----
        h1 = attn + x

        # ---- ff_self: LayerNorm -> Linear -> GELU -> Linear, plus residual ----
        h_ln = _layernorm_cm(h1, ln2_g_ref[...], ln2_b_ref[...])
        f = jnp.dot(w1_ref[...], h_ln.astype(jnp.bfloat16),
                    preferred_element_type=jnp.float32) + b1_ref[...]
        # TODO(synk): PyTorch nn.GELU() is exact (erf); tanh approximation used
        # for robust TPU lowering.
        f = jax.nn.gelu(f, approximate=True)
        f = jnp.dot(w2_ref[...], f.astype(jnp.bfloat16),
                    preferred_element_type=jnp.float32) + b2_ref[...]

        # Channel-major store: last dim N is lane-dense (multiple of 128).
        o_ref[b] = f + h1

    if bt == 1:
        one_item(0)
    else:
        # Batch collapsed into one grid step (single-TensorCore chips); a real
        # loop (not unrolled) bounds the live range of the (H, N, N) tensors.
        jax.lax.fori_loop(0, bt, lambda b, c: (one_item(b), c)[1], 0)


def _multi_tensorcore_chip():
    """Best effort: does each chip have more than one TensorCore?

    v5e / v6e have a single TensorCore (grid steps are a serial loop there);
    v4/v5p (megacore) and v7x have 2, so a parallel batch grid shards work.
    Defaults to True (the parallel grid also runs fine on 1-TC chips)."""
    try:
        kind = jax.devices()[0].device_kind.lower()
    except Exception:
        return True
    single_tc = any(
        t in kind for t in ("v5e", "v5 lite", "v5litepod", "v6e", "v6 lite"))
    return not single_tc


def self_attention(x_nchw, params):
    """x_nchw: (B, C, S, S) float32. Returns (B, C, S, S)."""
    B, C, S, _ = x_nchw.shape
    N = S * S
    x = x_nchw.reshape(B, C, N)                      # free view; no HBM transpose

    use_batch_grid = _multi_tensorcore_chip() and B > 1
    if use_batch_grid:
        grid = (B,)
        x_spec = pl.BlockSpec((1, C, N), lambda b: (b, 0, 0))
        semantics = ("parallel",)                    # batch shards across TCs
    else:
        grid = (1,)
        x_spec = pl.BlockSpec((B, C, N), lambda b: (0, 0, 0))
        semantics = ("arbitrary",)

    def full(shape):
        # Constant index_map -> block is fetched once and stays VMEM-resident
        # across the grid (Pallas skips re-DMA on unchanged block index).
        return pl.BlockSpec(shape, lambda b: (0,) * len(shape))

    in_specs = [
        x_spec,
        full((C, 1)), full((C, 1)),                  # ln1 gamma / beta
        full((3 * C, C)), full((3 * C, 1)),          # fused Wqkv / bqkv (Q pre-scaled)
        full((C, C)), full((C, 1)),                  # Wo / bo
        full((C, 1)), full((C, 1)),                  # ln2 gamma / beta
        full((C, C)), full((C, 1)),                  # W1 / b1
        full((C, C)), full((C, 1)),                  # W2 / b2
    ]

    out = pl.pallas_call(
        self_attention_kernel,
        out_shape=jax.ShapeDtypeStruct((B, C, N), jnp.float32),
        grid_spec=pltpu.PrefetchScalarGridSpec(
            num_scalar_prefetch=0,
            grid=grid,
            in_specs=in_specs,
            out_specs=x_spec,
        ),
        compiler_params=pltpu.CompilerParams(dimension_semantics=semantics),
    )(x, *params)

    return out.reshape(B, C, S, S)


def init_torch_like_params(key, C):
    """Synthetic parameters in PyTorch layout (nn.MultiheadAttention / LayerNorm / Linear)."""
    ks = jax.random.split(key, 8)
    s = 1.0 / math.sqrt(C)
    return {
        "ln1_g": jnp.ones((C,), jnp.float32),
        "ln1_b": jnp.zeros((C,), jnp.float32),
        "in_proj_w": jax.random.normal(ks[0], (3 * C, C), jnp.float32) * s,
        "in_proj_b": jax.random.normal(ks[1], (3 * C,), jnp.float32) * s,
        "out_proj_w": jax.random.normal(ks[2], (C, C), jnp.float32) * s,
        "out_proj_b": jax.random.normal(ks[3], (C,), jnp.float32) * s,
        "ln2_g": jnp.ones((C,), jnp.float32),
        "ln2_b": jnp.zeros((C,), jnp.float32),
        "ff1_w": jax.random.normal(ks[4], (C, C), jnp.float32) * s,
        "ff1_b": jax.random.normal(ks[5], (C,), jnp.float32) * s,
        "ff2_w": jax.random.normal(ks[6], (C, C), jnp.float32) * s,
        "ff2_b": jax.random.normal(ks[7], (C,), jnp.float32) * s,
    }


def pack_params(p, C):
    """PyTorch layout -> kernel layout.

    Channel-major compute uses weights in their native (out, in) layout
    (y_cm = W @ x_cm), so no weight transposes are needed; the 1/sqrt(head_dim)
    attention scale is folded into the Q weights/bias, biases / LN params
    become (C, 1) columns, and matmul weights are pre-cast to bf16 (f32
    accumulation happens in-kernel)."""
    H = NUM_HEADS
    D = C // H
    scale = 1.0 / math.sqrt(D)

    wqkv = jnp.concatenate(
        [p["in_proj_w"][:C] * scale, p["in_proj_w"][C:]], axis=0
    ).astype(jnp.bfloat16)                                       # (3C, C)
    bqkv = jnp.concatenate(
        [p["in_proj_b"][:C] * scale, p["in_proj_b"][C:]], axis=0
    ).reshape(3 * C, 1).astype(jnp.float32)                      # (3C, 1)

    return (
        p["ln1_g"].reshape(C, 1), p["ln1_b"].reshape(C, 1),
        wqkv, bqkv,
        p["out_proj_w"].astype(jnp.bfloat16), p["out_proj_b"].reshape(C, 1),
        p["ln2_g"].reshape(C, 1), p["ln2_b"].reshape(C, 1),
        p["ff1_w"].astype(jnp.bfloat16), p["ff1_b"].reshape(C, 1),
        p["ff2_w"].astype(jnp.bfloat16), p["ff2_b"].reshape(C, 1),
    )


if __name__ == "__main__":
    B, C, S = 2, 32, 16          # 4 heads x head_dim 8, seq = 256 tokens
    key = jax.random.PRNGKey(0)
    kx, kp = jax.random.split(key)
    x = jax.random.normal(kx, (B, C, S, S), jnp.float32)
    params = pack_params(init_torch_like_params(kp, C), C)

    out = jax.jit(self_attention)(x, params)
    jax.block_until_ready(out)
    assert out.shape == (B, C, S, S), out.shape
    print("KERNEL_OK")
</pallas_src>

<mosaic_0001>
module attributes {stable_mosaic.version = 11 : i64} {
  func.func @self_attention_kernel(%arg0: i32, %arg1: memref<1x32x256xf32, #tpu.memory_space<vmem>>, %arg2: memref<32x1xf32, #tpu.memory_space<vmem>>, %arg3: memref<32x1xf32, #tpu.memory_space<vmem>>, %arg4: memref<96x32xbf16, #tpu.memory_space<vmem>>, %arg5: memref<96x1xf32, #tpu.memory_space<vmem>>, %arg6: memref<32x32xbf16, #tpu.memory_space<vmem>>, %arg7: memref<32x1xf32, #tpu.memory_space<vmem>>, %arg8: memref<32x1xf32, #tpu.memory_space<vmem>>, %arg9: memref<32x1xf32, #tpu.memory_space<vmem>>, %arg10: memref<32x32xbf16, #tpu.memory_space<vmem>>, %arg11: memref<32x1xf32, #tpu.memory_space<vmem>>, %arg12: memref<32x32xbf16, #tpu.memory_space<vmem>>, %arg13: memref<32x1xf32, #tpu.memory_space<vmem>>, %arg14: memref<1x32x256xf32, #tpu.memory_space<vmem>>) attributes {dimension_semantics = [#tpu.dimension_semantics<parallel>], iteration_bounds = array<i64: 2>, scalar_prefetch = 0 : i64, scratch_operands = 0 : i64, tpu.core_type = #tpu.core_type<tc>, window_params = [{transform_indices = @transform_0, window_bounds = array<i64: 1, 32, 256>}, {pipeline_mode = #tpu.pipeline_mode<synchronous>, transform_indices = @transform_1, window_bounds = array<i64: 32, 1>}, {pipeline_mode = #tpu.pipeline_mode<synchronous>, transform_indices = @transform_2, window_bounds = array<i64: 32, 1>}, {pipeline_mode = #tpu.pipeline_mode<synchronous>, transform_indices = @transform_3, window_bounds = array<i64: 96, 32>}, {pipeline_mode = #tpu.pipeline_mode<synchronous>, transform_indices = @transform_4, window_bounds = array<i64: 96, 1>}, {pipeline_mode = #tpu.pipeline_mode<synchronous>, transform_indices = @transform_5, window_bounds = array<i64: 32, 32>}, {pipeline_mode = #tpu.pipeline_mode<synchronous>, transform_indices = @transform_6, window_bounds = array<i64: 32, 1>}, {pipeline_mode = #tpu.pipeline_mode<synchronous>, transform_indices = @transform_7, window_bounds = array<i64: 32, 1>}, {pipeline_mode = #tpu.pipeline_mode<synchronous>, transform_indices = @transform_8, window_bounds = array<i64: 32, 1>}, {pipeline_mode = #tpu.pipeline_mode<synchronous>, transform_indices = @transform_9, window_bounds = array<i64: 32, 32>}, {pipeline_mode = #tpu.pipeline_mode<synchronous>, transform_indices = @transform_10, window_bounds = array<i64: 32, 1>}, {pipeline_mode = #tpu.pipeline_mode<synchronous>, transform_indices = @transform_11, window_bounds = array<i64: 32, 32>}, {pipeline_mode = #tpu.pipeline_mode<synchronous>, transform_indices = @transform_12, window_bounds = array<i64: 32, 1>}, {transform_indices = @transform_13, window_bounds = array<i64: 1, 32, 256>}]} {
    %c0 = arith.constant 0 : index
    %c0_0 = arith.constant 0 : index
    %c0_1 = arith.constant 0 : index
    %0 = vector.load %arg1[%c0, %c0_0, %c0_1] : memref<1x32x256xf32, #tpu.memory_space<vmem>>, vector<1x32x256xf32>
    %1 = vector.shape_cast %0 : vector<1x32x256xf32> to vector<32x256xf32>
    %c0_2 = arith.constant 0 : index
    %c0_3 = arith.constant 0 : index
    %2 = vector.load %arg2[%c0_2, %c0_3] : memref<32x1xf32, #tpu.memory_space<vmem>>, vector<32x1xf32>
    %c0_4 = arith.constant 0 : index
    %c0_5 = arith.constant 0 : index
    %3 = vector.load %arg3[%c0_4, %c0_5] : memref<32x1xf32, #tpu.memory_space<vmem>>, vector<32x1xf32>
    %cst = arith.constant dense<0.000000e+00> : vector<256xf32>
    %4 = vector.multi_reduction <add>, %1, %cst [0] : vector<32x256xf32> to vector<256xf32>
    %5 = vector.shape_cast %4 : vector<256xf32> to vector<1x256xf32>
    %cst_6 = arith.constant 3.200000e+01 : f32
    %6 = vector.broadcast %cst_6 : f32 to vector<1x256xf32>
    %7 = arith.divf %5, %6 : vector<1x256xf32>
    %8 = vector.broadcast %7 : vector<1x256xf32> to vector<32x256xf32>
    %9 = arith.subf %1, %8 : vector<32x256xf32>
    %10 = arith.mulf %9, %9 : vector<32x256xf32>
    %cst_7 = arith.constant dense<0.000000e+00> : vector<256xf32>
    %11 = vector.multi_reduction <add>, %10, %cst_7 [0] : vector<32x256xf32> to vector<256xf32>
    %12 = vector.shape_cast %11 : vector<256xf32> to vector<1x256xf32>
    %cst_8 = arith.constant 3.200000e+01 : f32
    %13 = vector.broadcast %cst_8 : f32 to vector<1x256xf32>
    %14 = arith.divf %12, %13 : vector<1x256xf32>
    %15 = vector.broadcast %7 : vector<1x256xf32> to vector<32x256xf32>
    %16 = arith.subf %1, %15 : vector<32x256xf32>
    %cst_9 = arith.constant 9.99999974E-6 : f32
    %17 = vector.broadcast %cst_9 : f32 to vector<1x256xf32>
    %18 = arith.addf %14, %17 : vector<1x256xf32>
    %19 = math.rsqrt %18 : vector<1x256xf32>
    %20 = vector.broadcast %19 : vector<1x256xf32> to vector<32x256xf32>
    %21 = arith.mulf %16, %20 : vector<32x256xf32>
    %22 = vector.broadcast %2 : vector<32x1xf32> to vector<32x256xf32>
    %23 = arith.mulf %21, %22 : vector<32x256xf32>
    %24 = vector.broadcast %3 : vector<32x1xf32> to vector<32x256xf32>
    %25 = arith.addf %23, %24 : vector<32x256xf32>
    %c0_10 = arith.constant 0 : index
    %c0_11 = arith.constant 0 : index
    %26 = vector.load %arg4[%c0_10, %c0_11] : memref<96x32xbf16, #tpu.memory_space<vmem>>, vector<96x32xbf16>
    %27 = arith.truncf %25 : vector<32x256xf32> to vector<32x256xbf16>
    %cst_12 = arith.constant dense<0.000000e+00> : vector<96x256xf32>
    %28 = tpu.matmul %26, %27, %cst_12 {dimension_numbers = #tpu.dot_dimension_numbers<[1], [0], [0], [1], [0, 0, 1, 1], [], []>} : vector<96x32xbf16>, vector<32x256xbf16>, vector<96x256xf32> -> vector<96x256xf32>
    %c0_13 = arith.constant 0 : index
    %c0_14 = arith.constant 0 : index
    %29 = vector.load %arg5[%c0_13, %c0_14] : memref<96x1xf32, #tpu.memory_space<vmem>>, vector<96x1xf32>
    %30 = vector.broadcast %29 : vector<96x1xf32> to vector<96x256xf32>
    %31 = arith.addf %28, %30 : vector<96x256xf32>
    %32 = vector.extract_strided_slice %31 {offsets = [0, 0], sizes = [32, 256], strides = [1, 1]} : vector<96x256xf32> to vector<32x256xf32>
    %33 = vector.shape_cast %32 : vector<32x256xf32> to vector<4x8x256xf32>
    %34 = tpu.transpose %33, [0, 2, 1] : vector<4x8x256xf32> -> vector<4x256x8xf32>
    %35 = arith.truncf %34 : vector<4x256x8xf32> to vector<4x256x8xbf16>
    %36 = vector.extract_strided_slice %31 {offsets = [32, 0], sizes = [32, 256], strides = [1, 1]} : vector<96x256xf32> to vector<32x256xf32>
    %37 = vector.shape_cast %36 : vector<32x256xf32> to vector<4x8x256xf32>
    %38 = arith.truncf %37 : vector<4x8x256xf32> to vector<4x8x256xbf16>
    %39 = vector.extract_strided_slice %31 {offsets = [64, 0], sizes = [32, 256], strides = [1, 1]} : vector<96x256xf32> to vector<32x256xf32>
    %40 = vector.shape_cast %39 : vector<32x256xf32> to vector<4x8x256xf32>
    %41 = arith.truncf %40 : vector<4x8x256xf32> to vector<4x8x256xbf16>
    "tpu.trace_start"() <{level = 10 : i32, message = "hnd,hdm->hnm"}> : () -> ()
    %cst_15 = arith.constant dense<0.000000e+00> : vector<4x256x256xf32>
    %42 = tpu.matmul %35, %38, %cst_15 {dimension_numbers = #tpu.dot_dimension_numbers<[2], [1], [1], [2], [0, 0, 0, 1, 1, 2], [0], [0]>} : vector<4x256x8xbf16>, vector<4x8x256xbf16>, vector<4x256x256xf32> -> vector<4x256x256xf32>
    "tpu.trace_stop"() : () -> ()
    %cst_16 = arith.constant dense<0xFF800000> : vector<4x256xf32>
    %43 = vector.multi_reduction <maximumf>, %42, %cst_16 [2] : vector<4x256x256xf32> to vector<4x256xf32>
    %44 = vector.shape_cast %43 : vector<4x256xf32> to vector<4x256x1xf32>
    %45 = vector.broadcast %44 : vector<4x256x1xf32> to vector<4x256x256xf32>
    %46 = arith.subf %42, %45 : vector<4x256x256xf32>
    %47 = math.exp %46 : vector<4x256x256xf32>
    %cst_17 = arith.constant dense<0.000000e+00> : vector<4x256xf32>
    %48 = vector.multi_reduction <add>, %47, %cst_17 [2] : vector<4x256x256xf32> to vector<4x256xf32>
    %49 = arith.truncf %47 : vector<4x256x256xf32> to vector<4x256x256xbf16>
    "tpu.trace_start"() <{level = 10 : i32, message = "hdm,hnm->hdn"}> : () -> ()
    %cst_18 = arith.constant dense<0.000000e+00> : vector<4x8x256xf32>
    %50 = tpu.matmul %41, %49, %cst_18 {dimension_numbers = #tpu.dot_dimension_numbers<[2], [2], [1], [1], [0, 0, 0, 1, 1, 1], [0], [0]>} : vector<4x8x256xbf16>, vector<4x256x256xbf16>, vector<4x8x256xf32> -> vector<4x8x256xf32>
    "tpu.trace_stop"() : () -> ()
    %51 = tpu.reciprocal %48 : vector<4x256xf32> -> vector<4x256xf32>
    %52 = vector.shape_cast %51 : vector<4x256xf32> to vector<4x1x256xf32>
    %53 = vector.broadcast %52 : vector<4x1x256xf32> to vector<4x8x256xf32>
    %54 = arith.mulf %50, %53 : vector<4x8x256xf32>
    %c0_19 = arith.constant 0 : index
    %c0_20 = arith.constant 0 : index
    %55 = vector.load %arg6[%c0_19, %c0_20] : memref<32x32xbf16, #tpu.memory_space<vmem>>, vector<32x32xbf16>
    %56 = vector.shape_cast %54 : vector<4x8x256xf32> to vector<32x256xf32>
    %57 = arith.truncf %56 : vector<32x256xf32> to vector<32x256xbf16>
    %cst_21 = arith.constant dense<0.000000e+00> : vector<32x256xf32>
    %58 = tpu.matmul %55, %57, %cst_21 {dimension_numbers = #tpu.dot_dimension_numbers<[1], [0], [0], [1], [0, 0, 1, 1], [], []>} : vector<32x32xbf16>, vector<32x256xbf16>, vector<32x256xf32> -> vector<32x256xf32>
    %c0_22 = arith.constant 0 : index
    %c0_23 = arith.constant 0 : index
    %59 = vector.load %arg7[%c0_22, %c0_23] : memref<32x1xf32, #tpu.memory_space<vmem>>, vector<32x1xf32>
    %60 = vector.broadcast %59 : vector<32x1xf32> to vector<32x256xf32>
    %61 = arith.addf %58, %60 : vector<32x256xf32>
    %62 = arith.addf %61, %1 : vector<32x256xf32>
    %c0_24 = arith.constant 0 : index
    %c0_25 = arith.constant 0 : index
    %63 = vector.load %arg8[%c0_24, %c0_25] : memref<32x1xf32, #tpu.memory_space<vmem>>, vector<32x1xf32>
    %c0_26 = arith.constant 0 : index
    %c0_27 = arith.constant 0 : index
    %64 = vector.load %arg9[%c0_26, %c0_27] : memref<32x1xf32, #tpu.memory_space<vmem>>, vector<32x1xf32>
    %cst_28 = arith.constant dense<0.000000e+00> : vector<256xf32>
    %65 = vector.multi_reduction <add>, %62, %cst_28 [0] : vector<32x256xf32> to vector<256xf32>
    %66 = vector.shape_cast %65 : vector<256xf32> to vector<1x256xf32>
    %cst_29 = arith.constant 3.200000e+01 : f32
    %67 = vector.broadcast %cst_29 : f32 to vector<1x256xf32>
    %68 = arith.divf %66, %67 : vector<1x256xf32>
    %69 = vector.broadcast %68 : vector<1x256xf32> to vector<32x256xf32>
    %70 = arith.subf %62, %69 : vector<32x256xf32>
    %71 = arith.mulf %70, %70 : vector<32x256xf32>
    %cst_30 = arith.constant dense<0.000000e+00> : vector<256xf32>
    %72 = vector.multi_reduction <add>, %71, %cst_30 [0] : vector<32x256xf32> to vector<256xf32>
    %73 = vector.shape_cast %72 : vector<256xf32> to vector<1x256xf32>
    %cst_31 = arith.constant 3.200000e+01 : f32
    %74 = vector.broadcast %cst_31 : f32 to vector<1x256xf32>
    %75 = arith.divf %73, %74 : vector<1x256xf32>
    %76 = vector.broadcast %68 : vector<1x256xf32> to vector<32x256xf32>
    %77 = arith.subf %62, %76 : vector<32x256xf32>
    %cst_32 = arith.constant 9.99999974E-6 : f32
    %78 = vector.broadcast %cst_32 : f32 to vector<1x256xf32>
    %79 = arith.addf %75, %78 : vector<1x256xf32>
    %80 = math.rsqrt %79 : vector<1x256xf32>
    %81 = vector.broadcast %80 : vector<1x256xf32> to vector<32x256xf32>
    %82 = arith.mulf %77, %81 : vector<32x256xf32>
    %83 = vector.broadcast %63 : vector<32x1xf32> to vector<32x256xf32>
    %84 = arith.mulf %82, %83 : vector<32x256xf32>
    %85 = vector.broadcast %64 : vector<32x1xf32> to vector<32x256xf32>
    %86 = arith.addf %84, %85 : vector<32x256xf32>
    %c0_33 = arith.constant 0 : index
    %c0_34 = arith.constant 0 : index
    %87 = vector.load %arg10[%c0_33, %c0_34] : memref<32x32xbf16, #tpu.memory_space<vmem>>, vector<32x32xbf16>
    %88 = arith.truncf %86 : vector<32x256xf32> to vector<32x256xbf16>
    %cst_35 = arith.constant dense<0.000000e+00> : vector<32x256xf32>
    %89 = tpu.matmul %87, %88, %cst_35 {dimension_numbers = #tpu.dot_dimension_numbers<[1], [0], [0], [1], [0, 0, 1, 1], [], []>} : vector<32x32xbf16>, vector<32x256xbf16>, vector<32x256xf32> -> vector<32x256xf32>
    %c0_36 = arith.constant 0 : index
    %c0_37 = arith.constant 0 : index
    %90 = vector.load %arg11[%c0_36, %c0_37] : memref<32x1xf32, #tpu.memory_space<vmem>>, vector<32x1xf32>
    %91 = vector.broadcast %90 : vector<32x1xf32> to vector<32x256xf32>
    %92 = arith.addf %89, %91 : vector<32x256xf32>
    %93 = arith.mulf %92, %92 : vector<32x256xf32>
    %94 = arith.mulf %92, %93 : vector<32x256xf32>
    %cst_38 = arith.constant 4.471500e-02 : f32
    %95 = vector.broadcast %cst_38 : f32 to vector<32x256xf32>
    %96 = arith.mulf %95, %94 : vector<32x256xf32>
    %97 = arith.addf %92, %96 : vector<32x256xf32>
    %cst_39 = arith.constant 0.797884583 : f32
    %98 = vector.broadcast %cst_39 : f32 to vector<32x256xf32>
    %99 = arith.mulf %98, %97 : vector<32x256xf32>
    %100 = math.tanh %99 : vector<32x256xf32>
    %cst_40 = arith.constant 1.000000e+00 : f32
    %101 = vector.broadcast %cst_40 : f32 to vector<32x256xf32>
    %102 = arith.addf %101, %100 : vector<32x256xf32>
    %cst_41 = arith.constant 5.000000e-01 : f32
    %103 = vector.broadcast %cst_41 : f32 to vector<32x256xf32>
    %104 = arith.mulf %103, %102 : vector<32x256xf32>
    %105 = arith.mulf %92, %104 : vector<32x256xf32>
    %c0_42 = arith.constant 0 : index
    %c0_43 = arith.constant 0 : index
    %106 = vector.load %arg12[%c0_42, %c0_43] : memref<32x32xbf16, #tpu.memory_space<vmem>>, vector<32x32xbf16>
    %107 = arith.truncf %105 : vector<32x256xf32> to vector<32x256xbf16>
    %cst_44 = arith.constant dense<0.000000e+00> : vector<32x256xf32>
    %108 = tpu.matmul %106, %107, %cst_44 {dimension_numbers = #tpu.dot_dimension_numbers<[1], [0], [0], [1], [0, 0, 1, 1], [], []>} : vector<32x32xbf16>, vector<32x256xbf16>, vector<32x256xf32> -> vector<32x256xf32>
    %c0_45 = arith.constant 0 : index
    %c0_46 = arith.constant 0 : index
    %109 = vector.load %arg13[%c0_45, %c0_46] : memref<32x1xf32, #tpu.memory_space<vmem>>, vector<32x1xf32>
    %110 = vector.broadcast %109 : vector<32x1xf32> to vector<32x256xf32>
    %111 = arith.addf %108, %110 : vector<32x256xf32>
    %112 = arith.addf %111, %62 : vector<32x256xf32>
    %c0_47 = arith.constant 0 : index
    %c0_48 = arith.constant 0 : index
    %c0_49 = arith.constant 0 : index
    %113 = vector.load %arg14[%c0_47, %c0_48, %c0_49] : memref<1x32x256xf32, #tpu.memory_space<vmem>>, vector<1x32x256xf32>
    %114 = vector.shape_cast %113 : vector<1x32x256xf32> to vector<32x256xf32>
    %115 = vector.shape_cast %112 : vector<32x256xf32> to vector<1x32x256xf32>
    tpu.vector_store %arg14[%c0_47, %c0_48, %c0_49], %115 {strides = array<i32>} : memref<1x32x256xf32, #tpu.memory_space<vmem>>, vector<1x32x256xf32>,
    return
  }
  func.func @transform_0(%arg0: i32) -> (i32, i32, i32) {
    %c0_i32 = arith.constant 0 : i32
    %c0_i32_0 = arith.constant 0 : i32
    %c0_i32_1 = arith.constant 0 : i32
    return %arg0, %c0_i32, %c0_i32_0 : i32, i32, i32
  }
  func.func @transform_1(%arg0: i32) -> (i32, i32) {
    %c0_i32 = arith.constant 0 : i32
    %c0_i32_0 = arith.constant 0 : i32
    %c0_i32_1 = arith.constant 0 : i32
    return %c0_i32, %c0_i32_0 : i32, i32
  }
  func.func @transform_2(%arg0: i32) -> (i32, i32) {
    %c0_i32 = arith.constant 0 : i32
    %c0_i32_0 = arith.constant 0 : i32
    %c0_i32_1 = arith.constant 0 : i32
    return %c0_i32, %c0_i32_0 : i32, i32
  }
  func.func @transform_3(%arg0: i32) -> (i32, i32) {
    %c0_i32 = arith.constant 0 : i32
    %c0_i32_0 = arith.constant 0 : i32
    %c0_i32_1 = arith.constant 0 : i32
    return %c0_i32, %c0_i32_0 : i32, i32
  }
  func.func @transform_4(%arg0: i32) -> (i32, i32) {
    %c0_i32 = arith.constant 0 : i32
    %c0_i32_0 = arith.constant 0 : i32
    %c0_i32_1 = arith.constant 0 : i32
    return %c0_i32, %c0_i32_0 : i32, i32
  }
  func.func @transform_5(%arg0: i32) -> (i32, i32) {
    %c0_i32 = arith.constant 0 : i32
    %c0_i32_0 = arith.constant 0 : i32
    %c0_i32_1 = arith.constant 0 : i32
    return %c0_i32, %c0_i32_0 : i32, i32
  }
  func.func @transform_6(%arg0: i32) -> (i32, i32) {
    %c0_i32 = arith.constant 0 : i32
    %c0_i32_0 = arith.constant 0 : i32
    %c0_i32_1 = arith.constant 0 : i32
    return %c0_i32, %c0_i32_0 : i32, i32
  }
  func.func @transform_7(%arg0: i32) -> (i32, i32) {
    %c0_i32 = arith.constant 0 : i32
    %c0_i32_0 = arith.constant 0 : i32
    %c0_i32_1 = arith.constant 0 : i32
    return %c0_i32, %c0_i32_0 : i32, i32
  }
  func.func @transform_8(%arg0: i32) -> (i32, i32) {
    %c0_i32 = arith.constant 0 : i32
    %c0_i32_0 = arith.constant 0 : i32
    %c0_i32_1 = arith.constant 0 : i32
    return %c0_i32, %c0_i32_0 : i32, i32
  }
  func.func @transform_9(%arg0: i32) -> (i32, i32) {
    %c0_i32 = arith.constant 0 : i32
    %c0_i32_0 = arith.constant 0 : i32
    %c0_i32_1 = arith.constant 0 : i32
    return %c0_i32, %c0_i32_0 : i32, i32
  }
  func.func @transform_10(%arg0: i32) -> (i32, i32) {
    %c0_i32 = arith.constant 0 : i32
    %c0_i32_0 = arith.constant 0 : i32
    %c0_i32_1 = arith.constant 0 : i32
    return %c0_i32, %c0_i32_0 : i32, i32
  }
  func.func @transform_11(%arg0: i32) -> (i32, i32) {
    %c0_i32 = arith.constant 0 : i32
    %c0_i32_0 = arith.constant 0 : i32
    %c0_i32_1 = arith.constant 0 : i32
    return %c0_i32, %c0_i32_0 : i32, i32
  }
  func.func @transform_12(%arg0: i32) -> (i32, i32) {
    %c0_i32 = arith.constant 0 : i32
    %c0_i32_0 = arith.constant 0 : i32
    %c0_i32_1 = arith.constant 0 : i32
    return %c0_i32, %c0_i32_0 : i32, i32
  }
  func.func @transform_13(%arg0: i32) -> (i32, i32, i32) {
    %c0_i32 = arith.constant 0 : i32
    %c0_i32_0 = arith.constant 0 : i32
    %c0_i32_1 = arith.constant 0 : i32
    return %arg0, %c0_i32, %c0_i32_0 : i32, i32, i32
  }
}

</mosaic_0001>

<llo_original>
// kernel: self_attention.1
$region0: #{self_attention.1}
  #allocation0 [shape = 'u32[]', space=smem, size = 0x4, offset = 0x4, fixed_abs, tag = 'smem constant byte address 0x4 - core index']
  #allocation1 [shape = 'u32[144,128]{1,0:T(1,128)}', space=vmem, size = 0x12000, scoped, tag = 'internal scratch']
  %s0 = inlined_call_operand.vmem [shape: f32[2,32,256], index: 0, kind: input, shape index: {}]
  %s1 = inlined_call_operand.vmem [shape: f32[32,1], index: 1, kind: input, shape index: {}]
  %s2 = inlined_call_operand.vmem [shape: f32[32,1], index: 2, kind: input, shape index: {}]
  %s3 = inlined_call_operand.vmem [shape: bf16[96,32], index: 3, kind: input, shape index: {}]
  %s4 = inlined_call_operand.vmem [shape: f32[96,1], index: 4, kind: input, shape index: {}]
  %s5 = inlined_call_operand.vmem [shape: bf16[32,32], index: 5, kind: input, shape index: {}]
  %s6 = inlined_call_operand.vmem [shape: f32[32,1], index: 6, kind: input, shape index: {}]
  %s7 = inlined_call_operand.vmem [shape: f32[32,1], index: 7, kind: input, shape index: {}]
  %s8 = inlined_call_operand.vmem [shape: f32[32,1], index: 8, kind: input, shape index: {}]
  %s9 = inlined_call_operand.vmem [shape: bf16[32,32], index: 9, kind: input, shape index: {}]
  %s10 = inlined_call_operand.vmem [shape: f32[32,1], index: 10, kind: input, shape index: {}]
  %s11 = inlined_call_operand.vmem [shape: bf16[32,32], index: 11, kind: input, shape index: {}]
  %s12 = inlined_call_operand.vmem [shape: f32[32,1], index: 12, kind: input, shape index: {}]
  %s13 = inlined_call_operand.vmem [shape: f32[2,32,256], index: 13, kind: output, shape index: {}]
  %s14 = sld [smem:[#allocation0]]
  $region85: #{self_attention.1} parent=0
    _
  %s16 = ssub.s32 1, %s14
  %s17 = scalar_select 0, %s16, %s14
  loop: start=0, step=1, limit=4
  $region2: #{self_attention.1} parent=0 // loop_pre_header
    _
  $region3: #{self_attention.1} parent=0 // loop_header
    %s19 = sphi 0, %s23
    %p20 = scmp.ge.s32.totalorder %s19, 4
    %s29 = sphi 0, %s31
    %s32 = sphi 0, %s29
    %s33 = sphi 0, %s32
    %s49 = sphi 0, %s33
    %s53 = sphi 0, %s53
    %s55 = sphi 0, %s53
    %s56 = sphi 0, %s55
    %s70 = sphi 0, %s56
    %s74 = sphi 0, %s74
    %s76 = sphi 0, %s74
    %s77 = sphi 0, %s76
    %s91 = sphi 0, %s77
    %s95 = sphi 0, %s95
    %s97 = sphi 0, %s95
    %s98 = sphi 0, %s97
    %s112 = sphi 0, %s98
    %s116 = sphi 0, %s116
    %s118 = sphi 0, %s116
    %s119 = sphi 0, %s118
    %s133 = sphi 0, %s119
    %s137 = sphi 0, %s137
    %s139 = sphi 0, %s137
    %s140 = sphi 0, %s139
    %s154 = sphi 0, %s140
    %s158 = sphi 0, %s158
    %s160 = sphi 0, %s158
    %s161 = sphi 0, %s160
    %s175 = sphi 0, %s161
    %s179 = sphi 0, %s179
    %s181 = sphi 0, %s179
    %s182 = sphi 0, %s181
    %s196 = sphi 0, %s182
    %s200 = sphi 0, %s200
    %s202 = sphi 0, %s200
    %s203 = sphi 0, %s202
    %s217 = sphi 0, %s203
    %s221 = sphi 0, %s221
    %s223 = sphi 0, %s221
    %s224 = sphi 0, %s223
    %s238 = sphi 0, %s224
    %s242 = sphi 0, %s242
    %s244 = sphi 0, %s242
    %s245 = sphi 0, %s244
    %s259 = sphi 0, %s245
    %s263 = sphi 0, %s263
    %s265 = sphi 0, %s263
    %s266 = sphi 0, %s265
    %s280 = sphi 0, %s266
    %s284 = sphi 0, %s284
    %s286 = sphi 0, %s284
    %s287 = sphi 0, %s286
    %s301 = sphi 0, %s287
    %s307 = sphi 0, %s309
    %s310 = sphi 0, %s307
    %s311 = sphi 0, %s310
    %s327 = sphi 0, %s311
  $region4: #{self_attention.1} parent=0 // loop_header_branch
    %22 = sbr.rel (%p20) target = $region8
  $region5: #{self_attention.1} parent=0 // loop_body
    %s24 = ssub.s32 %s19, 1
    %s25 = ssub.s32 %s19, 2
    %s26 = sadd.s32 %s19, 1
    %s27 = ssub.s32 %s19, %s26
    %p28 = scmp.eq.s32.totalorder %s27, 0
    %s30 = sadd.s32 %s29, 1
    %s31 = scalar_select %p28, %s29, %s30
    %p34 = pneg %p28
    %p35 = scmp.eq.s32.totalorder %s19, 1
    %p36 = por %p34, %p35
    %p37 = scmp.ne.s32.totalorder %s29, %s32
    %p38 = scmp.eq.s32.totalorder %s19, 0
    %p39 = por %p37, %p38
    %p40 = scmp.ne.s32.totalorder %s29, %s32
    %p41 = scmp.eq.s32.totalorder %s24, 1
    %p42 = por %p40, %p41
    %p43 = scmp.ne.s32.totalorder %s32, %s33
    %p44 = scmp.eq.s32.totalorder %s24, 0
    %p45 = por %p43, %p44
    %p46 = scmp.ne.s32.totalorder %s32, %s33
    %p47 = scmp.eq.s32.totalorder %s25, 1
    %p48 = por %p46, %p47
    %p50 = scmp.ne.s32.totalorder %s33, %s49
    %p51 = scmp.eq.s32.totalorder %s25, 0
    %p52 = por %p50, %p51
    %s54 = sadd.s32 %s53, 1
    %p57 = scmp.eq.s32.totalorder %s19, 1
    %p58 = scmp.ne.s32.totalorder %s53, %s55
    %p59 = scmp.eq.s32.totalorder %s19, 0
    %p60 = por %p58, %p59
    %p61 = scmp.ne.s32.totalorder %s53, %s55
    %p62 = scmp.eq.s32.totalorder %s24, 1
    %p63 = por %p61, %p62
    %p64 = scmp.ne.s32.totalorder %s55, %s56
    %p65 = scmp.eq.s32.totalorder %s24, 0
    %p66 = por %p64, %p65
    %p67 = scmp.ne.s32.totalorder %s55, %s56
    %p68 = scmp.eq.s32.totalorder %s25, 1
    %p69 = por %p67, %p68
    %p71 = scmp.ne.s32.totalorder %s56, %s70
    %p72 = scmp.eq.s32.totalorder %s25, 0
    %p73 = por %p71, %p72
    %s75 = sadd.s32 %s74, 1
    %p78 = scmp.eq.s32.totalorder %s19, 1
    %p79 = scmp.ne.s32.totalorder %s74, %s76
    %p80 = scmp.eq.s32.totalorder %s19, 0
    %p81 = por %p79, %p80
    %p82 = scmp.ne.s32.totalorder %s74, %s76
    %p83 = scmp.eq.s32.totalorder %s24, 1
    %p84 = por %p82, %p83
    %p85 = scmp.ne.s32.totalorder %s76, %s77
    %p86 = scmp.eq.s32.totalorder %s24, 0
    %p87 = por %p85, %p86
    %p88 = scmp.ne.s32.totalorder %s76, %s77
    %p89 = scmp.eq.s32.totalorder %s25, 1
    %p90 = por %p88, %p89
    %p92 = scmp.ne.s32.totalorder %s77, %s91
    %p93 = scmp.eq.s32.totalorder %s25, 0
    %p94 = por %p92, %p93
    %s96 = sadd.s32 %s95, 1
    %p99 = scmp.eq.s32.totalorder %s19, 1
    %p100 = scmp.ne.s32.totalorder %s95, %s97
    %p101 = scmp.eq.s32.totalorder %s19, 0
    %p102 = por %p100, %p101
    %p103 = scmp.ne.s32.totalorder %s95, %s97
    %p104 = scmp.eq.s32.totalorder %s24, 1
    %p105 = por %p103, %p104
    %p106 = scmp.ne.s32.totalorder %s97, %s98
    %p107 = scmp.eq.s32.totalorder %s24, 0
    %p108 = por %p106, %p107
    %p109 = scmp.ne.s32.totalorder %s97, %s98
    %p110 = scmp.eq.s32.totalorder %s25, 1
    %p111 = por %p109, %p110
    %p113 = scmp.ne.s32.totalorder %s98, %s112
    %p114 = scmp.eq.s32.totalorder %s25, 0
    %p115 = por %p113, %p114
    %s117 = sadd.s32 %s116, 1
    %p120 = scmp.eq.s32.totalorder %s19, 1
    %p121 = scmp.ne.s32.totalorder %s116, %s118
    %p122 = scmp.eq.s32.totalorder %s19, 0
    %p123 = por %p121, %p122
    %p124 = scmp.ne.s32.totalorder %s116, %s118
    %p125 = scmp.eq.s32.totalorder %s24, 1
    %p126 = por %p124, %p125
    %p127 = scmp.ne.s32.totalorder %s118, %s119
    %p128 = scmp.eq.s32.totalorder %s24, 0
    %p129 = por %p127, %p128
    %p130 = scmp.ne.s32.totalorder %s118, %s119
    %p131 = scmp.eq.s32.totalorder %s25, 1
    %p132 = por %p130, %p131
    %p134 = scmp.ne.s32.totalorder %s119, %s133
    %p135 = scmp.eq.s32.totalorder %s25, 0
    %p136 = por %p134, %p135
    %s138 = sadd.s32 %s137, 1
    %p141 = scmp.eq.s32.totalorder %s19, 1
    %p142 = scmp.ne.s32.totalorder %s137, %s139
    %p143 = scmp.eq.s32.totalorder %s19, 0
    %p144 = por %p142, %p143
    %p145 = scmp.ne.s32.totalorder %s137, %s139
    %p146 = scmp.eq.s32.totalorder %s24, 1
    %p147 = por %p145, %p146
    %p148 = scmp.ne.s32.totalorder %s139, %s140
    %p149 = scmp.eq.s32.totalorder %s24, 0
    %p150 = por %p148, %p149
    %p151 = scmp.ne.s32.totalorder %s139, %s140
    %p152 = scmp.eq.s32.totalorder %s25, 1
    %p153 = por %p151, %p152
    %p155 = scmp.ne.s32.totalorder %s140, %s154
    %p156 = scmp.eq.s32.totalorder %s25, 0
    %p157 = por %p155, %p156
    %s159 = sadd.s32 %s158, 1
    %p162 = scmp.eq.s32.totalorder %s19, 1
    %p163 = scmp.ne.s32.totalorder %s158, %s160
    %p164 = scmp.eq.s32.totalorder %s19, 0
    %p165 = por %p163, %p164
    %p166 = scmp.ne.s32.totalorder %s158, %s160
    %p167 = scmp.eq.s32.totalorder %s24, 1
    %p168 = por %p166, %p167
    %p169 = scmp.ne.s32.totalorder %s160, %s161
    %p170 = scmp.eq.s32.totalorder %s24, 0
    %p171 = por %p169, %p170
    %p172 = scmp.ne.s32.totalorder %s160, %s161
    %p173 = scmp.eq.s32.totalorder %s25, 1
    %p174 = por %p172, %p173
    %p176 = scmp.ne.s32.totalorder %s161, %s175
    %p177 = scmp.eq.s32.totalorder %s25, 0
    %p178 = por %p176, %p177
    %s180 = sadd.s32 %s179, 1
    %p183 = scmp.eq.s32.totalorder %s19, 1
    %p184 = scmp.ne.s32.totalorder %s179, %s181
    %p185 = scmp.eq.s32.totalorder %s19, 0
    %p186 = por %p184, %p185
    %p187 = scmp.ne.s32.totalorder %s179, %s181
    %p188 = scmp.eq.s32.totalorder %s24, 1
    %p189 = por %p187, %p188
    %p190 = scmp.ne.s32.totalorder %s181, %s182
    %p191 = scmp.eq.s32.totalorder %s24, 0
    %p192 = por %p190, %p191
    %p193 = scmp.ne.s32.totalorder %s181, %s182
    %p194 = scmp.eq.s32.totalorder %s25, 1
    %p195 = por %p193, %p194
    %p197 = scmp.ne.s32.totalorder %s182, %s196
    %p198 = scmp.eq.s32.totalorder %s25, 0
    %p199 = por %p197, %p198
    %s201 = sadd.s32 %s200, 1
    %p204 = scmp.eq.s32.totalorder %s19, 1
    %p205 = scmp.ne.s32.totalorder %s200, %s202
    %p206 = scmp.eq.s32.totalorder %s19, 0
    %p207 = por %p205, %p206
    %p208 = scmp.ne.s32.totalorder %s200, %s202
    %p209 = scmp.eq.s32.totalorder %s24, 1
    %p210 = por %p208, %p209
    %p211 = scmp.ne.s32.totalorder %s202, %s203
    %p212 = scmp.eq.s32.totalorder %s24, 0
    %p213 = por %p211, %p212
    %p214 = scmp.ne.s32.totalorder %s202, %s203
    %p215 = scmp.eq.s32.totalorder %s25, 1
    %p216 = por %p214, %p215
    %p218 = scmp.ne.s32.totalorder %s203, %s217
    %p219 = scmp.eq.s32.totalorder %s25, 0
    %p220 = por %p218, %p219
    %s222 = sadd.s32 %s221, 1
    %p225 = scmp.eq.s32.totalorder %s19, 1
    %p226 = scmp.ne.s32.totalorder %s221, %s223
    %p227 = scmp.eq.s32.totalorder %s19, 0
    %p228 = por %p226, %p227
    %p229 = scmp.ne.s32.totalorder %s221, %s223
    %p230 = scmp.eq.s32.totalorder %s24, 1
    %p231 = por %p229, %p230
    %p232 = scmp.ne.s32.totalorder %s223, %s224
    %p233 = scmp.eq.s32.totalorder %s24, 0
    %p234 = por %p232, %p233
    %p235 = scmp.ne.s32.totalorder %s223, %s224
    %p236 = scmp.eq.s32.totalorder %s25, 1
    %p237 = por %p235, %p236
    %p239 = scmp.ne.s32.totalorder %s224, %s238
    %p240 = scmp.eq.s32.totalorder %s25, 0
    %p241 = por %p239, %p240
    %s243 = sadd.s32 %s242, 1
    %p246 = scmp.eq.s32.totalorder %s19, 1
    %p247 = scmp.ne.s32.totalorder %s242, %s244
    %p248 = scmp.eq.s32.totalorder %s19, 0
    %p249 = por %p247, %p248
    %p250 = scmp.ne.s32.totalorder %s242, %s244
    %p251 = scmp.eq.s32.totalorder %s24, 1
    %p252 = por %p250, %p251
    %p253 = scmp.ne.s32.totalorder %s244, %s245
    %p254 = scmp.eq.s32.totalorder %s24, 0
    %p255 = por %p253, %p254
    %p256 = scmp.ne.s32.totalorder %s244, %s245
    %p257 = scmp.eq.s32.totalorder %s25, 1
    %p258 = por %p256, %p257
    %p260 = scmp.ne.s32.totalorder %s245, %s259
    %p261 = scmp.eq.s32.totalorder %s25, 0
    %p262 = por %p260, %p261
    %s264 = sadd.s32 %s263, 1
    %p267 = scmp.eq.s32.totalorder %s19, 1
    %p268 = scmp.ne.s32.totalorder %s263, %s265
    %p269 = scmp.eq.s32.totalorder %s19, 0
    %p270 = por %p268, %p269
    %p271 = scmp.ne.s32.totalorder %s263, %s265
    %p272 = scmp.eq.s32.totalorder %s24, 1
    %p273 = por %p271, %p272
    %p274 = scmp.ne.s32.totalorder %s265, %s266
    %p275 = scmp.eq.s32.totalorder %s24, 0
    %p276 = por %p274, %p275
    %p277 = scmp.ne.s32.totalorder %s265, %s266
    %p278 = scmp.eq.s32.totalorder %s25, 1
    %p279 = por %p277, %p278
    %p281 = scmp.ne.s32.totalorder %s266, %s280
    %p282 = scmp.eq.s32.totalorder %s25, 0
    %p283 = por %p281, %p282
    %s285 = sadd.s32 %s284, 1
    %p288 = scmp.eq.s32.totalorder %s19, 1
    %p289 = scmp.ne.s32.totalorder %s284, %s286
    %p290 = scmp.eq.s32.totalorder %s19, 0
    %p291 = por %p289, %p290
    %p292 = scmp.ne.s32.totalorder %s284, %s286
    %p293 = scmp.eq.s32.totalorder %s24, 1
    %p294 = por %p292, %p293
    %p295 = scmp.ne.s32.totalorder %s286, %s287
    %p296 = scmp.eq.s32.totalorder %s24, 0
    %p297 = por %p295, %p296
    %p298 = scmp.ne.s32.totalorder %s286, %s287
    %p299 = scmp.eq.s32.totalorder %s25, 1
    %p300 = por %p298, %p299
    %p302 = scmp.ne.s32.totalorder %s287, %s301
    %p303 = scmp.eq.s32.totalorder %s25, 0
    %p304 = por %p302, %p303
    %s305 = ssub.s32 %s19, %s26
    %p306 = scmp.eq.s32.totalorder %s305, 0
    %s308 = sadd.s32 %s307, 1
    %s309 = scalar_select %p306, %s307, %s308
    %p312 = pneg %p306
    %p313 = scmp.eq.s32.totalorder %s19, 1
    %p314 = por %p312, %p313
    %p315 = scmp.ne.s32.totalorder %s307, %s310
    %p316 = scmp.eq.s32.totalorder %s19, 0
    %p317 = por %p315, %p316
    %p318 = scmp.ne.s32.totalorder %s307, %s310
    %p319 = scmp.eq.s32.totalorder %s24, 1
    %p320 = por %p318, %p319
    %p321 = scmp.ne.s32.totalorder %s310, %s311
    %p322 = scmp.eq.s32.totalorder %s24, 0
    %p323 = por %p321, %p322
    %p324 = scmp.ne.s32.totalorder %s310, %s311
    %p325 = scmp.eq.s32.totalorder %s25, 1
    %p326 = por %p324, %p325
    %p328 = scmp.ne.s32.totalorder %s311, %s327
    %p329 = scmp.eq.s32.totalorder %s25, 0
    %p330 = por %p328, %p329
    %p331 = scmp.le.s32.totalorder 1, %s19
    %p332 = scmp.lt.s32.totalorder %s19, 3
    %p333 = pnand %p331, %p332
    %p334 = pneg %p333
    // Predicated region
    $region9: #{self_attention.1} parent=5 // pred_check
      _
    $region10: #{self_attention.1} parent=5 // pred_check_branch
      %336 = sbr.rel (%p333) target = $region12
    $region11: #{self_attention.1} parent=5 // pred_region
      %s337 = ssub.s32 %s19, 1
      // Predicated region
      $region13: #{self_attention.1} parent=11 // pred_check
        %p338 = pneg %p66
      $region14: #{self_attention.1} parent=11 // pred_check_branch
        %340 = sbr.rel (%p338) target = $region16
      $region15: #{self_attention.1} parent=11 // pred_region
        _
      $region16: #{self_attention.1} parent=11 // pred_fallthru
        _
      // Predicated region
      $region17: #{self_attention.1} parent=11 // pred_check
        %p341 = pneg %p87
      $region18: #{self_attention.1} parent=11 // pred_check_branch
        %343 = sbr.rel (%p341) target = $region20
      $region19: #{self_attention.1} parent=11 // pred_region
        _
      $region20: #{self_attention.1} parent=11 // pred_fallthru
        _
      // Predicated region
      $region21: #{self_attention.1} parent=11 // pred_check
        %p344 = pneg %p108
      $region22: #{self_attention.1} parent=11 // pred_check_branch
        %346 = sbr.rel (%p344) target = $region24
      $region23: #{self_attention.1} parent=11 // pred_region
        _
      $region24: #{self_attention.1} parent=11 // pred_fallthru
        _
      // Predicated region
      $region25: #{self_attention.1} parent=11 // pred_check
        %p347 = pneg %p129
      $region26: #{self_attention.1} parent=11 // pred_check_branch
        %349 = sbr.rel (%p347) target = $region28
      $region27: #{self_attention.1} parent=11 // pred_region
        _
      $region28: #{self_attention.1} parent=11 // pred_fallthru
        _
      // Predicated region
      $region29: #{self_attention.1} parent=11 // pred_check
        %p350 = pneg %p150
      $region30: #{self_attention.1} parent=11 // pred_check_branch
        %352 = sbr.rel (%p350) target = $region32
      $region31: #{self_attention.1} parent=11 // pred_region
        _
      $region32: #{self_attention.1} parent=11 // pred_fallthru
        _
      // Predicated region
      $region33: #{self_attention.1} parent=11 // pred_check
        %p353 = pneg %p171
      $region34: #{self_attention.1} parent=11 // pred_check_branch
        %355 = sbr.rel (%p353) target = $region36
      $region35: #{self_attention.1} parent=11 // pred_region
        _
      $region36: #{self_attention.1} parent=11 // pred_fallthru
        _
      // Predicated region
      $region37: #{self_attention.1} parent=11 // pred_check
        %p356 = pneg %p192
      $region38: #{self_attention.1} parent=11 // pred_check_branch
        %358 = sbr.rel (%p356) target = $region40
      $region39: #{self_attention.1} parent=11 // pred_region
        _
      $region40: #{self_attention.1} parent=11 // pred_fallthru
        _
      // Predicated region
      $region41: #{self_attention.1} parent=11 // pred_check
        %p359 = pneg %p213
      $region42: #{self_attention.1} parent=11 // pred_check_branch
        %361 = sbr.rel (%p359) target = $region44
      $region43: #{self_attention.1} parent=11 // pred_region
        _
      $region44: #{self_attention.1} parent=11 // pred_fallthru
        _
      // Predicated region
      $region45: #{self_attention.1} parent=11 // pred_check
        %p362 = pneg %p234
      $region46: #{self_attention.1} parent=11 // pred_check_branch
        %364 = sbr.rel (%p362) target = $region48
      $region47: #{self_attention.1} parent=11 // pred_region
        _
      $region48: #{self_attention.1} parent=11 // pred_fallthru
        _
      // Predicated region
      $region49: #{self_attention.1} parent=11 // pred_check
        %p365 = pneg %p255
      $region50: #{self_attention.1} parent=11 // pred_check_branch
        %367 = sbr.rel (%p365) target = $region52
      $region51: #{self_attention.1} parent=11 // pred_region
        _
      $region52: #{self_attention.1} parent=11 // pred_fallthru
        _
      // Predicated region
      $region53: #{self_attention.1} parent=11 // pred_check
        %p368 = pneg %p276
      $region54: #{self_attention.1} parent=11 // pred_check_branch
        %370 = sbr.rel (%p368) target = $region56
      $region55: #{self_attention.1} parent=11 // pred_region
        _
      $region56: #{self_attention.1} parent=11 // pred_fallthru
        _
      // Predicated region
      $region57: #{self_attention.1} parent=11 // pred_check
        %p371 = pneg %p297
      $region58: #{self_attention.1} parent=11 // pred_check_branch
        %373 = sbr.rel (%p371) target = $region60
      $region59: #{self_attention.1} parent=11 // pred_region
        _
      $region60: #{self_attention.1} parent=11 // pred_fallthru
        _
    $region12: #{self_attention.1} parent=5 // pred_fallthru
      _
    %p374 = scmp.lt.s32.totalorder %s19, 2
    // Predicated region
    $region61: #{self_attention.1} parent=5 // pred_check
      %p375 = pneg %p374
    $region62: #{self_attention.1} parent=5 // pred_check_branch
      %377 = sbr.rel (%p375) target = $region64
    $region63: #{self_attention.1} parent=5 // pred_region
      // Predicated region
      $region65: #{self_attention.1} parent=63 // pred_check
        %p378 = pneg %p39
      $region66: #{self_attention.1} parent=63 // pred_check_branch
        %380 = sbr.rel (%p378) target = $region68
      $region67: #{self_attention.1} parent=63 // pred_region
        %p381 = scmp.lt.s32.totalorder %s19, 1
        %s382 = scalar_select %p381, %s19, 1
        %s383 = smul.addr %s382, 8
        %s384 = smul.addr %s383, 8
        %s385 = scalar_lea.vmem %s0, %s384
      $region68: #{self_attention.1} parent=63 // pred_fallthru
        _
    $region64: #{self_attention.1} parent=5 // pred_fallthru
      _
    %p386 = scmp.le.s32.totalorder 1, %s19
    %p387 = scmp.lt.s32.totalorder %s19, 3
    %p388 = pnand %p386, %p387
    %p389 = pneg %p388
    // Predicated region
    $region69: #{self_attention.1} parent=5 // pred_check
      _
    $region70: #{self_attention.1} parent=5 // pred_check_branch
      %391 = sbr.rel (%p388) target = $region72
    $region71: #{self_attention.1} parent=5 // pred_region
      %s392 = ssub.s32 %s19, 1
      %p393 = scmp.lt.s32.totalorder %s24, 1
      %s394 = scalar_select %p393, %s24, 1
      %s395 = smul.addr %s394, 8
      %s396 = smul.addr %s395, 8
      %s397 = scalar_lea.vmem %s0, %s396
      %p398 = pneg %p45
      %p399 = pneg %p42
      %p400 = pneg %p66
      %p401 = pneg %p63
      %p402 = pneg %p87
      %p403 = pneg %p84
      %p404 = pneg %p108
      %p405 = pneg %p105
      %p406 = pneg %p129
      %p407 = pneg %p126
      %p408 = pneg %p150
      %p409 = pneg %p147
      %p410 = pneg %p171
      %p411 = pneg %p168
      %p412 = pneg %p192
      %p413 = pneg %p189
      %p414 = pneg %p213
      %p415 = pneg %p210
      %p416 = pneg %p234
      %p417 = pneg %p231
      %p418 = pneg %p255
      %p419 = pneg %p252
      %p420 = pneg %p276
      %p421 = pneg %p273
      %p422 = pneg %p297
      %p423 = pneg %p294
      %p424 = pneg %p323
      %p425 = pneg %p320
      %p426 = scmp.lt.s32.totalorder %s24, 1
      %s427 = scalar_select %p426, %s24, 1
      %s428 = smul.addr %s427, 8
      %s429 = smul.addr %s428, 8
      %s430 = scalar_lea.vmem %s13, %s429
      %p431 = scmp.lt.s32.totalorder %s24, 1
      %s432 = scalar_select %p431, %s24, 1
      %s433 = smul.addr %s432, 8
      %s434 = smul.addr %s433, 8
      %s435 = scalar_lea.vmem %s0, %s434
      %p436 = scmp.lt.s32.totalorder %s24, 1
      %s437 = scalar_select %p436, %s24, 1
      %s438 = smul.addr %s437, 8
      %s439 = smul.addr %s438, 8
      %s440 = scalar_lea.vmem %s13, %s439
      %v442 = vld [vmem:[%s435] sm:$0xff]
      %v443 = vld [vmem:[%s435 + $0x8] sm:$0xff]
      %v444 = vld [vmem:[%s435 + $0x10] sm:$0xff]
      %v445 = vld [vmem:[%s435 + $0x18] sm:$0xff]
      %v446 = vld [vmem:[%s435 + $0x20] sm:$0xff]
      %v447 = vld [vmem:[%s435 + $0x28] sm:$0xff]
      %v448 = vld [vmem:[%s435 + $0x30] sm:$0xff]
      %v449 = vld [vmem:[%s435 + $0x38] sm:$0xff]
      %v450 = vld [vmem:[%s1] sm:$0xff]
      %v451 = vld [vmem:[%s1 + $0x8] sm:$0xff]
      %v452 = vld [vmem:[%s1 + $0x10] sm:$0xff]
      %v453 = vld [vmem:[%s1 + $0x18] sm:$0xff]
      %v454 = vld [vmem:[%s2] sm:$0xff]
      %v455 = vld [vmem:[%s2 + $0x8] sm:$0xff]
      %v456 = vld [vmem:[%s2 + $0x10] sm:$0xff]
      %v457 = vld [vmem:[%s2 + $0x18] sm:$0xff]
      %v458 = vadd.f32 %v442, %v444
      %v459 = vadd.f32 %v458, %v446
      %v460 = vadd.f32 %v459, %v448
      %v461 = vrot.slane %v460, 4
      %v462 = vadd.f32 %v460, %v461
      %v463 = vrot.slane %v462, 2
      %v464 = vadd.f32 %v462, %v463
      %v465 = vrot.slane %v464, 1
      %v466 = vadd.f32 %v464, %v465
      %v467 = vadd.f32 %v443, %v445
      %v468 = vadd.f32 %v467, %v447
      %v469 = vadd.f32 %v468, %v449
      %v470 = vrot.slane %v469, 4
      %v471 = vadd.f32 %v469, %v470
      %v472 = vrot.slane %v471, 2
      %v473 = vadd.f32 %v471, %v472
      %v474 = vrot.slane %v473, 1
      %v475 = vadd.f32 %v473, %v474
      %v476 = vrcp.pop 32.0
      %v477 = vmul.f32 %v466, %v476
      %v478 = vmul.f32 %v475, %v476
      %v479 = vsub.f32 %v442, %v477
      %v480 = vsub.f32 %v443, %v478
      %v481 = vsub.f32 %v444, %v477
      %v482 = vsub.f32 %v445, %v478
      %v483 = vsub.f32 %v446, %v477
      %v484 = vsub.f32 %v447, %v478
      %v485 = vsub.f32 %v448, %v477
      %v486 = vsub.f32 %v449, %v478
      %v487 = vmul.f32 %v479, %v479
      %v488 = vmul.f32 %v480, %v480
      %v489 = vmul.f32 %v481, %v481
      %v490 = vmul.f32 %v482, %v482
      %v491 = vmul.f32 %v483, %v483
      %v492 = vmul.f32 %v484, %v484
      %v493 = vmul.f32 %v485, %v485
      %v494 = vmul.f32 %v486, %v486
      %v495 = vadd.f32 %v487, %v489
      %v496 = vadd.f32 %v495, %v491
      %v497 = vadd.f32 %v496, %v493
      %v498 = vrot.slane %v497, 4
      %v499 = vadd.f32 %v497, %v498
      %v500 = vrot.slane %v499, 2
      %v501 = vadd.f32 %v499, %v500
      %v502 = vrot.slane %v501, 1
      %v503 = vadd.f32 %v501, %v502
      %v504 = vadd.f32 %v488, %v490
      %v505 = vadd.f32 %v504, %v492
      %v506 = vadd.f32 %v505, %v494
      %v507 = vrot.slane %v506, 4
      %v508 = vadd.f32 %v506, %v507
      %v509 = vrot.slane %v508, 2
      %v510 = vadd.f32 %v508, %v509
      %v511 = vrot.slane %v510, 1
      %v512 = vadd.f32 %v510, %v511
      %v513 = vmul.f32 %v503, %v476
      %v514 = vmul.f32 %v512, %v476
      %v515 = vadd.f32 %v513, 1e-05
      %v516 = vadd.f32 %v514, 1e-05
      %v517 = vrsqrt.pop %v515
      %v518 = vrsqrt.pop %v516
      %v519 = vmul.f32 %v479, %v517
      %v520 = vmul.f32 %v480, %v518
      %v521 = vmul.f32 %v481, %v517
      %v522 = vmul.f32 %v482, %v518
      %v523 = vmul.f32 %v483, %v517
      %v524 = vmul.f32 %v484, %v518
      %v525 = vmul.f32 %v485, %v517
      %v526 = vmul.f32 %v486, %v518
      %528 = vset.pattern.permute.xlu0 0
      %529 = vperm.xlu0 %528, %v450
      %v530 = vpop.permute.xlu0 %529
      %533 = vset.pattern.permute.xlu0 0
      %534 = vperm.xlu0 %533, %v451
      %v535 = vpop.permute.xlu0 %534
      %538 = vset.pattern.permute.xlu0 0
      %539 = vperm.xlu0 %538, %v452
      %v540 = vpop.permute.xlu0 %539
      %543 = vset.pattern.permute.xlu0 0
      %544 = vperm.xlu0 %543, %v453
      %v545 = vpop.permute.xlu0 %544
      %v547 = vmul.f32 %v519, %v530
      %v548 = vmul.f32 %v520, %v530
      %v549 = vmul.f32 %v521, %v535
      %v550 = vmul.f32 %v522, %v535
      %v551 = vmul.f32 %v523, %v540
      %v552 = vmul.f32 %v524, %v540
      %v553 = vmul.f32 %v525, %v545
      %v554 = vmul.f32 %v526, %v545
      %556 = vset.pattern.permute.xlu0 0
      %557 = vperm.xlu0 %556, %v454
      %v558 = vpop.permute.xlu0 %557
      %561 = vset.pattern.permute.xlu0 0
      %562 = vperm.xlu0 %561, %v455
      %v563 = vpop.permute.xlu0 %562
      %566 = vset.pattern.permute.xlu0 0
      %567 = vperm.xlu0 %566, %v456
      %v568 = vpop.permute.xlu0 %567
      %571 = vset.pattern.permute.xlu0 0
      %572 = vperm.xlu0 %571, %v457
      %v573 = vpop.permute.xlu0 %572
      %v575 = vadd.f32 %v547, %v558
      %v576 = vadd.f32 %v548, %v558
      %v577 = vadd.f32 %v549, %v563
      %v578 = vadd.f32 %v550, %v563
      %v579 = vadd.f32 %v551, %v568
      %v580 = vadd.f32 %v552, %v568
      %v581 = vadd.f32 %v553, %v573
      %v582 = vadd.f32 %v554, %v573
      %v583 = vld [vmem:[%s3] sm:$0xf]
      %v584 = vld [vmem:[%s3 + $0x4] sm:$0xf]
      %v585 = vld [vmem:[%s3 + $0x8] sm:$0xf]
      %v586 = vld [vmem:[%s3 + $0xc] sm:$0xf]
      %v587 = vld [vmem:[%s3 + $0x10] sm:$0xf]
      %v588 = vld [vmem:[%s3 + $0x14] sm:$0xf]
      %v589 = vld [vmem:[%s3 + $0x18] sm:$0xf]
      %v590 = vld [vmem:[%s3 + $0x1c] sm:$0xf]
      %v591 = vld [vmem:[%s3 + $0x20] sm:$0xf]
      %v592 = vld [vmem:[%s3 + $0x24] sm:$0xf]
      %v593 = vld [vmem:[%s3 + $0x28] sm:$0xf]
      %v594 = vld [vmem:[%s3 + $0x2c] sm:$0xf]
      %v595 = vpack.c.bf16 %v577, %v575
      %v596 = vpack.c.bf16 %v578, %v576
      %v597 = vpack.c.bf16 %v581, %v579
      %v598 = vpack.c.bf16 %v582, %v580
      %v599 = vld [vmem:[%s4] sm:$0xff]
      %v600 = vld [vmem:[%s4 + $0x8] sm:$0xff]
      %v601 = vld [vmem:[%s4 + $0x10] sm:$0xff]
      %v602 = vld [vmem:[%s4 + $0x18] sm:$0xff]
      %v603 = vld [vmem:[%s4 + $0x20] sm:$0xff]
      %v604 = vld [vmem:[%s4 + $0x28] sm:$0xff]
      %v605 = vld [vmem:[%s4 + $0x30] sm:$0xff]
      %v606 = vld [vmem:[%s4 + $0x38] sm:$0xff]
      %v607 = vld [vmem:[%s4 + $0x40] sm:$0xff]
      %v608 = vld [vmem:[%s4 + $0x48] sm:$0xff]
      %v609 = vld [vmem:[%s4 + $0x50] sm:$0xff]
      %v610 = vld [vmem:[%s4 + $0x58] sm:$0xff]
      %612 = vset.pattern.permute.xlu0 0
      %613 = vperm.xlu0 %612, %v599
      %v614 = vpop.permute.xlu0 %613
      %617 = vset.pattern.permute.xlu0 0
      %618 = vperm.xlu0 %617, %v600
      %v619 = vpop.permute.xlu0 %618
      %622 = vset.pattern.permute.xlu0 0
      %623 = vperm.xlu0 %622, %v601
      %v624 = vpop.permute.xlu0 %623
      %627 = vset.pattern.permute.xlu0 0
      %628 = vperm.xlu0 %627, %v602
      %v629 = vpop.permute.xlu0 %628
      %632 = vset.pattern.permute.xlu0 0
      %633 = vperm.xlu0 %632, %v603
      %v634 = vpop.permute.xlu0 %633
      %637 = vset.pattern.permute.xlu0 0
      %638 = vperm.xlu0 %637, %v604
      %v639 = vpop.permute.xlu0 %638
      %642 = vset.pattern.permute.xlu0 0
      %643 = vperm.xlu0 %642, %v605
      %v644 = vpop.permute.xlu0 %643
      %647 = vset.pattern.permute.xlu0 0
      %648 = vperm.xlu0 %647, %v606
      %v649 = vpop.permute.xlu0 %648
      %652 = vset.pattern.permute.xlu0 0
      %653 = vperm.xlu0 %652, %v607
      %v654 = vpop.permute.xlu0 %653
      %657 = vset.pattern.permute.xlu0 0
      %658 = vperm.xlu0 %657, %v608
      %v659 = vpop.permute.xlu0 %658
      %662 = vset.pattern.permute.xlu0 0
      %663 = vperm.xlu0 %662, %v609
      %v664 = vpop.permute.xlu0 %663
      %667 = vset.pattern.permute.xlu0 0
      %668 = vperm.xlu0 %667, %v610
      %v669 = vpop.permute.xlu0 %668
      %v683 = vunpack.c.l.b16 %v583
      %v684 = vunpack.c.l.b16 %v584
      %v685 = vunpack.c.l.b16 %v585
      %v686 = vunpack.c.l.b16 %v586
      %v687 = vunpack.c.l.b16 %v587
      %v688 = vunpack.c.l.b16 %v588
      %v689 = vunpack.c.l.b16 %v589
      %v690 = vunpack.c.l.b16 %v590
      %v691 = vunpack.c.l.b16 %v591
      %v692 = vunpack.c.l.b16 %v592
      %v693 = vunpack.c.l.b16 %v593
      %v694 = vunpack.c.l.b16 %v594
      %v695 = vpack.c.b16 %v684, %v683
      %v696 = vpack.c.b16 %v686, %v685
      %v697 = vpack.c.b16 %v688, %v687
      %v698 = vpack.c.b16 %v690, %v689
      %v699 = vpack.c.b16 %v692, %v691
      %v700 = vpack.c.b16 %v694, %v693
      %vm701 = vcmask 261120
      %v703 = vsel %vm701, %v695, 0
      %v706 = vsel %vm701, %v696, 0
      %v709 = vsel %vm701, %v697, 0
      %v712 = vsel %vm701, %v698, 0
      %v715 = vsel %vm701, %v699, 0
      %v718 = vsel %vm701, %v700, 0
      %720 = vmatprep.subr.bf16.mxu0 0
      %721 = vmatpush1.bf16.msra.mxu0 0
      %722 = vmatprep.subr.bf16.mxu0 0
      %723 = vmatpush1.bf16.msra.mxu0 0
      %724 = vmatprep.subr.bf16.mxu0 0
      %725 = vmatpush1.bf16.msra.mxu0 0
      %726 = vmatprep.subr.bf16.mxu0 0
      %727 = vmatpush1.bf16.msra.mxu0 0
      %728 = vmatprep.subr.bf16.mxu0 0
      %729 = vmatpush1.bf16.msra.mxu0 0
      %730 = vmatprep.subr.bf16.mxu0 0
      %731 = vmatpush1.bf16.msra.mxu0 0
      %732 = vmatprep.subr.bf16.mxu0 %v598
      %733 = vmatpush1.bf16.msra.mxu0 %v597
      %734 = vmatprep.subr.bf16.mxu0 %v596
      %735 = vmatpush1.bf16.msra.mxu0 %v595
      %736 = vmatprep.subr.bf16.mxu0 0
      %737 = vmatpush2.bf16.msra.mxu0 0
      %738 = vmatprep.subr.bf16.mxu0 0
      %739 = vmatpush2.bf16.msra.mxu0 0
      %740 = vmatprep.subr.bf16.mxu0 0
      %741 = vmatpush2.bf16.msra.mxu0 0
      %742 = vmatprep.subr.bf16.mxu0 0
      %743 = vmatpush2.bf16.msra.mxu0 0
      %744 = vmatprep.subr.bf16.mxu0 0
      %745 = vmatpush2.bf16.msra.mxu0 0
      %746 = vmatprep.subr.bf16.mxu0 0
      %747 = vmatpush2.bf16.msra.mxu0 0
      %748 = vmatprep.subr.bf16.mxu0 0
      %749 = vmatpush2.bf16.msra.mxu0 0
      %750 = vmatprep.subr.bf16.mxu0 0
      %751 = vmatpush2.bf16.msra.mxu0 0
      %752 = vmatprep.mubr.bf16.mxu0 0
      %753 = vmatmul.mubr.bf16.gmra.mxu0 %v703
      %v754 = vpop.f32.mrf.mxu0
      %v755 = vadd.f32 %v614, %v754
      %v756 = vpop.f32.mrf.mxu0
      %v757 = vadd.f32 %v614, %v756
      %v758 = vpop.f32.mrf.mxu0
      %v759 = vadd.f32 %v619, %v758
      %v760 = vpop.f32.mrf.mxu0
      %v761 = vadd.f32 %v619, %v760
      %762 = vmatprep.mubr.bf16.mxu0 0
      %763 = vmatmul.mubr.bf16.gmra.mxu0 %v706
      %v764 = vpop.f32.mrf.mxu0
      %v765 = vadd.f32 %v624, %v764
      %v766 = vpop.f32.mrf.mxu0
      %v767 = vadd.f32 %v624, %v766
      %v768 = vpop.f32.mrf.mxu0
      %v769 = vadd.f32 %v629, %v768
      %v770 = vpop.f32.mrf.mxu0
      %v771 = vadd.f32 %v629, %v770
      %772 = vmatprep.mubr.bf16.mxu0 0
      %773 = vmatmul.mubr.bf16.gmra.mxu0 %v709
      %v774 = vpop.f32.mrf.mxu0
      %v775 = vadd.f32 %v634, %v774
      %v776 = vpop.f32.mrf.mxu0
      %v777 = vadd.f32 %v634, %v776
      %v778 = vpop.f32.mrf.mxu0
      %v779 = vadd.f32 %v639, %v778
      %v780 = vpop.f32.mrf.mxu0
      %v781 = vadd.f32 %v639, %v780
      %782 = vmatprep.mubr.bf16.mxu0 0
      %783 = vmatmul.mubr.bf16.gmra.mxu0 %v712
      %v784 = vpop.f32.mrf.mxu0
      %v785 = vadd.f32 %v644, %v784
      %v786 = vpop.f32.mrf.mxu0
      %v787 = vadd.f32 %v644, %v786
      %v788 = vpop.f32.mrf.mxu0
      %v789 = vadd.f32 %v649, %v788
      %v790 = vpop.f32.mrf.mxu0
      %v791 = vadd.f32 %v649, %v790
      %792 = vmatprep.mubr.bf16.mxu0 0
      %793 = vmatmul.mubr.bf16.gmra.mxu0 %v715
      %v794 = vpop.f32.mrf.mxu0
      %v795 = vadd.f32 %v654, %v794
      %v796 = vpop.f32.mrf.mxu0
      %v797 = vadd.f32 %v654, %v796
      %v798 = vpop.f32.mrf.mxu0
      %v799 = vadd.f32 %v659, %v798
      %v800 = vpop.f32.mrf.mxu0
      %v801 = vadd.f32 %v659, %v800
      %802 = vmatprep.mubr.bf16.mxu0 0
      %803 = vmatmul.mubr.bf16.gmra.mxu0 %v718
      %v804 = vpop.f32.mrf.mxu0
      %v805 = vadd.f32 %v664, %v804
      %v806 = vpop.f32.mrf.mxu0
      %v807 = vadd.f32 %v664, %v806
      %v808 = vpop.f32.mrf.mxu0
      %v809 = vadd.f32 %v669, %v808
      %v810 = vpop.f32.mrf.mxu0
      %v811 = vadd.f32 %v669, %v810
      %812 = vdwg.mxu0
      %813 = vxpose.xlu0.b32.start [1/16] %v755, 128
      %814 = vxpose.xlu0.b32.cont [2/16] 0.0, 128
      %815 = vxpose.xlu0.b32.cont [3/16] 0.0, 128
      %816 = vxpose.xlu0.b32.cont [4/16] 0.0, 128
      %817 = vxpose.xlu0.b32.cont [5/16] 0.0, 128
      %818 = vxpose.xlu0.b32.cont [6/16] 0.0, 128
      %819 = vxpose.xlu0.b32.cont [7/16] 0.0, 128
      %820 = vxpose.xlu0.b32.cont [8/16] 0.0, 128
      %821 = vxpose.xlu0.b32.cont [9/16] 0.0, 128
      %822 = vxpose.xlu0.b32.cont [10/16] 0.0, 128
      %823 = vxpose.xlu0.b32.cont [11/16] 0.0, 128
      %824 = vxpose.xlu0.b32.cont [12/16] 0.0, 128
      %825 = vxpose.xlu0.b32.cont [13/16] 0.0, 128
      %826 = vxpose.xlu0.b32.cont [14/16] 0.0, 128
      %827 = vxpose.xlu0.b32.cont [15/16] 0.0, 128
      %828 = vxpose.xlu0.b32.end [16/16] 0.0, 128
      %v829 = vpop.trf.xlu0
      %v830 = vpop.trf.xlu0
      %v831 = vpop.trf.xlu0
      %v832 = vpop.trf.xlu0
      %v833 = vpop.trf.xlu0
      %v834 = vpop.trf.xlu0
      %v835 = vpop.trf.xlu0
      %v836 = vpop.trf.xlu0
      %v837 = vpop.trf.xlu0
      %v838 = vpop.trf.xlu0
      %v839 = vpop.trf.xlu0
      %v840 = vpop.trf.xlu0
      %v841 = vpop.trf.xlu0
      %v842 = vpop.trf.xlu0
      %v843 = vpop.trf.xlu0
      %v844 = vpop.trf.xlu0
      %845 = vxpose.xlu0.b32.start [1/16] %v757, 128
      %846 = vxpose.xlu0.b32.cont [2/16] 0.0, 128
      %847 = vxpose.xlu0.b32.cont [3/16] 0.0, 128
      %848 = vxpose.xlu0.b32.cont [4/16] 0.0, 128
      %849 = vxpose.xlu0.b32.cont [5/16] 0.0, 128
      %850 = vxpose.xlu0.b32.cont [6/16] 0.0, 128
      %851 = vxpose.xlu0.b32.cont [7/16] 0.0, 128
      %852 = vxpose.xlu0.b32.cont [8/16] 0.0, 128
      %853 = vxpose.xlu0.b32.cont [9/16] 0.0, 128
      %854 = vxpose.xlu0.b32.cont [10/16] 0.0, 128
      %855 = vxpose.xlu0.b32.cont [11/16] 0.0, 128
      %856 = vxpose.xlu0.b32.cont [12/16] 0.0, 128
      %857 = vxpose.xlu0.b32.cont [13/16] 0.0, 128
      %858 = vxpose.xlu0.b32.cont [14/16] 0.0, 128
      %859 = vxpose.xlu0.b32.cont [15/16] 0.0, 128
      %860 = vxpose.xlu0.b32.end [16/16] 0.0, 128
      %v861 = vpop.trf.xlu0
      %v862 = vpop.trf.xlu0
      %v863 = vpop.trf.xlu0
      %v864 = vpop.trf.xlu0
      %v865 = vpop.trf.xlu0
      %v866 = vpop.trf.xlu0
      %v867 = vpop.trf.xlu0
      %v868 = vpop.trf.xlu0
      %v869 = vpop.trf.xlu0
      %v870 = vpop.trf.xlu0
      %v871 = vpop.trf.xlu0
      %v872 = vpop.trf.xlu0
      %v873 = vpop.trf.xlu0
      %v874 = vpop.trf.xlu0
      %v875 = vpop.trf.xlu0
      %v876 = vpop.trf.xlu0
      %877 = vxpose.xlu0.b32.start [1/16] %v759, 128
      %878 = vxpose.xlu0.b32.cont [2/16] 0.0, 128
      %879 = vxpose.xlu0.b32.cont [3/16] 0.0, 128
      %880 = vxpose.xlu0.b32.cont [4/16] 0.0, 128
      %881 = vxpose.xlu0.b32.cont [5/16] 0.0, 128
      %882 = vxpose.xlu0.b32.cont [6/16] 0.0, 128
      %883 = vxpose.xlu0.b32.cont [7/16] 0.0, 128
      %884 = vxpose.xlu0.b32.cont [8/16] 0.0, 128
      %885 = vxpose.xlu0.b32.cont [9/16] 0.0, 128
      %886 = vxpose.xlu0.b32.cont [10/16] 0.0, 128
      %887 = vxpose.xlu0.b32.cont [11/16] 0.0, 128
      %888 = vxpose.xlu0.b32.cont [12/16] 0.0, 128
      %889 = vxpose.xlu0.b32.cont [13/16] 0.0, 128
      %890 = vxpose.xlu0.b32.cont [14/16] 0.0, 128
      %891 = vxpose.xlu0.b32.cont [15/16] 0.0, 128
      %892 = vxpose.xlu0.b32.end [16/16] 0.0, 128
      %v893 = vpop.trf.xlu0
      %v894 = vpop.trf.xlu0
      %v895 = vpop.trf.xlu0
      %v896 = vpop.trf.xlu0
      %v897 = vpop.trf.xlu0
      %v898 = vpop.trf.xlu0
      %v899 = vpop.trf.xlu0
      %v900 = vpop.trf.xlu0
      %v901 = vpop.trf.xlu0
      %v902 = vpop.trf.xlu0
      %v903 = vpop.trf.xlu0
      %v904 = vpop.trf.xlu0
      %v905 = vpop.trf.xlu0
      %v906 = vpop.trf.xlu0
      %v907 = vpop.trf.xlu0
      %v908 = vpop.trf.xlu0
      %909 = vxpose.xlu0.b32.start [1/16] %v761, 128
      %910 = vxpose.xlu0.b32.cont [2/16] 0.0, 128
      %911 = vxpose.xlu0.b32.cont [3/16] 0.0, 128
      %912 = vxpose.xlu0.b32.cont [4/16] 0.0, 128
      %913 = vxpose.xlu0.b32.cont [5/16] 0.0, 128
      %914 = vxpose.xlu0.b32.cont [6/16] 0.0, 128
      %915 = vxpose.xlu0.b32.cont [7/16] 0.0, 128
      %916 = vxpose.xlu0.b32.cont [8/16] 0.0, 128
      %917 = vxpose.xlu0.b32.cont [9/16] 0.0, 128
      %918 = vxpose.xlu0.b32.cont [10/16] 0.0, 128
      %919 = vxpose.xlu0.b32.cont [11/16] 0.0, 128
      %920 = vxpose.xlu0.b32.cont [12/16] 0.0, 128
      %921 = vxpose.xlu0.b32.cont [13/16] 0.0, 128
      %922 = vxpose.xlu0.b32.cont [14/16] 0.0, 128
      %923 = vxpose.xlu0.b32.cont [15/16] 0.0, 128
      %924 = vxpose.xlu0.b32.end [16/16] 0.0, 128
      %v925 = vpop.trf.xlu0
      %v926 = vpop.trf.xlu0
      %v927 = vpop.trf.xlu0
      %v928 = vpop.trf.xlu0
      %v929 = vpop.trf.xlu0
      %v930 = vpop.trf.xlu0
      %v931 = vpop.trf.xlu0
      %v932 = vpop.trf.xlu0
      %v933 = vpop.trf.xlu0
      %v934 = vpop.trf.xlu0
      %v935 = vpop.trf.xlu0
      %v936 = vpop.trf.xlu0
      %v937 = vpop.trf.xlu0
      %v938 = vpop.trf.xlu0
      %v939 = vpop.trf.xlu0
      %v940 = vpop.trf.xlu0
      %941 = vxpose.xlu0.b32.start [1/16] %v765, 128
      %942 = vxpose.xlu0.b32.cont [2/16] 0.0, 128
      %943 = vxpose.xlu0.b32.cont [3/16] 0.0, 128
      %944 = vxpose.xlu0.b32.cont [4/16] 0.0, 128
      %945 = vxpose.xlu0.b32.cont [5/16] 0.0, 128
      %946 = vxpose.xlu0.b32.cont [6/16] 0.0, 128
      %947 = vxpose.xlu0.b32.cont [7/16] 0.0, 128
      %948 = vxpose.xlu0.b32.cont [8/16] 0.0, 128
      %949 = vxpose.xlu0.b32.cont [9/16] 0.0, 128
      %950 = vxpose.xlu0.b32.cont [10/16] 0.0, 128
      %951 = vxpose.xlu0.b32.cont [11/16] 0.0, 128
      %952 = vxpose.xlu0.b32.cont [12/16] 0.0, 128
      %953 = vxpose.xlu0.b32.cont [13/16] 0.0, 128
      %954 = vxpose.xlu0.b32.cont [14/16] 0.0, 128
      %955 = vxpose.xlu0.b32.cont [15/16] 0.0, 128
      %956 = vxpose.xlu0.b32.end [16/16] 0.0, 128
      %v957 = vpop.trf.xlu0
      %v958 = vpop.trf.xlu0
      %v959 = vpop.trf.xlu0
      %v960 = vpop.trf.xlu0
      %v961 = vpop.trf.xlu0
      %v962 = vpop.trf.xlu0
      %v963 = vpop.trf.xlu0
      %v964 = vpop.trf.xlu0
      %v965 = vpop.trf.xlu0
      %v966 = vpop.trf.xlu0
      %v967 = vpop.trf.xlu0
      %v968 = vpop.trf.xlu0
      %v969 = vpop.trf.xlu0
      %v970 = vpop.trf.xlu0
      %v971 = vpop.trf.xlu0
      %v972 = vpop.trf.xlu0
      %973 = vxpose.xlu0.b32.start [1/16] %v767, 128
      %974 = vxpose.xlu0.b32.cont [2/16] 0.0, 128
      %975 = vxpose.xlu0.b32.cont [3/16] 0.0, 128
      %976 = vxpose.xlu0.b32.cont [4/16] 0.0, 128
      %977 = vxpose.xlu0.b32.cont [5/16] 0.0, 128
      %978 = vxpose.xlu0.b32.cont [6/16] 0.0, 128
      %979 = vxpose.xlu0.b32.cont [7/16] 0.0, 128
      %980 = vxpose.xlu0.b32.cont [8/16] 0.0, 128
      %981 = vxpose.xlu0.b32.cont [9/16] 0.0, 128
      %982 = vxpose.xlu0.b32.cont [10/16] 0.0, 128
      %983 = vxpose.xlu0.b32.cont [11/16] 0.0, 128
      %984 = vxpose.xlu0.b32.cont [12/16] 0.0, 128
      %985 = vxpose.xlu0.b32.cont [13/16] 0.0, 128
      %986 = vxpose.xlu0.b32.cont [14/16] 0.0, 128
      %987 = vxpose.xlu0.b32.cont [15/16] 0.0, 128
      %988 = vxpose.xlu0.b32.end [16/16] 0.0, 128
      %v989 = vpop.trf.xlu0
      %v990 = vpop.trf.xlu0
      %v991 = vpop.trf.xlu0
      %v992 = vpop.trf.xlu0
      %v993 = vpop.trf.xlu0
      %v994 = vpop.trf.xlu0
      %v995 = vpop.trf.xlu0
      %v996 = vpop.trf.xlu0
      %v997 = vpop.trf.xlu0
      %v998 = vpop.trf.xlu0
      %v999 = vpop.trf.xlu0
      %v1000 = vpop.trf.xlu0
      %v1001 = vpop.trf.xlu0
      %v1002 = vpop.trf.xlu0
      %v1003 = vpop.trf.xlu0
      %v1004 = vpop.trf.xlu0
      %1005 = vxpose.xlu0.b32.start [1/16] %v769, 128
      %1006 = vxpose.xlu0.b32.cont [2/16] 0.0, 128
      %1007 = vxpose.xlu0.b32.cont [3/16] 0.0, 128
      %1008 = vxpose.xlu0.b32.cont [4/16] 0.0, 128
      %1009 = vxpose.xlu0.b32.cont [5/16] 0.0, 128
      %1010 = vxpose.xlu0.b32.cont [6/16] 0.0, 128
      %1011 = vxpose.xlu0.b32.cont [7/16] 0.0, 128
      %1012 = vxpose.xlu0.b32.cont [8/16] 0.0, 128
      %1013 = vxpose.xlu0.b32.cont [9/16] 0.0, 128
      %1014 = vxpose.xlu0.b32.cont [10/16] 0.0, 128
      %1015 = vxpose.xlu0.b32.cont [11/16] 0.0, 128
      %1016 = vxpose.xlu0.b32.cont [12/16] 0.0, 128
      %1017 = vxpose.xlu0.b32.cont [13/16] 0.0, 128
      %1018 = vxpose.xlu0.b32.cont [14/16] 0.0, 128
      %1019 = vxpose.xlu0.b32.cont [15/16] 0.0, 128
      %1020 = vxpose.xlu0.b32.end [16/16] 0.0, 128
      %v1021 = vpop.trf.xlu0
      %v1022 = vpop.trf.xlu0
      %v1023 = vpop.trf.xlu0
      %v1024 = vpop.trf.xlu0
      %v1025 = vpop.trf.xlu0
      %v1026 = vpop.trf.xlu0
      %v1027 = vpop.trf.xlu0
      %v1028 = vpop.trf.xlu0
      %v1029 = vpop.trf.xlu0
      %v1030 = vpop.trf.xlu0
      %v1031 = vpop.trf.xlu0
      %v1032 = vpop.trf.xlu0
      %v1033 = vpop.trf.xlu0
      %v1034 = vpop.trf.xlu0
      %v1035 = vpop.trf.xlu0
      %v1036 = vpop.trf.xlu0
      %1037 = vxpose.xlu0.b32.start [1/16] %v771, 128
      %1038 = vxpose.xlu0.b32.cont [2/16] 0.0, 128
      %1039 = vxpose.xlu0.b32.cont [3/16] 0.0, 128
      %1040 = vxpose.xlu0.b32.cont [4/16] 0.0, 128
      %1041 = vxpose.xlu0.b32.cont [5/16] 0.0, 128
      %1042 = vxpose.xlu0.b32.cont [6/16] 0.0, 128
      %1043 = vxpose.xlu0.b32.cont [7/16] 0.0, 128
      %1044 = vxpose.xlu0.b32.cont [8/16] 0.0, 128
      %1045 = vxpose.xlu0.b32.cont [9/16] 0.0, 128
      %1046 = vxpose.xlu0.b32.cont [10/16] 0.0, 128
      %1047 = vxpose.xlu0.b32.cont [11/16] 0.0, 128
      %1048 = vxpose.xlu0.b32.cont [12/16] 0.0, 128
      %1049 = vxpose.xlu0.b32.cont [13/16] 0.0, 128
      %1050 = vxpose.xlu0.b32.cont [14/16] 0.0, 128
      %1051 = vxpose.xlu0.b32.cont [15/16] 0.0, 128
      %1052 = vxpose.xlu0.b32.end [16/16] 0.0, 128
      %v1053 = vpop.trf.xlu0
      %v1054 = vpop.trf.xlu0
      %v1055 = vpop.trf.xlu0
      %v1056 = vpop.trf.xlu0
      %v1057 = vpop.trf.xlu0
      %v1058 = vpop.trf.xlu0
      %v1059 = vpop.trf.xlu0
      %v1060 = vpop.trf.xlu0
      %v1061 = vpop.trf.xlu0
      %v1062 = vpop.trf.xlu0
      %v1063 = vpop.trf.xlu0
      %v1064 = vpop.trf.xlu0
      %v1065 = vpop.trf.xlu0
      %v1066 = vpop.trf.xlu0
      %v1067 = vpop.trf.xlu0
      %v1068 = vpop.trf.xlu0
      %v1069 = vpack.c.bf16 %v830, %v829
      %v1070 = vpack.c.bf16 %v832, %v831
      %v1071 = vpack.c.bf16 %v834, %v833
      %v1072 = vpack.c.bf16 %v836, %v835
      %v1073 = vpack.c.bf16 %v838, %v837
      %v1074 = vpack.c.bf16 %v840, %v839
      %v1075 = vpack.c.bf16 %v842, %v841
      %v1076 = vpack.c.bf16 %v844, %v843
      %v1077 = vpack.c.bf16 %v862, %v861
      %v1078 = vpack.c.bf16 %v864, %v863
      %v1079 = vpack.c.bf16 %v866, %v865
      %v1080 = vpack.c.bf16 %v868, %v867
      %v1081 = vpack.c.bf16 %v870, %v869
      %v1082 = vpack.c.bf16 %v872, %v871
      %v1083 = vpack.c.bf16 %v874, %v873
      %v1084 = vpack.c.bf16 %v876, %v875
      %v1085 = vpack.c.bf16 %v894, %v893
      %v1086 = vpack.c.bf16 %v896, %v895
      %v1087 = vpack.c.bf16 %v898, %v897
      %v1088 = vpack.c.bf16 %v900, %v899
      %v1089 = vpack.c.bf16 %v902, %v901
      %v1090 = vpack.c.bf16 %v904, %v903
      %v1091 = vpack.c.bf16 %v906, %v905
      %v1092 = vpack.c.bf16 %v908, %v907
      %v1093 = vpack.c.bf16 %v926, %v925
      %v1094 = vpack.c.bf16 %v928, %v927
      %v1095 = vpack.c.bf16 %v930, %v929
      %v1096 = vpack.c.bf16 %v932, %v931
      %v1097 = vpack.c.bf16 %v934, %v933
      %v1098 = vpack.c.bf16 %v936, %v935
      %v1099 = vpack.c.bf16 %v938, %v937
      %v1100 = vpack.c.bf16 %v940, %v939
      %v1101 = vpack.c.bf16 %v958, %v957
      %v1102 = vpack.c.bf16 %v960, %v959
      %v1103 = vpack.c.bf16 %v962, %v961
      %v1104 = vpack.c.bf16 %v964, %v963
      %v1105 = vpack.c.bf16 %v966, %v965
      %v1106 = vpack.c.bf16 %v968, %v967
      %v1107 = vpack.c.bf16 %v970, %v969
      %v1108 = vpack.c.bf16 %v972, %v971
      %v1109 = vpack.c.bf16 %v990, %v989
      %v1110 = vpack.c.bf16 %v992, %v991
      %v1111 = vpack.c.bf16 %v994, %v993
      %v1112 = vpack.c.bf16 %v996, %v995
      %v1113 = vpack.c.bf16 %v998, %v997
      %v1114 = vpack.c.bf16 %v1000, %v999
      %v1115 = vpack.c.bf16 %v1002, %v1001
      %v1116 = vpack.c.bf16 %v1004, %v1003
      %v1117 = vpack.c.bf16 %v1022, %v1021
      %v1118 = vpack.c.bf16 %v1024, %v1023
      %v1119 = vpack.c.bf16 %v1026, %v1025
      %v1120 = vpack.c.bf16 %v1028, %v1027
      %v1121 = vpack.c.bf16 %v1030, %v1029
      %v1122 = vpack.c.bf16 %v1032, %v1031
      %v1123 = vpack.c.bf16 %v1034, %v1033
      %v1124 = vpack.c.bf16 %v1036, %v1035
      %v1125 = vpack.c.bf16 %v1054, %v1053
      %v1126 = vpack.c.bf16 %v1056, %v1055
      %v1127 = vpack.c.bf16 %v1058, %v1057
      %v1128 = vpack.c.bf16 %v1060, %v1059
      %v1129 = vpack.c.bf16 %v1062, %v1061
      %v1130 = vpack.c.bf16 %v1064, %v1063
      %v1131 = vpack.c.bf16 %v1066, %v1065
      %v1132 = vpack.c.bf16 %v1068, %v1067
      %v1133 = vpack.c.bf16 %v775, %v775
      %v1134 = vpack.c.bf16 %v777, %v777
      %v1135 = vpack.c.bf16 %v779, %v779
      %v1136 = vpack.c.bf16 %v781, %v781
      %v1137 = vpack.c.bf16 %v785, %v785
      %v1138 = vpack.c.bf16 %v787, %v787
      %v1139 = vpack.c.bf16 %v789, %v789
      %v1140 = vpack.c.bf16 %v791, %v791
      %v1141 = vpack.c.bf16 %v795, %v795
      %v1142 = vpack.c.bf16 %v797, %v797
      %v1143 = vpack.c.bf16 %v799, %v799
      %v1144 = vpack.c.bf16 %v801, %v801
      %v1145 = vpack.c.bf16 %v805, %v805
      %v1146 = vpack.c.bf16 %v807, %v807
      %v1147 = vpack.c.bf16 %v809, %v809
      %v1148 = vpack.c.bf16 %v811, %v811
      %vm1149 = vcmask 64512
      %v1151 = vsel %vm1149, %v1069, 0
      %v1154 = vsel %vm1149, %v1070, 0
      %v1157 = vsel %vm1149, %v1071, 0
      %v1160 = vsel %vm1149, %v1072, 0
      %v1163 = vsel %vm1149, %v1073, 0
      %v1166 = vsel %vm1149, %v1074, 0
      %v1169 = vsel %vm1149, %v1075, 0
      %v1172 = vsel %vm1149, %v1076, 0
      %v1175 = vsel %vm1149, %v1077, 0
      %v1178 = vsel %vm1149, %v1078, 0
      %v1181 = vsel %vm1149, %v1079, 0
      %v1184 = vsel %vm1149, %v1080, 0
      %v1187 = vsel %vm1149, %v1081, 0
      %v1190 = vsel %vm1149, %v1082, 0
      %v1193 = vsel %vm1149, %v1083, 0
      %v1196 = vsel %vm1149, %v1084, 0
      %vm1198 = vcmask 1043456
      %v1200 = vsel %vm1198, %v1133, 0
      %v1203 = vsel %vm1198, %v1134, 0
      %1205 = vmatprep.subr.bf16.mxu0 0
      %1206 = vmatpush1.bf16.msra.mxu0 0
      %1207 = vmatprep.subr.bf16.mxu0 0
      %1208 = vmatpush1.bf16.msra.mxu0 0
      %1209 = vmatprep.subr.bf16.mxu0 0
      %1210 = vmatpush1.bf16.msra.mxu0 0
      %1211 = vmatprep.subr.bf16.mxu0 0
      %1212 = vmatpush1.bf16.msra.mxu0 0
      %1213 = vmatprep.subr.bf16.mxu0 0
      %1214 = vmatpush1.bf16.msra.mxu0 0
      %1215 = vmatprep.subr.bf16.mxu0 0
      %1216 = vmatpush1.bf16.msra.mxu0 0
      %1217 = vmatprep.subr.bf16.mxu0 0
      %1218 = vmatpush1.bf16.msra.mxu0 0
      %1219 = vmatprep.subr.bf16.mxu0 %v1203
      %1220 = vmatpush1.bf16.msra.mxu0 %v1200
      %1221 = vmatprep.subr.bf16.mxu0 0
      %1222 = vmatpush2.bf16.msra.mxu0 0
      %1223 = vmatprep.subr.bf16.mxu0 0
      %1224 = vmatpush2.bf16.msra.mxu0 0
      %1225 = vmatprep.subr.bf16.mxu0 0
      %1226 = vmatpush2.bf16.msra.mxu0 0
      %1227 = vmatprep.subr.bf16.mxu0 0
      %1228 = vmatpush2.bf16.msra.mxu0 0
      %1229 = vmatprep.subr.bf16.mxu0 0
      %1230 = vmatpush2.bf16.msra.mxu0 0
      %1231 = vmatprep.subr.bf16.mxu0 0
      %1232 = vmatpush2.bf16.msra.mxu0 0
      %1233 = vmatprep.subr.bf16.mxu0 0
      %1234 = vmatpush2.bf16.msra.mxu0 0
      %1235 = vmatprep.subr.bf16.mxu0 0
      %1236 = vmatpush2.bf16.msra.mxu0 0
      %1237 = vmatprep.mubr.bf16.mxu0 0
      %1238 = vmatmul.mubr.bf16.gmra.mxu0 %v1151
      %v1239 = vpop.f32.mrf.mxu0
      %v1240 = vadd.f32 0.0, %v1239
      %v1241 = vpop.f32.mrf.mxu0
      %v1242 = vadd.f32 0.0, %v1241
      %v1243 = vpop.f32.mrf.mxu0
      %v1244 = vadd.f32 0.0, %v1243
      %v1245 = vpop.f32.mrf.mxu0
      %v1246 = vadd.f32 0.0, %v1245
      %1247 = vmatprep.mubr.bf16.mxu0 0
      %1248 = vmatmul.mubr.bf16.gmra.mxu0 %v1154
      %v1249 = vpop.f32.mrf.mxu0
      %v1250 = vadd.f32 0.0, %v1249
      %v1251 = vpop.f32.mrf.mxu0
      %v1252 = vadd.f32 0.0, %v1251
      %v1253 = vpop.f32.mrf.mxu0
      %v1254 = vadd.f32 0.0, %v1253
      %v1255 = vpop.f32.mrf.mxu0
      %v1256 = vadd.f32 0.0, %v1255
      %1257 = vmatprep.mubr.bf16.mxu0 0
      %1258 = vmatmul.mubr.bf16.gmra.mxu0 %v1157
      %v1259 = vpop.f32.mrf.mxu0
      %v1260 = vadd.f32 0.0, %v1259
      %v1261 = vpop.f32.mrf.mxu0
      %v1262 = vadd.f32 0.0, %v1261
      %v1263 = vpop.f32.mrf.mxu0
      %v1264 = vadd.f32 0.0, %v1263
      %v1265 = vpop.f32.mrf.mxu0
      %v1266 = vadd.f32 0.0, %v1265
      %1267 = vmatprep.mubr.bf16.mxu0 0
      %1268 = vmatmul.mubr.bf16.gmra.mxu0 %v1160
      %v1269 = vpop.f32.mrf.mxu0
      %v1270 = vadd.f32 0.0, %v1269
      %v1271 = vpop.f32.mrf.mxu0
      %v1272 = vadd.f32 0.0, %v1271
      %v1273 = vpop.f32.mrf.mxu0
      %v1274 = vadd.f32 0.0, %v1273
      %v1275 = vpop.f32.mrf.mxu0
      %v1276 = vadd.f32 0.0, %v1275
      %1277 = vmatprep.mubr.bf16.mxu0 0
      %1278 = vmatmul.mubr.bf16.gmra.mxu0 %v1163
      %v1279 = vpop.f32.mrf.mxu0
      %v1280 = vadd.f32 0.0, %v1279
      %v1281 = vpop.f32.mrf.mxu0
      %v1282 = vadd.f32 0.0, %v1281
      %v1283 = vpop.f32.mrf.mxu0
      %v1284 = vadd.f32 0.0, %v1283
      %v1285 = vpop.f32.mrf.mxu0
      %v1286 = vadd.f32 0.0, %v1285
      %1287 = vmatprep.mubr.bf16.mxu0 0
      %1288 = vmatmul.mubr.bf16.gmra.mxu0 %v1166
      %v1289 = vpop.f32.mrf.mxu0
      %v1290 = vadd.f32 0.0, %v1289
      %v1291 = vpop.f32.mrf.mxu0
      %v1292 = vadd.f32 0.0, %v1291
      %v1293 = vpop.f32.mrf.mxu0
      %v1294 = vadd.f32 0.0, %v1293
      %v1295 = vpop.f32.mrf.mxu0
      %v1296 = vadd.f32 0.0, %v1295
      %1297 = vmatprep.mubr.bf16.mxu0 0
      %1298 = vmatmul.mubr.bf16.gmra.mxu0 %v1169
      %v1299 = vpop.f32.mrf.mxu0
      %v1300 = vadd.f32 0.0, %v1299
      %v1301 = vpop.f32.mrf.mxu0
      %v1302 = vadd.f32 0.0, %v1301
      %v1303 = vpop.f32.mrf.mxu0
      %v1304 = vadd.f32 0.0, %v1303
      %v1305 = vpop.f32.mrf.mxu0
      %v1306 = vadd.f32 0.0, %v1305
      %1307 = vmatprep.mubr.bf16.mxu0 0
      %1308 = vmatmul.mubr.bf16.gmra.mxu0 %v1172
      %v1309 = vpop.f32.mrf.mxu0
      %v1310 = vadd.f32 0.0, %v1309
      %v1311 = vpop.f32.mrf.mxu0
      %v1312 = vadd.f32 0.0, %v1311
      %v1313 = vpop.f32.mrf.mxu0
      %v1314 = vadd.f32 0.0, %v1313
      %v1315 = vpop.f32.mrf.mxu0
      %v1316 = vadd.f32 0.0, %v1315
      %1317 = vmatprep.mubr.bf16.mxu0 0
      %1318 = vmatmul.mubr.bf16.gmra.mxu0 %v1175
      %v1319 = vpop.f32.mrf.mxu0
      %v1320 = vadd.f32 0.0, %v1319
      %v1321 = vpop.f32.mrf.mxu0
      %v1322 = vadd.f32 0.0, %v1321
      %v1323 = vpop.f32.mrf.mxu0
      %v1324 = vadd.f32 0.0, %v1323
      %v1325 = vpop.f32.mrf.mxu0
      %v1326 = vadd.f32 0.0, %v1325
      %1327 = vmatprep.mubr.bf16.mxu0 0
      %1328 = vmatmul.mubr.bf16.gmra.mxu0 %v1178
      %v1329 = vpop.f32.mrf.mxu0
      %v1330 = vadd.f32 0.0, %v1329
      %v1331 = vpop.f32.mrf.mxu0
      %v1332 = vadd.f32 0.0, %v1331
      %v1333 = vpop.f32.mrf.mxu0
      %v1334 = vadd.f32 0.0, %v1333
      %v1335 = vpop.f32.mrf.mxu0
      %v1336 = vadd.f32 0.0, %v1335
      %1337 = vmatprep.mubr.bf16.mxu0 0
      %1338 = vmatmul.mubr.bf16.gmra.mxu0 %v1181
      %v1339 = vpop.f32.mrf.mxu0
      %v1340 = vadd.f32 0.0, %v1339
      %v1341 = vpop.f32.mrf.mxu0
      %v1342 = vadd.f32 0.0, %v1341
      %v1343 = vpop.f32.mrf.mxu0
      %v1344 = vadd.f32 0.0, %v1343
      %v1345 = vpop.f32.mrf.mxu0
      %v1346 = vadd.f32 0.0, %v1345
      %1347 = vmatprep.mubr.bf16.mxu0 0
      %1348 = vmatmul.mubr.bf16.gmra.mxu0 %v1184
      %v1349 = vpop.f32.mrf.mxu0
      %v1350 = vadd.f32 0.0, %v1349
      %v1351 = vpop.f32.mrf.mxu0
      %v1352 = vadd.f32 0.0, %v1351
      %v1353 = vpop.f32.mrf.mxu0
      %v1354 = vadd.f32 0.0, %v1353
      %v1355 = vpop.f32.mrf.mxu0
      %v1356 = vadd.f32 0.0, %v1355
      %1357 = vmatprep.mubr.bf16.mxu0 0
      %1358 = vmatmul.mubr.bf16.gmra.mxu0 %v1187
      %v1359 = vpop.f32.mrf.mxu0
      %v1360 = vadd.f32 0.0, %v1359
      %v1361 = vpop.f32.mrf.mxu0
      %v1362 = vadd.f32 0.0, %v1361
      %v1363 = vpop.f32.mrf.mxu0
      %v1364 = vadd.f32 0.0, %v1363
      %v1365 = vpop.f32.mrf.mxu0
      %v1366 = vadd.f32 0.0, %v1365
      %1367 = vmatprep.mubr.bf16.mxu0 0
      %1368 = vmatmul.mubr.bf16.gmra.mxu0 %v1190
      %v1369 = vpop.f32.mrf.mxu0
      %v1370 = vadd.f32 0.0, %v1369
      %v1371 = vpop.f32.mrf.mxu0
      %v1372 = vadd.f32 0.0, %v1371
      %v1373 = vpop.f32.mrf.mxu0
      %v1374 = vadd.f32 0.0, %v1373
      %v1375 = vpop.f32.mrf.mxu0
      %v1376 = vadd.f32 0.0, %v1375
      %1377 = vmatprep.mubr.bf16.mxu0 0
      %1378 = vmatmul.mubr.bf16.gmra.mxu0 %v1193
      %v1379 = vpop.f32.mrf.mxu0
      %v1380 = vadd.f32 0.0, %v1379
      %v1381 = vpop.f32.mrf.mxu0
      %v1382 = vadd.f32 0.0, %v1381
      %v1383 = vpop.f32.mrf.mxu0
      %v1384 = vadd.f32 0.0, %v1383
      %v1385 = vpop.f32.mrf.mxu0
      %v1386 = vadd.f32 0.0, %v1385
      %1387 = vmatprep.mubr.bf16.mxu0 0
      %1388 = vmatmul.mubr.bf16.gmra.mxu0 %v1196
      %v1389 = vpop.f32.mrf.mxu0
      %v1390 = vadd.f32 0.0, %v1389
      %v1391 = vpop.f32.mrf.mxu0
      %v1392 = vadd.f32 0.0, %v1391
      %v1393 = vpop.f32.mrf.mxu0
      %v1394 = vadd.f32 0.0, %v1393
      %v1395 = vpop.f32.mrf.mxu0
      %v1396 = vadd.f32 0.0, %v1395
      %1397 = vdwg.mxu0
      %v1399 = vsel %vm1149, %v1085, 0
      %v1402 = vsel %vm1149, %v1086, 0
      %v1405 = vsel %vm1149, %v1087, 0
      %v1408 = vsel %vm1149, %v1088, 0
      %v1411 = vsel %vm1149, %v1089, 0
      %v1414 = vsel %vm1149, %v1090, 0
      %v1417 = vsel %vm1149, %v1091, 0
      %v1420 = vsel %vm1149, %v1092, 0
      %v1423 = vsel %vm1149, %v1093, 0
      %v1426 = vsel %vm1149, %v1094, 0
      %v1429 = vsel %vm1149, %v1095, 0
      %v1432 = vsel %vm1149, %v1096, 0
      %v1435 = vsel %vm1149, %v1097, 0
      %v1438 = vsel %vm1149, %v1098, 0
      %v1441 = vsel %vm1149, %v1099, 0
      %v1444 = vsel %vm1149, %v1100, 0
      %v1447 = vsel %vm1198, %v1135, 0
      %v1450 = vsel %vm1198, %v1136, 0
      %1452 = vmatprep.subr.bf16.mxu0 0
      %1453 = vmatpush1.bf16.msra.mxu0 0
      %1454 = vmatprep.subr.bf16.mxu0 0
      %1455 = vmatpush1.bf16.msra.mxu0 0
      %1456 = vmatprep.subr.bf16.mxu0 0
      %1457 = vmatpush1.bf16.msra.mxu0 0
      %1458 = vmatprep.subr.bf16.mxu0 0
      %1459 = vmatpush1.bf16.msra.mxu0 0
      %1460 = vmatprep.subr.bf16.mxu0 0
      %1461 = vmatpush1.bf16.msra.mxu0 0
      %1462 = vmatprep.subr.bf16.mxu0 0
      %1463 = vmatpush1.bf16.msra.mxu0 0
      %1464 = vmatprep.subr.bf16.mxu0 0
      %1465 = vmatpush1.bf16.msra.mxu0 0
      %1466 = vmatprep.subr.bf16.mxu0 %v1450
      %1467 = vmatpush1.bf16.msra.mxu0 %v1447
      %1468 = vmatprep.subr.bf16.mxu0 0
      %1469 = vmatpush2.bf16.msra.mxu0 0
      %1470 = vmatprep.subr.bf16.mxu0 0
      %1471 = vmatpush2.bf16.msra.mxu0 0
      %1472 = vmatprep.subr.bf16.mxu0 0
      %1473 = vmatpush2.bf16.msra.mxu0 0
      %1474 = vmatprep.subr.bf16.mxu0 0
      %1475 = vmatpush2.bf16.msra.mxu0 0
      %1476 = vmatprep.subr.bf16.mxu0 0
      %1477 = vmatpush2.bf16.msra.mxu0 0
      %1478 = vmatprep.subr.bf16.mxu0 0
      %1479 = vmatpush2.bf16.msra.mxu0 0
      %1480 = vmatprep.subr.bf16.mxu0 0
      %1481 = vmatpush2.bf16.msra.mxu0 0
      %1482 = vmatprep.subr.bf16.mxu0 0
      %1483 = vmatpush2.bf16.msra.mxu0 0
      %1484 = vmatprep.mubr.bf16.mxu0 0
      %1485 = vmatmul.mubr.bf16.gmra.mxu0 %v1399
      %v1486 = vpop.f32.mrf.mxu0
      %v1487 = vadd.f32 0.0, %v1486
      %v1488 = vpop.f32.mrf.mxu0
      %v1489 = vadd.f32 0.0, %v1488
      %v1490 = vpop.f32.mrf.mxu0
      %v1491 = vadd.f32 0.0, %v1490
      %v1492 = vpop.f32.mrf.mxu0
      %v1493 = vadd.f32 0.0, %v1492
      %1494 = vmatprep.mubr.bf16.mxu0 0
      %1495 = vmatmul.mubr.bf16.gmra.mxu0 %v1402
      %v1496 = vpop.f32.mrf.mxu0
      %v1497 = vadd.f32 0.0, %v1496
      %v1498 = vpop.f32.mrf.mxu0
      %v1499 = vadd.f32 0.0, %v1498
      %v1500 = vpop.f32.mrf.mxu0
      %v1501 = vadd.f32 0.0, %v1500
      %v1502 = vpop.f32.mrf.mxu0
      %v1503 = vadd.f32 0.0, %v1502
      %1504 = vmatprep.mubr.bf16.mxu0 0
      %1505 = vmatmul.mubr.bf16.gmra.mxu0 %v1405
      %v1506 = vpop.f32.mrf.mxu0
      %v1507 = vadd.f32 0.0, %v1506
      %v1508 = vpop.f32.mrf.mxu0
      %v1509 = vadd.f32 0.0, %v1508
      %v1510 = vpop.f32.mrf.mxu0
      %v1511 = vadd.f32 0.0, %v1510
      %v1512 = vpop.f32.mrf.mxu0
      %v1513 = vadd.f32 0.0, %v1512
      %1514 = vmatprep.mubr.bf16.mxu0 0
      %1515 = vmatmul.mubr.bf16.gmra.mxu0 %v1408
      %v1516 = vpop.f32.mrf.mxu0
      %v1517 = vadd.f32 0.0, %v1516
      %v1518 = vpop.f32.mrf.mxu0
      %v1519 = vadd.f32 0.0, %v1518
      %v1520 = vpop.f32.mrf.mxu0
      %v1521 = vadd.f32 0.0, %v1520
      %v1522 = vpop.f32.mrf.mxu0
      %v1523 = vadd.f32 0.0, %v1522
      %1524 = vmatprep.mubr.bf16.mxu0 0
      %1525 = vmatmul.mubr.bf16.gmra.mxu0 %v1411
      %v1526 = vpop.f32.mrf.mxu0
      %v1527 = vadd.f32 0.0, %v1526
      %v1528 = vpop.f32.mrf.mxu0
      %v1529 = vadd.f32 0.0, %v1528
      %v1530 = vpop.f32.mrf.mxu0
      %v1531 = vadd.f32 0.0, %v1530
      %v1532 = vpop.f32.mrf.mxu0
      %v1533 = vadd.f32 0.0, %v1532
      %1534 = vmatprep.mubr.bf16.mxu0 0
      %1535 = vmatmul.mubr.bf16.gmra.mxu0 %v1414
      %v1536 = vpop.f32.mrf.mxu0
      %v1537 = vadd.f32 0.0, %v1536
      %v1538 = vpop.f32.mrf.mxu0
      %v1539 = vadd.f32 0.0, %v1538
      %v1540 = vpop.f32.mrf.mxu0
      %v1541 = vadd.f32 0.0, %v1540
      %v1542 = vpop.f32.mrf.mxu0
      %v1543 = vadd.f32 0.0, %v1542
      %1544 = vmatprep.mubr.bf16.mxu0 0
      %1545 = vmatmul.mubr.bf16.gmra.mxu0 %v1417
      %v1546 = vpop.f32.mrf.mxu0
      %v1547 = vadd.f32 0.0, %v1546
      %v1548 = vpop.f32.mrf.mxu0
      %v1549 = vadd.f32 0.0, %v1548
      %v1550 = vpop.f32.mrf.mxu0
      %v1551 = vadd.f32 0.0, %v1550
      %v1552 = vpop.f32.mrf.mxu0
      %v1553 = vadd.f32 0.0, %v1552
      %1554 = vmatprep.mubr.bf16.mxu0 0
      %1555 = vmatmul.mubr.bf16.gmra.mxu0 %v1420
      %v1556 = vpop.f32.mrf.mxu0
      %v1557 = vadd.f32 0.0, %v1556
      %v1558 = vpop.f32.mrf.mxu0
      %v1559 = vadd.f32 0.0, %v1558
      %v1560 = vpop.f32.mrf.mxu0
      %v1561 = vadd.f32 0.0, %v1560
      %v1562 = vpop.f32.mrf.mxu0
      %v1563 = vadd.f32 0.0, %v1562
      %1564 = vmatprep.mubr.bf16.mxu0 0
      %1565 = vmatmul.mubr.bf16.gmra.mxu0 %v1423
      %v1566 = vpop.f32.mrf.mxu0
      %v1567 = vadd.f32 0.0, %v1566
      %v1568 = vpop.f32.mrf.mxu0
      %v1569 = vadd.f32 0.0, %v1568
      %v1570 = vpop.f32.mrf.mxu0
      %v1571 = vadd.f32 0.0, %v1570
      %v1572 = vpop.f32.mrf.mxu0
      %v1573 = vadd.f32 0.0, %v1572
      %1574 = vmatprep.mubr.bf16.mxu0 0
      %1575 = vmatmul.mubr.bf16.gmra.mxu0 %v1426
      %v1576 = vpop.f32.mrf.mxu0
      %v1577 = vadd.f32 0.0, %v1576
      %v1578 = vpop.f32.mrf.mxu0
      %v1579 = vadd.f32 0.0, %v1578
      %v1580 = vpop.f32.mrf.mxu0
      %v1581 = vadd.f32 0.0, %v1580
      %v1582 = vpop.f32.mrf.mxu0
      %v1583 = vadd.f32 0.0, %v1582
      %1584 = vmatprep.mubr.bf16.mxu0 0
      %1585 = vmatmul.mubr.bf16.gmra.mxu0 %v1429
      %v1586 = vpop.f32.mrf.mxu0
      %v1587 = vadd.f32 0.0, %v1586
      %v1588 = vpop.f32.mrf.mxu0
      %v1589 = vadd.f32 0.0, %v1588
      %v1590 = vpop.f32.mrf.mxu0
      %v1591 = vadd.f32 0.0, %v1590
      %v1592 = vpop.f32.mrf.mxu0
      %v1593 = vadd.f32 0.0, %v1592
      %1594 = vmatprep.mubr.bf16.mxu0 0
      %1595 = vmatmul.mubr.bf16.gmra.mxu0 %v1432
      %v1596 = vpop.f32.mrf.mxu0
      %v1597 = vadd.f32 0.0, %v1596
      %v1598 = vpop.f32.mrf.mxu0
      %v1599 = vadd.f32 0.0, %v1598
      %v1600 = vpop.f32.mrf.mxu0
      %v1601 = vadd.f32 0.0, %v1600
      %v1602 = vpop.f32.mrf.mxu0
      %v1603 = vadd.f32 0.0, %v1602
      %1604 = vmatprep.mubr.bf16.mxu0 0
      %1605 = vmatmul.mubr.bf16.gmra.mxu0 %v1435
      %v1606 = vpop.f32.mrf.mxu0
      %v1607 = vadd.f32 0.0, %v1606
      %v1608 = vpop.f32.mrf.mxu0
      %v1609 = vadd.f32 0.0, %v1608
      %v1610 = vpop.f32.mrf.mxu0
      %v1611 = vadd.f32 0.0, %v1610
      %v1612 = vpop.f32.mrf.mxu0
      %v1613 = vadd.f32 0.0, %v1612
      %1614 = vmatprep.mubr.bf16.mxu0 0
      %1615 = vmatmul.mubr.bf16.gmra.mxu0 %v1438
      %v1616 = vpop.f32.mrf.mxu0
      %v1617 = vadd.f32 0.0, %v1616
      %v1618 = vpop.f32.mrf.mxu0
      %v1619 = vadd.f32 0.0, %v1618
      %v1620 = vpop.f32.mrf.mxu0
      %v1621 = vadd.f32 0.0, %v1620
      %v1622 = vpop.f32.mrf.mxu0
      %v1623 = vadd.f32 0.0, %v1622
      %1624 = vmatprep.mubr.bf16.mxu0 0
      %1625 = vmatmul.mubr.bf16.gmra.mxu0 %v1441
      %v1626 = vpop.f32.mrf.mxu0
      %v1627 = vadd.f32 0.0, %v1626
      %v1628 = vpop.f32.mrf.mxu0
      %v1629 = vadd.f32 0.0, %v1628
      %v1630 = vpop.f32.mrf.mxu0
      %v1631 = vadd.f32 0.0, %v1630
      %v1632 = vpop.f32.mrf.mxu0
      %v1633 = vadd.f32 0.0, %v1632
      %1634 = vmatprep.mubr.bf16.mxu0 0
      %1635 = vmatmul.mubr.bf16.gmra.mxu0 %v1444
      %v1636 = vpop.f32.mrf.mxu0
      %v1637 = vadd.f32 0.0, %v1636
      %v1638 = vpop.f32.mrf.mxu0
      %v1639 = vadd.f32 0.0, %v1638
      %v1640 = vpop.f32.mrf.mxu0
      %v1641 = vadd.f32 0.0, %v1640
      %v1642 = vpop.f32.mrf.mxu0
      %v1643 = vadd.f32 0.0, %v1642
      %1644 = vdwg.mxu0
      %v1646 = vsel %vm1149, %v1101, 0
      %v1649 = vsel %vm1149, %v1102, 0
      %v1652 = vsel %vm1149, %v1103, 0
      %v1655 = vsel %vm1149, %v1104, 0
      %v1658 = vsel %vm1149, %v1105, 0
      %v1661 = vsel %vm1149, %v1106, 0
      %v1664 = vsel %vm1149, %v1107, 0
      %v1667 = vsel %vm1149, %v1108, 0
      %v1670 = vsel %vm1149, %v1109, 0
      %v1673 = vsel %vm1149, %v1110, 0
      %v1676 = vsel %vm1149, %v1111, 0
      %v1679 = vsel %vm1149, %v1112, 0
      %v1682 = vsel %vm1149, %v1113, 0
      %v1685 = vsel %vm1149, %v1114, 0
      %v1688 = vsel %vm1149, %v1115, 0
      %v1691 = vsel %vm1149, %v1116, 0
      %v1694 = vsel %vm1198, %v1137, 0
      %v1697 = vsel %vm1198, %v1138, 0
      %1699 = vmatprep.subr.bf16.mxu0 0
      %1700 = vmatpush1.bf16.msra.mxu0 0
      %1701 = vmatprep.subr.bf16.mxu0 0
      %1702 = vmatpush1.bf16.msra.mxu0 0
      %1703 = vmatprep.subr.bf16.mxu0 0
      %1704 = vmatpush1.bf16.msra.mxu0 0
      %1705 = vmatprep.subr.bf16.mxu0 0
      %1706 = vmatpush1.bf16.msra.mxu0 0
      %1707 = vmatprep.subr.bf16.mxu0 0
      %1708 = vmatpush1.bf16.msra.mxu0 0
      %1709 = vmatprep.subr.bf16.mxu0 0
      %1710 = vmatpush1.bf16.msra.mxu0 0
      %1711 = vmatprep.subr.bf16.mxu0 0
      %1712 = vmatpush1.bf16.msra.mxu0 0
      %1713 = vmatprep.subr.bf16.mxu0 %v1697
      %1714 = vmatpush1.bf16.msra.mxu0 %v1694
      %1715 = vmatprep.subr.bf16.mxu0 0
      %1716 = vmatpush2.bf16.msra.mxu0 0
      %1717 = vmatprep.subr.bf16.mxu0 0
      %1718 = vmatpush2.bf16.msra.mxu0 0
      %1719 = vmatprep.subr.bf16.mxu0 0
      %1720 = vmatpush2.bf16.msra.mxu0 0
      %1721 = vmatprep.subr.bf16.mxu0 0
      %1722 = vmatpush2.bf16.msra.mxu0 0
      %1723 = vmatprep.subr.bf16.mxu0 0
      %1724 = vmatpush2.bf16.msra.mxu0 0
      %1725 = vmatprep.subr.bf16.mxu0 0
      %1726 = vmatpush2.bf16.msra.mxu0 0
      %1727 = vmatprep.subr.bf16.mxu0 0
      %1728 = vmatpush2.bf16.msra.mxu0 0
      %1729 = vmatprep.subr.bf16.mxu0 0
      %1730 = vmatpush2.bf16.msra.mxu0 0
      %1731 = vmatprep.mubr.bf16.mxu0 0
      %1732 = vmatmul.mubr.bf16.gmra.mxu0 %v1646
      %v1733 = vpop.f32.mrf.mxu0
      %v1734 = vadd.f32 0.0, %v1733
      %v1735 = vpop.f32.mrf.mxu0
      %v1736 = vadd.f32 0.0, %v1735
      %v1737 = vpop.f32.mrf.mxu0
      %v1738 = vadd.f32 0.0, %v1737
      %v1739 = vpop.f32.mrf.mxu0
      %v1740 = vadd.f32 0.0, %v1739
      %1741 = vmatprep.mubr.bf16.mxu0 0
      %1742 = vmatmul.mubr.bf16.gmra.mxu0 %v1649
      %v1743 = vpop.f32.mrf.mxu0
      %v1744 = vadd.f32 0.0, %v1743
      %v1745 = vpop.f32.mrf.mxu0
      %v1746 = vadd.f32 0.0, %v1745
      %v1747 = vpop.f32.mrf.mxu0
      %v1748 = vadd.f32 0.0, %v1747
      %v1749 = vpop.f32.mrf.mxu0
      %v1750 = vadd.f32 0.0, %v1749
      %1751 = vmatprep.mubr.bf16.mxu0 0
      %1752 = vmatmul.mubr.bf16.gmra.mxu0 %v1652
      %v1753 = vpop.f32.mrf.mxu0
      %v1754 = vadd.f32 0.0, %v1753
      %v1755 = vpop.f32.mrf.mxu0
      %v1756 = vadd.f32 0.0, %v1755
      %v1757 = vpop.f32.mrf.mxu0
      %v1758 = vadd.f32 0.0, %v1757
      %v1759 = vpop.f32.mrf.mxu0
      %v1760 = vadd.f32 0.0, %v1759
      %1761 = vmatprep.mubr.bf16.mxu0 0
      %1762 = vmatmul.mubr.bf16.gmra.mxu0 %v1655
      %v1763 = vpop.f32.mrf.mxu0
      %v1764 = vadd.f32 0.0, %v1763
      %v1765 = vpop.f32.mrf.mxu0
      %v1766 = vadd.f32 0.0, %v1765
      %v1767 = vpop.f32.mrf.mxu0
      %v1768 = vadd.f32 0.0, %v1767
      %v1769 = vpop.f32.mrf.mxu0
      %v1770 = vadd.f32 0.0, %v1769
      %1771 = vmatprep.mubr.bf16.mxu0 0
      %1772 = vmatmul.mubr.bf16.gmra.mxu0 %v1658
      %v1773 = vpop.f32.mrf.mxu0
      %v1774 = vadd.f32 0.0, %v1773
      %v1775 = vpop.f32.mrf.mxu0
      %v1776 = vadd.f32 0.0, %v1775
      %v1777 = vpop.f32.mrf.mxu0
      %v1778 = vadd.f32 0.0, %v1777
      %v1779 = vpop.f32.mrf.mxu0
      %v1780 = vadd.f32 0.0, %v1779
      %1781 = vmatprep.mubr.bf16.mxu0 0
      %1782 = vmatmul.mubr.bf16.gmra.mxu0 %v1661
      %v1783 = vpop.f32.mrf.mxu0
      %v1784 = vadd.f32 0.0, %v1783
      %v1785 = vpop.f32.mrf.mxu0
      %v1786 = vadd.f32 0.0, %v1785
      %v1787 = vpop.f32.mrf.mxu0
      %v1788 = vadd.f32 0.0, %v1787
      %v1789 = vpop.f32.mrf.mxu0
      %v1790 = vadd.f32 0.0, %v1789
      %1791 = vmatprep.mubr.bf16.mxu0 0
      %1792 = vmatmul.mubr.bf16.gmra.mxu0 %v1664
      %v1793 = vpop.f32.mrf.mxu0
      %v1794 = vadd.f32 0.0, %v1793
      %v1795 = vpop.f32.mrf.mxu0
      %v1796 = vadd.f32 0.0, %v1795
      %v1797 = vpop.f32.mrf.mxu0
      %v1798 = vadd.f32 0.0, %v1797
      %v1799 = vpop.f32.mrf.mxu0
      %v1800 = vadd.f32 0.0, %v1799
      %1801 = vmatprep.mubr.bf16.mxu0 0
      %1802 = vmatmul.mubr.bf16.gmra.mxu0 %v1667
      %v1803 = vpop.f32.mrf.mxu0
      %v1804 = vadd.f32 0.0, %v1803
      %v1805 = vpop.f32.mrf.mxu0
      %v1806 = vadd.f32 0.0, %v1805
      %v1807 = vpop.f32.mrf.mxu0
      %v1808 = vadd.f32 0.0, %v1807
      %v1809 = vpop.f32.mrf.mxu0
      %v1810 = vadd.f32 0.0, %v1809
      %1811 = vmatprep.mubr.bf16.mxu0 0
      %1812 = vmatmul.mubr.bf16.gmra.mxu0 %v1670
      %v1813 = vpop.f32.mrf.mxu0
      %v1814 = vadd.f32 0.0, %v1813
      %v1815 = vpop.f32.mrf.mxu0
      %v1816 = vadd.f32 0.0, %v1815
      %v1817 = vpop.f32.mrf.mxu0
      %v1818 = vadd.f32 0.0, %v1817
      %v1819 = vpop.f32.mrf.mxu0
      %v1820 = vadd.f32 0.0, %v1819
      %1821 = vmatprep.mubr.bf16.mxu0 0
      %1822 = vmatmul.mubr.bf16.gmra.mxu0 %v1673
      %v1823 = vpop.f32.mrf.mxu0
      %v1824 = vadd.f32 0.0, %v1823
      %v1825 = vpop.f32.mrf.mxu0
      %v1826 = vadd.f32 0.0, %v1825
      %v1827 = vpop.f32.mrf.mxu0
      %v1828 = vadd.f32 0.0, %v1827
      %v1829 = vpop.f32.mrf.mxu0
      %v1830 = vadd.f32 0.0, %v1829
      %1831 = vmatprep.mubr.bf16.mxu0 0
      %1832 = vmatmul.mubr.bf16.gmra.mxu0 %v1676
      %v1833 = vpop.f32.mrf.mxu0
      %v1834 = vadd.f32 0.0, %v1833
      %v1835 = vpop.f32.mrf.mxu0
      %v1836 = vadd.f32 0.0, %v1835
      %v1837 = vpop.f32.mrf.mxu0
      %v1838 = vadd.f32 0.0, %v1837
      %v1839 = vpop.f32.mrf.mxu0
      %v1840 = vadd.f32 0.0, %v1839
      %1841 = vmatprep.mubr.bf16.mxu0 0
      %1842 = vmatmul.mubr.bf16.gmra.mxu0 %v1679
      %v1843 = vpop.f32.mrf.mxu0
      %v1844 = vadd.f32 0.0, %v1843
      %v1845 = vpop.f32.mrf.mxu0
      %v1846 = vadd.f32 0.0, %v1845
      %v1847 = vpop.f32.mrf.mxu0
      %v1848 = vadd.f32 0.0, %v1847
      %v1849 = vpop.f32.mrf.mxu0
      %v1850 = vadd.f32 0.0, %v1849
      %1851 = vmatprep.mubr.bf16.mxu0 0
      %1852 = vmatmul.mubr.bf16.gmra.mxu0 %v1682
      %v1853 = vpop.f32.mrf.mxu0
      %v1854 = vadd.f32 0.0, %v1853
      %v1855 = vpop.f32.mrf.mxu0
      %v1856 = vadd.f32 0.0, %v1855
      %v1857 = vpop.f32.mrf.mxu0
      %v1858 = vadd.f32 0.0, %v1857
      %v1859 = vpop.f32.mrf.mxu0
      %v1860 = vadd.f32 0.0, %v1859
      %1861 = vmatprep.mubr.bf16.mxu0 0
      %1862 = vmatmul.mubr.bf16.gmra.mxu0 %v1685
      %v1863 = vpop.f32.mrf.mxu0
      %v1864 = vadd.f32 0.0, %v1863
      %v1865 = vpop.f32.mrf.mxu0
      %v1866 = vadd.f32 0.0, %v1865
      %v1867 = vpop.f32.mrf.mxu0
      %v1868 = vadd.f32 0.0, %v1867
      %v1869 = vpop.f32.mrf.mxu0
      %v1870 = vadd.f32 0.0, %v1869
      %1871 = vmatprep.mubr.bf16.mxu0 0
      %1872 = vmatmul.mubr.bf16.gmra.mxu0 %v1688
      %v1873 = vpop.f32.mrf.mxu0
      %v1874 = vadd.f32 0.0, %v1873
      %v1875 = vpop.f32.mrf.mxu0
      %v1876 = vadd.f32 0.0, %v1875
      %v1877 = vpop.f32.mrf.mxu0
      %v1878 = vadd.f32 0.0, %v1877
      %v1879 = vpop.f32.mrf.mxu0
      %v1880 = vadd.f32 0.0, %v1879
      %1881 = vmatprep.mubr.bf16.mxu0 0
      %1882 = vmatmul.mubr.bf16.gmra.mxu0 %v1691
      %v1883 = vpop.f32.mrf.mxu0
      %v1884 = vadd.f32 0.0, %v1883
      %v1885 = vpop.f32.mrf.mxu0
      %v1886 = vadd.f32 0.0, %v1885
      %v1887 = vpop.f32.mrf.mxu0
      %v1888 = vadd.f32 0.0, %v1887
      %v1889 = vpop.f32.mrf.mxu0
      %v1890 = vadd.f32 0.0, %v1889
      %1891 = vdwg.mxu0
      %v1893 = vsel %vm1149, %v1117, 0
      %v1896 = vsel %vm1149, %v1118, 0
      %v1899 = vsel %vm1149, %v1119, 0
      %v1902 = vsel %vm1149, %v1120, 0
      %v1905 = vsel %vm1149, %v1121, 0
      %v1908 = vsel %vm1149, %v1122, 0
      %v1911 = vsel %vm1149, %v1123, 0
      %v1914 = vsel %vm1149, %v1124, 0
      %v1917 = vsel %vm1149, %v1125, 0
      %v1920 = vsel %vm1149, %v1126, 0
      %v1923 = vsel %vm1149, %v1127, 0
      %v1926 = vsel %vm1149, %v1128, 0
      %v1929 = vsel %vm1149, %v1129, 0
      %v1932 = vsel %vm1149, %v1130, 0
      %v1935 = vsel %vm1149, %v1131, 0
      %v1938 = vsel %vm1149, %v1132, 0
      %v1941 = vsel %vm1198, %v1139, 0
      %v1944 = vsel %vm1198, %v1140, 0
      %1946 = vmatprep.subr.bf16.mxu0 0
      %1947 = vmatpush1.bf16.msra.mxu0 0
      %1948 = vmatprep.subr.bf16.mxu0 0
      %1949 = vmatpush1.bf16.msra.mxu0 0
      %1950 = vmatprep.subr.bf16.mxu0 0
      %1951 = vmatpush1.bf16.msra.mxu0 0
      %1952 = vmatprep.subr.bf16.mxu0 0
      %1953 = vmatpush1.bf16.msra.mxu0 0
      %1954 = vmatprep.subr.bf16.mxu0 0
      %1955 = vmatpush1.bf16.msra.mxu0 0
      %1956 = vmatprep.subr.bf16.mxu0 0
      %1957 = vmatpush1.bf16.msra.mxu0 0
      %1958 = vmatprep.subr.bf16.mxu0 0
      %1959 = vmatpush1.bf16.msra.mxu0 0
      %1960 = vmatprep.subr.bf16.mxu0 %v1944
      %1961 = vmatpush1.bf16.msra.mxu0 %v1941
      %1962 = vmatprep.subr.bf16.mxu0 0
      %1963 = vmatpush2.bf16.msra.mxu0 0
      %1964 = vmatprep.subr.bf16.mxu0 0
      %1965 = vmatpush2.bf16.msra.mxu0 0
      %1966 = vmatprep.subr.bf16.mxu0 0
      %1967 = vmatpush2.bf16.msra.mxu0 0
      %1968 = vmatprep.subr.bf16.mxu0 0
      %1969 = vmatpush2.bf16.msra.mxu0 0
      %1970 = vmatprep.subr.bf16.mxu0 0
      %1971 = vmatpush2.bf16.msra.mxu0 0
      %1972 = vmatprep.subr.bf16.mxu0 0
      %1973 = vmatpush2.bf16.msra.mxu0 0
      %1974 = vmatprep.subr.bf16.mxu0 0
      %1975 = vmatpush2.bf16.msra.mxu0 0
      %1976 = vmatprep.subr.bf16.mxu0 0
      %1977 = vmatpush2.bf16.msra.mxu0 0
      %1978 = vmatprep.mubr.bf16.mxu0 0
      %1979 = vmatmul.mubr.bf16.gmra.mxu0 %v1893
      %v1980 = vpop.f32.mrf.mxu0
      %v1981 = vadd.f32 0.0, %v1980
      %v1982 = vpop.f32.mrf.mxu0
      %v1983 = vadd.f32 0.0, %v1982
      %v1984 = vpop.f32.mrf.mxu0
      %v1985 = vadd.f32 0.0, %v1984
      %v1986 = vpop.f32.mrf.mxu0
      %v1987 = vadd.f32 0.0, %v1986
      %1988 = vmatprep.mubr.bf16.mxu0 0
      %1989 = vmatmul.mubr.bf16.gmra.mxu0 %v1896
      %v1990 = vpop.f32.mrf.mxu0
      %v1991 = vadd.f32 0.0, %v1990
      %v1992 = vpop.f32.mrf.mxu0
      %v1993 = vadd.f32 0.0, %v1992
      %v1994 = vpop.f32.mrf.mxu0
      %v1995 = vadd.f32 0.0, %v1994
      %v1996 = vpop.f32.mrf.mxu0
      %v1997 = vadd.f32 0.0, %v1996
      %1998 = vmatprep.mubr.bf16.mxu0 0
      %1999 = vmatmul.mubr.bf16.gmra.mxu0 %v1899
      %v2000 = vpop.f32.mrf.mxu0
      %v2001 = vadd.f32 0.0, %v2000
      %v2002 = vpop.f32.mrf.mxu0
      %v2003 = vadd.f32 0.0, %v2002
      %v2004 = vpop.f32.mrf.mxu0
      %v2005 = vadd.f32 0.0, %v2004
      %v2006 = vpop.f32.mrf.mxu0
      %v2007 = vadd.f32 0.0, %v2006
      %2008 = vmatprep.mubr.bf16.mxu0 0
      %2009 = vmatmul.mubr.bf16.gmra.mxu0 %v1902
      %v2010 = vpop.f32.mrf.mxu0
      %v2011 = vadd.f32 0.0, %v2010
      %v2012 = vpop.f32.mrf.mxu0
      %v2013 = vadd.f32 0.0, %v2012
      %v2014 = vpop.f32.mrf.mxu0
      %v2015 = vadd.f32 0.0, %v2014
      %v2016 = vpop.f32.mrf.mxu0
      %v2017 = vadd.f32 0.0, %v2016
      %2018 = vmatprep.mubr.bf16.mxu0 0
      %2019 = vmatmul.mubr.bf16.gmra.mxu0 %v1905
      %v2020 = vpop.f32.mrf.mxu0
      %v2021 = vadd.f32 0.0, %v2020
      %v2022 = vpop.f32.mrf.mxu0
      %v2023 = vadd.f32 0.0, %v2022
      %v2024 = vpop.f32.mrf.mxu0
      %v2025 = vadd.f32 0.0, %v2024
      %v2026 = vpop.f32.mrf.mxu0
      %v2027 = vadd.f32 0.0, %v2026
      %2028 = vmatprep.mubr.bf16.mxu0 0
      %2029 = vmatmul.mubr.bf16.gmra.mxu0 %v1908
      %v2030 = vpop.f32.mrf.mxu0
      %v2031 = vadd.f32 0.0, %v2030
      %v2032 = vpop.f32.mrf.mxu0
      %v2033 = vadd.f32 0.0, %v2032
      %v2034 = vpop.f32.mrf.mxu0
      %v2035 = vadd.f32 0.0, %v2034
      %v2036 = vpop.f32.mrf.mxu0
      %v2037 = vadd.f32 0.0, %v2036
      %2038 = vmatprep.mubr.bf16.mxu0 0
      %2039 = vmatmul.mubr.bf16.gmra.mxu0 %v1911
      %v2040 = vpop.f32.mrf.mxu0
      %v2041 = vadd.f32 0.0, %v2040
      %v2042 = vpop.f32.mrf.mxu0
      %v2043 = vadd.f32 0.0, %v2042
      %v2044 = vpop.f32.mrf.mxu0
      %v2045 = vadd.f32 0.0, %v2044
      %v2046 = vpop.f32.mrf.mxu0
      %v2047 = vadd.f32 0.0, %v2046
      %2048 = vmatprep.mubr.bf16.mxu0 0
      %2049 = vmatmul.mubr.bf16.gmra.mxu0 %v1914
      %v2050 = vpop.f32.mrf.mxu0
      %v2051 = vadd.f32 0.0, %v2050
      %v2052 = vpop.f32.mrf.mxu0
      %v2053 = vadd.f32 0.0, %v2052
      %v2054 = vpop.f32.mrf.mxu0
      %v2055 = vadd.f32 0.0, %v2054
      %v2056 = vpop.f32.mrf.mxu0
      %v2057 = vadd.f32 0.0, %v2056
      %2058 = vmatprep.mubr.bf16.mxu0 0
      %2059 = vmatmul.mubr.bf16.gmra.mxu0 %v1917
      %v2060 = vpop.f32.mrf.mxu0
      %v2061 = vadd.f32 0.0, %v2060
      %v2062 = vpop.f32.mrf.mxu0
      %v2063 = vadd.f32 0.0, %v2062
      %v2064 = vpop.f32.mrf.mxu0
      %v2065 = vadd.f32 0.0, %v2064
      %v2066 = vpop.f32.mrf.mxu0
      %v2067 = vadd.f32 0.0, %v2066
      %2068 = vmatprep.mubr.bf16.mxu0 0
      %2069 = vmatmul.mubr.bf16.gmra.mxu0 %v1920
      %v2070 = vpop.f32.mrf.mxu0
      %v2071 = vadd.f32 0.0, %v2070
      %v2072 = vpop.f32.mrf.mxu0
      %v2073 = vadd.f32 0.0, %v2072
      %v2074 = vpop.f32.mrf.mxu0
      %v2075 = vadd.f32 0.0, %v2074
      %v2076 = vpop.f32.mrf.mxu0
      %v2077 = vadd.f32 0.0, %v2076
      %2078 = vmatprep.mubr.bf16.mxu0 0
      %2079 = vmatmul.mubr.bf16.gmra.mxu0 %v1923
      %v2080 = vpop.f32.mrf.mxu0
      %v2081 = vadd.f32 0.0, %v2080
      %v2082 = vpop.f32.mrf.mxu0
      %v2083 = vadd.f32 0.0, %v2082
      %v2084 = vpop.f32.mrf.mxu0
      %v2085 = vadd.f32 0.0, %v2084
      %v2086 = vpop.f32.mrf.mxu0
      %v2087 = vadd.f32 0.0, %v2086
      %2088 = vmatprep.mubr.bf16.mxu0 0
      %2089 = vmatmul.mubr.bf16.gmra.mxu0 %v1926
      %v2090 = vpop.f32.mrf.mxu0
      %v2091 = vadd.f32 0.0, %v2090
      %v2092 = vpop.f32.mrf.mxu0
      %v2093 = vadd.f32 0.0, %v2092
      %v2094 = vpop.f32.mrf.mxu0
      %v2095 = vadd.f32 0.0, %v2094
      %v2096 = vpop.f32.mrf.mxu0
      %v2097 = vadd.f32 0.0, %v2096
      %2098 = vmatprep.mubr.bf16.mxu0 0
      %2099 = vmatmul.mubr.bf16.gmra.mxu0 %v1929
      %v2100 = vpop.f32.mrf.mxu0
      %v2101 = vadd.f32 0.0, %v2100
      %v2102 = vpop.f32.mrf.mxu0
      %v2103 = vadd.f32 0.0, %v2102
      %v2104 = vpop.f32.mrf.mxu0
      %v2105 = vadd.f32 0.0, %v2104
      %v2106 = vpop.f32.mrf.mxu0
      %v2107 = vadd.f32 0.0, %v2106
      %2108 = vmatprep.mubr.bf16.mxu0 0
      %2109 = vmatmul.mubr.bf16.gmra.mxu0 %v1932
      %v2110 = vpop.f32.mrf.mxu0
      %v2111 = vadd.f32 0.0, %v2110
      %v2112 = vpop.f32.mrf.mxu0
      %v2113 = vadd.f32 0.0, %v2112
      %v2114 = vpop.f32.mrf.mxu0
      %v2115 = vadd.f32 0.0, %v2114
      %v2116 = vpop.f32.mrf.mxu0
      %v2117 = vadd.f32 0.0, %v2116
      %2118 = vmatprep.mubr.bf16.mxu0 0
      %2119 = vmatmul.mubr.bf16.gmra.mxu0 %v1935
      %v2120 = vpop.f32.mrf.mxu0
      %v2121 = vadd.f32 0.0, %v2120
      %v2122 = vpop.f32.mrf.mxu0
      %v2123 = vadd.f32 0.0, %v2122
      %v2124 = vpop.f32.mrf.mxu0
      %v2125 = vadd.f32 0.0, %v2124
      %v2126 = vpop.f32.mrf.mxu0
      %v2127 = vadd.f32 0.0, %v2126
      %2128 = vmatprep.mubr.bf16.mxu0 0
      %2129 = vmatmul.mubr.bf16.gmra.mxu0 %v1938
      %v2130 = vpop.f32.mrf.mxu0
      %v2131 = vadd.f32 0.0, %v2130
      %v2132 = vpop.f32.mrf.mxu0
      %v2133 = vadd.f32 0.0, %v2132
      %v2134 = vpop.f32.mrf.mxu0
      %v2135 = vadd.f32 0.0, %v2134
      %v2136 = vpop.f32.mrf.mxu0
      %v2137 = vadd.f32 0.0, %v2136
      %2138 = vdwg.mxu0
      %v2139 = vmax.f32 %v1240, %v1242
      %2140 = vmax.xlane.f32.xlu0 %v2139
      %v2141 = vpop.xlane.xlu0 %2140
      %v2142 = vmax.f32 %v1244, %v1246
      %2143 = vmax.xlane.f32.xlu0 %v2142
      %v2144 = vpop.xlane.xlu0 %2143
      %v2145 = vmax.f32 %v1250, %v1252
      %2146 = vmax.xlane.f32.xlu0 %v2145
      %v2147 = vpop.xlane.xlu0 %2146
      %v2148 = vmax.f32 %v1254, %v1256
      %2149 = vmax.xlane.f32.xlu0 %v2148
      %v2150 = vpop.xlane.xlu0 %2149
      %v2151 = vmax.f32 %v1260, %v1262
      %2152 = vmax.xlane.f32.xlu0 %v2151
      %v2153 = vpop.xlane.xlu0 %2152
      %v2154 = vmax.f32 %v1264, %v1266
      %2155 = vmax.xlane.f32.xlu0 %v2154
      %v2156 = vpop.xlane.xlu0 %2155
      %v2157 = vmax.f32 %v1270, %v1272
      %2158 = vmax.xlane.f32.xlu0 %v2157
      %v2159 = vpop.xlane.xlu0 %2158
      %v2160 = vmax.f32 %v1274, %v1276
      %2161 = vmax.xlane.f32.xlu0 %v2160
      %v2162 = vpop.xlane.xlu0 %2161
      %v2163 = vmax.f32 %v1280, %v1282
      %2164 = vmax.xlane.f32.xlu0 %v2163
      %v2165 = vpop.xlane.xlu0 %2164
      %v2166 = vmax.f32 %v1284, %v1286
      %2167 = vmax.xlane.f32.xlu0 %v2166
      %v2168 = vpop.xlane.xlu0 %2167
      %v2169 = vmax.f32 %v1290, %v1292
      %2170 = vmax.xlane.f32.xlu0 %v2169
      %v2171 = vpop.xlane.xlu0 %2170
      %v2172 = vmax.f32 %v1294, %v1296
      %2173 = vmax.xlane.f32.xlu0 %v2172
      %v2174 = vpop.xlane.xlu0 %2173
      %v2175 = vmax.f32 %v1300, %v1302
      %2176 = vmax.xlane.f32.xlu0 %v2175
      %v2177 = vpop.xlane.xlu0 %2176
      %v2178 = vmax.f32 %v1304, %v1306
      %2179 = vmax.xlane.f32.xlu0 %v2178
      %v2180 = vpop.xlane.xlu0 %2179
      %v2181 = vmax.f32 %v1310, %v1312
      %2182 = vmax.xlane.f32.xlu0 %v2181
      %v2183 = vpop.xlane.xlu0 %2182
      %v2184 = vmax.f32 %v1314, %v1316
      %2185 = vmax.xlane.f32.xlu0 %v2184
      %v2186 = vpop.xlane.xlu0 %2185
      %v2187 = vmax.f32 %v1320, %v1322
      %2188 = vmax.xlane.f32.xlu0 %v2187
      %v2189 = vpop.xlane.xlu0 %2188
      %v2190 = vmax.f32 %v1324, %v1326
      %2191 = vmax.xlane.f32.xlu0 %v2190
      %v2192 = vpop.xlane.xlu0 %2191
      %v2193 = vmax.f32 %v1330, %v1332
      %2194 = vmax.xlane.f32.xlu0 %v2193
      %v2195 = vpop.xlane.xlu0 %2194
      %v2196 = vmax.f32 %v1334, %v1336
      %2197 = vmax.xlane.f32.xlu0 %v2196
      %v2198 = vpop.xlane.xlu0 %2197
      %v2199 = vmax.f32 %v1340, %v1342
      %2200 = vmax.xlane.f32.xlu0 %v2199
      %v2201 = vpop.xlane.xlu0 %2200
      %v2202 = vmax.f32 %v1344, %v1346
      %2203 = vmax.xlane.f32.xlu0 %v2202
      %v2204 = vpop.xlane.xlu0 %2203
      %v2205 = vmax.f32 %v1350, %v1352
      %2206 = vmax.xlane.f32.xlu0 %v2205
      %v2207 = vpop.xlane.xlu0 %2206
      %v2208 = vmax.f32 %v1354, %v1356
      %2209 = vmax.xlane.f32.xlu0 %v2208
      %v2210 = vpop.xlane.xlu0 %2209
      %v2211 = vmax.f32 %v1360, %v1362
      %2212 = vmax.xlane.f32.xlu0 %v2211
      %v2213 = vpop.xlane.xlu0 %2212
      %v2214 = vmax.f32 %v1364, %v1366
      %2215 = vmax.xlane.f32.xlu0 %v2214
      %v2216 = vpop.xlane.xlu0 %2215
      %v2217 = vmax.f32 %v1370, %v1372
      %2218 = vmax.xlane.f32.xlu0 %v2217
      %v2219 = vpop.xlane.xlu0 %2218
      %v2220 = vmax.f32 %v1374, %v1376
      %2221 = vmax.xlane.f32.xlu0 %v2220
      %v2222 = vpop.xlane.xlu0 %2221
      %v2223 = vmax.f32 %v1380, %v1382
      %2224 = vmax.xlane.f32.xlu0 %v2223
      %v2225 = vpop.xlane.xlu0 %2224
      %v2226 = vmax.f32 %v1384, %v1386
      %2227 = vmax.xlane.f32.xlu0 %v2226
      %v2228 = vpop.xlane.xlu0 %2227
      %v2229 = vmax.f32 %v1390, %v1392
      %2230 = vmax.xlane.f32.xlu0 %v2229
      %v2231 = vpop.xlane.xlu0 %2230
      %v2232 = vmax.f32 %v1394, %v1396
      %2233 = vmax.xlane.f32.xlu0 %v2232
      %v2234 = vpop.xlane.xlu0 %2233
      %v2235 = vmax.f32 %v1487, %v1489
      %2236 = vmax.xlane.f32.xlu0 %v2235
      %v2237 = vpop.xlane.xlu0 %2236
      %v2238 = vmax.f32 %v1491, %v1493
      %2239 = vmax.xlane.f32.xlu0 %v2238
      %v2240 = vpop.xlane.xlu0 %2239
      %v2241 = vmax.f32 %v1497, %v1499
      %2242 = vmax.xlane.f32.xlu0 %v2241
      %v2243 = vpop.xlane.xlu0 %2242
      %v2244 = vmax.f32 %v1501, %v1503
      %2245 = vmax.xlane.f32.xlu0 %v2244
      %v2246 = vpop.xlane.xlu0 %2245
      %v2247 = vmax.f32 %v1507, %v1509
      %2248 = vmax.xlane.f32.xlu0 %v2247
      %v2249 = vpop.xlane.xlu0 %2248
      %v2250 = vmax.f32 %v1511, %v1513
      %2251 = vmax.xlane.f32.xlu0 %v2250
      %v2252 = vpop.xlane.xlu0 %2251
      %v2253 = vmax.f32 %v1517, %v1519
      %2254 = vmax.xlane.f32.xlu0 %v2253
      %v2255 = vpop.xlane.xlu0 %2254
      %v2256 = vmax.f32 %v1521, %v1523
      %2257 = vmax.xlane.f32.xlu0 %v2256
      %v2258 = vpop.xlane.xlu0 %2257
      %v2259 = vmax.f32 %v1527, %v1529
      %2260 = vmax.xlane.f32.xlu0 %v2259
      %v2261 = vpop.xlane.xlu0 %2260
      %v2262 = vmax.f32 %v1531, %v1533
      %2263 = vmax.xlane.f32.xlu0 %v2262
      %v2264 = vpop.xlane.xlu0 %2263
      %v2265 = vmax.f32 %v1537, %v1539
      %2266 = vmax.xlane.f32.xlu0 %v2265
      %v2267 = vpop.xlane.xlu0 %2266
      %v2268 = vmax.f32 %v1541, %v1543
      %2269 = vmax.xlane.f32.xlu0 %v2268
      %v2270 = vpop.xlane.xlu0 %2269
      %v2271 = vmax.f32 %v1547, %v1549
      %2272 = vmax.xlane.f32.xlu0 %v2271
      %v2273 = vpop.xlane.xlu0 %2272
      %v2274 = vmax.f32 %v1551, %v1553
      %2275 = vmax.xlane.f32.xlu0 %v2274
      %v2276 = vpop.xlane.xlu0 %2275
      %v2277 = vmax.f32 %v1557, %v1559
      %2278 = vmax.xlane.f32.xlu0 %v2277
      %v2279 = vpop.xlane.xlu0 %2278
      %v2280 = vmax.f32 %v1561, %v1563
      %2281 = vmax.xlane.f32.xlu0 %v2280
      %v2282 = vpop.xlane.xlu0 %2281
      %v2283 = vmax.f32 %v1567, %v1569
      %2284 = vmax.xlane.f32.xlu0 %v2283
      %v2285 = vpop.xlane.xlu0 %2284
      %v2286 = vmax.f32 %v1571, %v1573
      %2287 = vmax.xlane.f32.xlu0 %v2286
      %v2288 = vpop.xlane.xlu0 %2287
      %v2289 = vmax.f32 %v1577, %v1579
      %2290 = vmax.xlane.f32.xlu0 %v2289
      %v2291 = vpop.xlane.xlu0 %2290
      %v2292 = vmax.f32 %v1581, %v1583
      %2293 = vmax.xlane.f32.xlu0 %v2292
      %v2294 = vpop.xlane.xlu0 %2293
      %v2295 = vmax.f32 %v1587, %v1589
      %2296 = vmax.xlane.f32.xlu0 %v2295
      %v2297 = vpop.xlane.xlu0 %2296
      %v2298 = vmax.f32 %v1591, %v1593
      %2299 = vmax.xlane.f32.xlu0 %v2298
      %v2300 = vpop.xlane.xlu0 %2299
      %v2301 = vmax.f32 %v1597, %v1599
      %2302 = vmax.xlane.f32.xlu0 %v2301
      %v2303 = vpop.xlane.xlu0 %2302
      %v2304 = vmax.f32 %v1601, %v1603
      %2305 = vmax.xlane.f32.xlu0 %v2304
      %v2306 = vpop.xlane.xlu0 %2305
      %v2307 = vmax.f32 %v1607, %v1609
      %2308 = vmax.xlane.f32.xlu0 %v2307
      %v2309 = vpop.xlane.xlu0 %2308
      %v2310 = vmax.f32 %v1611, %v1613
      %2311 = vmax.xlane.f32.xlu0 %v2310
      %v2312 = vpop.xlane.xlu0 %2311
      %v2313 = vmax.f32 %v1617, %v1619
      %2314 = vmax.xlane.f32.xlu0 %v2313
      %v2315 = vpop.xlane.xlu0 %2314
      %v2316 = vmax.f32 %v1621, %v1623
      %2317 = vmax.xlane.f32.xlu0 %v2316
      %v2318 = vpop.xlane.xlu0 %2317
      %v2319 = vmax.f32 %v1627, %v1629
      %2320 = vmax.xlane.f32.xlu0 %v2319
      %v2321 = vpop.xlane.xlu0 %2320
      %v2322 = vmax.f32 %v1631, %v1633
      %2323 = vmax.xlane.f32.xlu0 %v2322
      %v2324 = vpop.xlane.xlu0 %2323
      %v2325 = vmax.f32 %v1637, %v1639
      %2326 = vmax.xlane.f32.xlu0 %v2325
      %v2327 = vpop.xlane.xlu0 %2326
      %v2328 = vmax.f32 %v1641, %v1643
      %2329 = vmax.xlane.f32.xlu0 %v2328
      %v2330 = vpop.xlane.xlu0 %2329
      %v2331 = vmax.f32 %v1734, %v1736
      %2332 = vmax.xlane.f32.xlu0 %v2331
      %v2333 = vpop.xlane.xlu0 %2332
      %v2334 = vmax.f32 %v1738, %v1740
      %2335 = vmax.xlane.f32.xlu0 %v2334
      %v2336 = vpop.xlane.xlu0 %2335
      %v2337 = vmax.f32 %v1744, %v1746
      %2338 = vmax.xlane.f32.xlu0 %v2337
      %v2339 = vpop.xlane.xlu0 %2338
      %v2340 = vmax.f32 %v1748, %v1750
      %2341 = vmax.xlane.f32.xlu0 %v2340
      %v2342 = vpop.xlane.xlu0 %2341
      %v2343 = vmax.f32 %v1754, %v1756
      %2344 = vmax.xlane.f32.xlu0 %v2343
      %v2345 = vpop.xlane.xlu0 %2344
      %v2346 = vmax.f32 %v1758, %v1760
      %2347 = vmax.xlane.f32.xlu0 %v2346
      %v2348 = vpop.xlane.xlu0 %2347
      %v2349 = vmax.f32 %v1764, %v1766
      %2350 = vmax.xlane.f32.xlu0 %v2349
      %v2351 = vpop.xlane.xlu0 %2350
      %v2352 = vmax.f32 %v1768, %v1770
      %2353 = vmax.xlane.f32.xlu0 %v2352
      %v2354 = vpop.xlane.xlu0 %2353
      %v2355 = vmax.f32 %v1774, %v1776
      %2356 = vmax.xlane.f32.xlu0 %v2355
      %v2357 = vpop.xlane.xlu0 %2356
      %v2358 = vmax.f32 %v1778, %v1780
      %2359 = vmax.xlane.f32.xlu0 %v2358
      %v2360 = vpop.xlane.xlu0 %2359
      %v2361 = vmax.f32 %v1784, %v1786
      %2362 = vmax.xlane.f32.xlu0 %v2361
      %v2363 = vpop.xlane.xlu0 %2362
      %v2364 = vmax.f32 %v1788, %v1790
      %2365 = vmax.xlane.f32.xlu0 %v2364
      %v2366 = vpop.xlane.xlu0 %2365
      %v2367 = vmax.f32 %v1794, %v1796
      %2368 = vmax.xlane.f32.xlu0 %v2367
      %v2369 = vpop.xlane.xlu0 %2368
      %v2370 = vmax.f32 %v1798, %v1800
      %2371 = vmax.xlane.f32.xlu0 %v2370
      %v2372 = vpop.xlane.xlu0 %2371
      %v2373 = vmax.f32 %v1804, %v1806
      %2374 = vmax.xlane.f32.xlu0 %v2373
      %v2375 = vpop.xlane.xlu0 %2374
      %v2376 = vmax.f32 %v1808, %v1810
      %2377 = vmax.xlane.f32.xlu0 %v2376
      %v2378 = vpop.xlane.xlu0 %2377
      %v2379 = vmax.f32 %v1814, %v1816
      %2380 = vmax.xlane.f32.xlu0 %v2379
      %v2381 = vpop.xlane.xlu0 %2380
      %v2382 = vmax.f32 %v1818, %v1820
      %2383 = vmax.xlane.f32.xlu0 %v2382
      %v2384 = vpop.xlane.xlu0 %2383
      %v2385 = vmax.f32 %v1824, %v1826
      %2386 = vmax.xlane.f32.xlu0 %v2385
      %v2387 = vpop.xlane.xlu0 %2386
      %v2388 = vmax.f32 %v1828, %v1830
      %2389 = vmax.xlane.f32.xlu0 %v2388
      %v2390 = vpop.xlane.xlu0 %2389
      %v2391 = vmax.f32 %v1834, %v1836
      %2392 = vmax.xlane.f32.xlu0 %v2391
      %v2393 = vpop.xlane.xlu0 %2392
      %v2394 = vmax.f32 %v1838, %v1840
      %2395 = vmax.xlane.f32.xlu0 %v2394
      %v2396 = vpop.xlane.xlu0 %2395
      %v2397 = vmax.f32 %v1844, %v1846
      %2398 = vmax.xlane.f32.xlu0 %v2397
      %v2399 = vpop.xlane.xlu0 %2398
      %v2400 = vmax.f32 %v1848, %v1850
      %2401 = vmax.xlane.f32.xlu0 %v2400
      %v2402 = vpop.xlane.xlu0 %2401
      %v2403 = vmax.f32 %v1854, %v1856
      %2404 = vmax.xlane.f32.xlu0 %v2403
      %v2405 = vpop.xlane.xlu0 %2404
      %v2406 = vmax.f32 %v1858, %v1860
      %2407 = vmax.xlane.f32.xlu0 %v2406
      %v2408 = vpop.xlane.xlu0 %2407
      %v2409 = vmax.f32 %v1864, %v1866
      %2410 = vmax.xlane.f32.xlu0 %v2409
      %v2411 = vpop.xlane.xlu0 %2410
      %v2412 = vmax.f32 %v1868, %v1870
      %2413 = vmax.xlane.f32.xlu0 %v2412
      %v2414 = vpop.xlane.xlu0 %2413
      %v2415 = vmax.f32 %v1874, %v1876
      %2416 = vmax.xlane.f32.xlu0 %v2415
      %v2417 = vpop.xlane.xlu0 %2416
      %v2418 = vmax.f32 %v1878, %v1880
      %2419 = vmax.xlane.f32.xlu0 %v2418
      %v2420 = vpop.xlane.xlu0 %2419
      %v2421 = vmax.f32 %v1884, %v1886
      %2422 = vmax.xlane.f32.xlu0 %v2421
      %v2423 = vpop.xlane.xlu0 %2422
      %v2424 = vmax.f32 %v1888, %v1890
      %2425 = vmax.xlane.f32.xlu0 %v2424
      %v2426 = vpop.xlane.xlu0 %2425
      %v2427 = vmax.f32 %v1981, %v1983
      %2428 = vmax.xlane.f32.xlu0 %v2427
      %v2429 = vpop.xlane.xlu0 %2428
      %v2430 = vmax.f32 %v1985, %v1987
      %2431 = vmax.xlane.f32.xlu0 %v2430
      %v2432 = vpop.xlane.xlu0 %2431
      %v2433 = vmax.f32 %v1991, %v1993
      %2434 = vmax.xlane.f32.xlu0 %v2433
      %v2435 = vpop.xlane.xlu0 %2434
      %v2436 = vmax.f32 %v1995, %v1997
      %2437 = vmax.xlane.f32.xlu0 %v2436
      %v2438 = vpop.xlane.xlu0 %2437
      %v2439 = vmax.f32 %v2001, %v2003
      %2440 = vmax.xlane.f32.xlu0 %v2439
      %v2441 = vpop.xlane.xlu0 %2440
      %v2442 = vmax.f32 %v2005, %v2007
      %2443 = vmax.xlane.f32.xlu0 %v2442
      %v2444 = vpop.xlane.xlu0 %2443
      %v2445 = vmax.f32 %v2011, %v2013
      %2446 = vmax.xlane.f32.xlu0 %v2445
      %v2447 = vpop.xlane.xlu0 %2446
      %v2448 = vmax.f32 %v2015, %v2017
      %2449 = vmax.xlane.f32.xlu0 %v2448
      %v2450 = vpop.xlane.xlu0 %2449
      %v2451 = vmax.f32 %v2021, %v2023
      %2452 = vmax.xlane.f32.xlu0 %v2451
      %v2453 = vpop.xlane.xlu0 %2452
      %v2454 = vmax.f32 %v2025, %v2027
      %2455 = vmax.xlane.f32.xlu0 %v2454
      %v2456 = vpop.xlane.xlu0 %2455
      %v2457 = vmax.f32 %v2031, %v2033
      %2458 = vmax.xlane.f32.xlu0 %v2457
      %v2459 = vpop.xlane.xlu0 %2458
      %v2460 = vmax.f32 %v2035, %v2037
      %2461 = vmax.xlane.f32.xlu0 %v2460
      %v2462 = vpop.xlane.xlu0 %2461
      %v2463 = vmax.f32 %v2041, %v2043
      %2464 = vmax.xlane.f32.xlu0 %v2463
      %v2465 = vpop.xlane.xlu0 %2464
      %v2466 = vmax.f32 %v2045, %v2047
      %2467 = vmax.xlane.f32.xlu0 %v2466
      %v2468 = vpop.xlane.xlu0 %2467
      %v2469 = vmax.f32 %v2051, %v2053
      %2470 = vmax.xlane.f32.xlu0 %v2469
      %v2471 = vpop.xlane.xlu0 %2470
      %v2472 = vmax.f32 %v2055, %v2057
      %2473 = vmax.xlane.f32.xlu0 %v2472
      %v2474 = vpop.xlane.xlu0 %2473
      %v2475 = vmax.f32 %v2061, %v2063
      %2476 = vmax.xlane.f32.xlu0 %v2475
      %v2477 = vpop.xlane.xlu0 %2476
      %v2478 = vmax.f32 %v2065, %v2067
      %2479 = vmax.xlane.f32.xlu0 %v2478
      %v2480 = vpop.xlane.xlu0 %2479
      %v2481 = vmax.f32 %v2071, %v2073
      %2482 = vmax.xlane.f32.xlu0 %v2481
      %v2483 = vpop.xlane.xlu0 %2482
      %v2484 = vmax.f32 %v2075, %v2077
      %2485 = vmax.xlane.f32.xlu0 %v2484
      %v2486 = vpop.xlane.xlu0 %2485
      %v2487 = vmax.f32 %v2081, %v2083
      %2488 = vmax.xlane.f32.xlu0 %v2487
      %v2489 = vpop.xlane.xlu0 %2488
      %v2490 = vmax.f32 %v2085, %v2087
      %2491 = vmax.xlane.f32.xlu0 %v2490
      %v2492 = vpop.xlane.xlu0 %2491
      %v2493 = vmax.f32 %v2091, %v2093
      %2494 = vmax.xlane.f32.xlu0 %v2493
      %v2495 = vpop.xlane.xlu0 %2494
      %v2496 = vmax.f32 %v2095, %v2097
      %2497 = vmax.xlane.f32.xlu0 %v2496
      %v2498 = vpop.xlane.xlu0 %2497
      %v2499 = vmax.f32 %v2101, %v2103
      %2500 = vmax.xlane.f32.xlu0 %v2499
      %v2501 = vpop.xlane.xlu0 %2500
      %v2502 = vmax.f32 %v2105, %v2107
      %2503 = vmax.xlane.f32.xlu0 %v2502
      %v2504 = vpop.xlane.xlu0 %2503
      %v2505 = vmax.f32 %v2111, %v2113
      %2506 = vmax.xlane.f32.xlu0 %v2505
      %v2507 = vpop.xlane.xlu0 %2506
      %v2508 = vmax.f32 %v2115, %v2117
      %2509 = vmax.xlane.f32.xlu0 %v2508
      %v2510 = vpop.xlane.xlu0 %2509
      %v2511 = vmax.f32 %v2121, %v2123
      %2512 = vmax.xlane.f32.xlu0 %v2511
      %v2513 = vpop.xlane.xlu0 %2512
      %v2514 = vmax.f32 %v2125, %v2127
      %2515 = vmax.xlane.f32.xlu0 %v2514
      %v2516 = vpop.xlane.xlu0 %2515
      %v2517 = vmax.f32 %v2131, %v2133
      %2518 = vmax.xlane.f32.xlu0 %v2517
      %v2519 = vpop.xlane.xlu0 %2518
      %v2520 = vmax.f32 %v2135, %v2137
      %2521 = vmax.xlane.f32.xlu0 %v2520
      %v2522 = vpop.xlane.xlu0 %2521
      %v2523 = vsub.f32 %v1240, %v2141
      %v2524 = vsub.f32 %v1242, %v2141
      %v2525 = vsub.f32 %v1244, %v2144
      %v2526 = vsub.f32 %v1246, %v2144
      %v2527 = vsub.f32 %v1250, %v2147
      %v2528 = vsub.f32 %v1252, %v2147
      %v2529 = vsub.f32 %v1254, %v2150
      %v2530 = vsub.f32 %v1256, %v2150
      %v2531 = vsub.f32 %v1260, %v2153
      %v2532 = vsub.f32 %v1262, %v2153
      %v2533 = vsub.f32 %v1264, %v2156
      %v2534 = vsub.f32 %v1266, %v2156
      %v2535 = vsub.f32 %v1270, %v2159
      %v2536 = vsub.f32 %v1272, %v2159
      %v2537 = vsub.f32 %v1274, %v2162
      %v2538 = vsub.f32 %v1276, %v2162
      %v2539 = vsub.f32 %v1280, %v2165
      %v2540 = vsub.f32 %v1282, %v2165
      %v2541 = vsub.f32 %v1284, %v2168
      %v2542 = vsub.f32 %v1286, %v2168
      %v2543 = vsub.f32 %v1290, %v2171
      %v2544 = vsub.f32 %v1292, %v2171
      %v2545 = vsub.f32 %v1294, %v2174
      %v2546 = vsub.f32 %v1296, %v2174
      %v2547 = vsub.f32 %v1300, %v2177
      %v2548 = vsub.f32 %v1302, %v2177
      %v2549 = vsub.f32 %v1304, %v2180
      %v2550 = vsub.f32 %v1306, %v2180
      %v2551 = vsub.f32 %v1310, %v2183
      %v2552 = vsub.f32 %v1312, %v2183
      %v2553 = vsub.f32 %v1314, %v2186
      %v2554 = vsub.f32 %v1316, %v2186
      %v2555 = vsub.f32 %v1320, %v2189
      %v2556 = vsub.f32 %v1322, %v2189
      %v2557 = vsub.f32 %v1324, %v2192
      %v2558 = vsub.f32 %v1326, %v2192
      %v2559 = vsub.f32 %v1330, %v2195
      %v2560 = vsub.f32 %v1332, %v2195
      %v2561 = vsub.f32 %v1334, %v2198
      %v2562 = vsub.f32 %v1336, %v2198
      %v2563 = vsub.f32 %v1340, %v2201
      %v2564 = vsub.f32 %v1342, %v2201
      %v2565 = vsub.f32 %v1344, %v2204
      %v2566 = vsub.f32 %v1346, %v2204
      %v2567 = vsub.f32 %v1350, %v2207
      %v2568 = vsub.f32 %v1352, %v2207
      %v2569 = vsub.f32 %v1354, %v2210
      %v2570 = vsub.f32 %v1356, %v2210
      %v2571 = vsub.f32 %v1360, %v2213
      %v2572 = vsub.f32 %v1362, %v2213
      %v2573 = vsub.f32 %v1364, %v2216
      %v2574 = vsub.f32 %v1366, %v2216
      %v2575 = vsub.f32 %v1370, %v2219
      %v2576 = vsub.f32 %v1372, %v2219
      %v2577 = vsub.f32 %v1374, %v2222
      %v2578 = vsub.f32 %v1376, %v2222
      %v2579 = vsub.f32 %v1380, %v2225
      %v2580 = vsub.f32 %v1382, %v2225
      %v2581 = vsub.f32 %v1384, %v2228
      %v2582 = vsub.f32 %v1386, %v2228
      %v2583 = vsub.f32 %v1390, %v2231
      %v2584 = vsub.f32 %v1392, %v2231
      %v2585 = vsub.f32 %v1394, %v2234
      %v2586 = vsub.f32 %v1396, %v2234
      %v2587 = vsub.f32 %v1487, %v2237
      %v2588 = vsub.f32 %v1489, %v2237
      %v2589 = vsub.f32 %v1491, %v2240
      %v2590 = vsub.f32 %v1493, %v2240
      %v2591 = vsub.f32 %v1497, %v2243
      %v2592 = vsub.f32 %v1499, %v2243
      %v2593 = vsub.f32 %v1501, %v2246
      %v2594 = vsub.f32 %v1503, %v2246
      %v2595 = vsub.f32 %v1507, %v2249
      %v2596 = vsub.f32 %v1509, %v2249
      %v2597 = vsub.f32 %v1511, %v2252
      %v2598 = vsub.f32 %v1513, %v2252
      %v2599 = vsub.f32 %v1517, %v2255
      %v2600 = vsub.f32 %v1519, %v2255
      %v2601 = vsub.f32 %v1521, %v2258
      %v2602 = vsub.f32 %v1523, %v2258
      %v2603 = vsub.f32 %v1527, %v2261
      %v2604 = vsub.f32 %v1529, %v2261
      %v2605 = vsub.f32 %v1531, %v2264
      %v2606 = vsub.f32 %v1533, %v2264
      %v2607 = vsub.f32 %v1537, %v2267
      %v2608 = vsub.f32 %v1539, %v2267
      %v2609 = vsub.f32 %v1541, %v2270
      %v2610 = vsub.f32 %v1543, %v2270
      %v2611 = vsub.f32 %v1547, %v2273
      %v2612 = vsub.f32 %v1549, %v2273
      %v2613 = vsub.f32 %v1551, %v2276
      %v2614 = vsub.f32 %v1553, %v2276
      %v2615 = vsub.f32 %v1557, %v2279
      %v2616 = vsub.f32 %v1559, %v2279
      %v2617 = vsub.f32 %v1561, %v2282
      %v2618 = vsub.f32 %v1563, %v2282
      %v2619 = vsub.f32 %v1567, %v2285
      %v2620 = vsub.f32 %v1569, %v2285
      %v2621 = vsub.f32 %v1571, %v2288
      %v2622 = vsub.f32 %v1573, %v2288
      %v2623 = vsub.f32 %v1577, %v2291
      %v2624 = vsub.f32 %v1579, %v2291
      %v2625 = vsub.f32 %v1581, %v2294
      %v2626 = vsub.f32 %v1583, %v2294
      %v2627 = vsub.f32 %v1587, %v2297
      %v2628 = vsub.f32 %v1589, %v2297
      %v2629 = vsub.f32 %v1591, %v2300
      %v2630 = vsub.f32 %v1593, %v2300
      %v2631 = vsub.f32 %v1597, %v2303
      %v2632 = vsub.f32 %v1599, %v2303
      %v2633 = vsub.f32 %v1601, %v2306
      %v2634 = vsub.f32 %v1603, %v2306
      %v2635 = vsub.f32 %v1607, %v2309
      %v2636 = vsub.f32 %v1609, %v2309
      %v2637 = vsub.f32 %v1611, %v2312
      %v2638 = vsub.f32 %v1613, %v2312
      %v2639 = vsub.f32 %v1617, %v2315
      %v2640 = vsub.f32 %v1619, %v2315
      %v2641 = vsub.f32 %v1621, %v2318
      %v2642 = vsub.f32 %v1623, %v2318
      %v2643 = vsub.f32 %v1627, %v2321
      %v2644 = vsub.f32 %v1629, %v2321
      %v2645 = vsub.f32 %v1631, %v2324
      %v2646 = vsub.f32 %v1633, %v2324
      %v2647 = vsub.f32 %v1637, %v2327
      %v2648 = vsub.f32 %v1639, %v2327
      %v2649 = vsub.f32 %v1641, %v2330
      %v2650 = vsub.f32 %v1643, %v2330
      %v2651 = vsub.f32 %v1734, %v2333
      %v2652 = vsub.f32 %v1736, %v2333
      %v2653 = vsub.f32 %v1738, %v2336
      %v2654 = vsub.f32 %v1740, %v2336
      %v2655 = vsub.f32 %v1744, %v2339
      %v2656 = vsub.f32 %v1746, %v2339
      %v2657 = vsub.f32 %v1748, %v2342
      %v2658 = vsub.f32 %v1750, %v2342
      %v2659 = vsub.f32 %v1754, %v2345
      %v2660 = vsub.f32 %v1756, %v2345
      %v2661 = vsub.f32 %v1758, %v2348
      %v2662 = vsub.f32 %v1760, %v2348
      %v2663 = vsub.f32 %v1764, %v2351
      %v2664 = vsub.f32 %v1766, %v2351
      %v2665 = vsub.f32 %v1768, %v2354
      %v2666 = vsub.f32 %v1770, %v2354
      %v2667 = vsub.f32 %v1774, %v2357
      %v2668 = vsub.f32 %v1776, %v2357
      %v2669 = vsub.f32 %v1778, %v2360
      %v2670 = vsub.f32 %v1780, %v2360
      %v2671 = vsub.f32 %v1784, %v2363
      %v2672 = vsub.f32 %v1786, %v2363
      %v2673 = vsub.f32 %v1788, %v2366
      %v2674 = vsub.f32 %v1790, %v2366
      %v2675 = vsub.f32 %v1794, %v2369
      %v2676 = vsub.f32 %v1796, %v2369
      %v2677 = vsub.f32 %v1798, %v2372
      %v2678 = vsub.f32 %v1800, %v2372
      %v2679 = vsub.f32 %v1804, %v2375
      %v2680 = vsub.f32 %v1806, %v2375
      %v2681 = vsub.f32 %v1808, %v2378
      %v2682 = vsub.f32 %v1810, %v2378
      %v2683 = vsub.f32 %v1814, %v2381
      %v2684 = vsub.f32 %v1816, %v2381
      %v2685 = vsub.f32 %v1818, %v2384
      %v2686 = vsub.f32 %v1820, %v2384
      %v2687 = vsub.f32 %v1824, %v2387
      %v2688 = vsub.f32 %v1826, %v2387
      %v2689 = vsub.f32 %v1828, %v2390
      %v2690 = vsub.f32 %v1830, %v2390
      %v2691 = vsub.f32 %v1834, %v2393
      %v2692 = vsub.f32 %v1836, %v2393
      %v2693 = vsub.f32 %v1838, %v2396
      %v2694 = vsub.f32 %v1840, %v2396
      %v2695 = vsub.f32 %v1844, %v2399
      %v2696 = vsub.f32 %v1846, %v2399
      %v2697 = vsub.f32 %v1848, %v2402
      %v2698 = vsub.f32 %v1850, %v2402
      %v2699 = vsub.f32 %v1854, %v2405
      %v2700 = vsub.f32 %v1856, %v2405
      %v2701 = vsub.f32 %v1858, %v2408
      %v2702 = vsub.f32 %v1860, %v2408
      %v2703 = vsub.f32 %v1864, %v2411
      %v2704 = vsub.f32 %v1866, %v2411
      %v2705 = vsub.f32 %v1868, %v2414
      %v2706 = vsub.f32 %v1870, %v2414
      %v2707 = vsub.f32 %v1874, %v2417
      %v2708 = vsub.f32 %v1876, %v2417
      %v2709 = vsub.f32 %v1878, %v2420
      %v2710 = vsub.f32 %v1880, %v2420
      %v2711 = vsub.f32 %v1884, %v2423
      %v2712 = vsub.f32 %v1886, %v2423
      %v2713 = vsub.f32 %v1888, %v2426
      %v2714 = vsub.f32 %v1890, %v2426
      %v2715 = vsub.f32 %v1981, %v2429
      %v2716 = vsub.f32 %v1983, %v2429
      %v2717 = vsub.f32 %v1985, %v2432
      %v2718 = vsub.f32 %v1987, %v2432
      %v2719 = vsub.f32 %v1991, %v2435
      %v2720 = vsub.f32 %v1993, %v2435
      %v2721 = vsub.f32 %v1995, %v2438
      %v2722 = vsub.f32 %v1997, %v2438
      %v2723 = vsub.f32 %v2001, %v2441
      %v2724 = vsub.f32 %v2003, %v2441
      %v2725 = vsub.f32 %v2005, %v2444
      %v2726 = vsub.f32 %v2007, %v2444
      %v2727 = vsub.f32 %v2011, %v2447
      %v2728 = vsub.f32 %v2013, %v2447
      %v2729 = vsub.f32 %v2015, %v2450
      %v2730 = vsub.f32 %v2017, %v2450
      %v2731 = vsub.f32 %v2021, %v2453
      %v2732 = vsub.f32 %v2023, %v2453
      %v2733 = vsub.f32 %v2025, %v2456
      %v2734 = vsub.f32 %v2027, %v2456
      %v2735 = vsub.f32 %v2031, %v2459
      %v2736 = vsub.f32 %v2033, %v2459
      %v2737 = vsub.f32 %v2035, %v2462
      %v2738 = vsub.f32 %v2037, %v2462
      %v2739 = vsub.f32 %v2041, %v2465
      %v2740 = vsub.f32 %v2043, %v2465
      %v2741 = vsub.f32 %v2045, %v2468
      %v2742 = vsub.f32 %v2047, %v2468
      %v2743 = vsub.f32 %v2051, %v2471
      %v2744 = vsub.f32 %v2053, %v2471
      %v2745 = vsub.f32 %v2055, %v2474
      %v2746 = vsub.f32 %v2057, %v2474
      %v2747 = vsub.f32 %v2061, %v2477
      %v2748 = vsub.f32 %v2063, %v2477
      %v2749 = vsub.f32 %v2065, %v2480
      %v2750 = vsub.f32 %v2067, %v2480
      %v2751 = vsub.f32 %v2071, %v2483
      %v2752 = vsub.f32 %v2073, %v2483
      %v2753 = vsub.f32 %v2075, %v2486
      %v2754 = vsub.f32 %v2077, %v2486
      %v2755 = vsub.f32 %v2081, %v2489
      %v2756 = vsub.f32 %v2083, %v2489
      %v2757 = vsub.f32 %v2085, %v2492
      %v2758 = vsub.f32 %v2087, %v2492
      %v2759 = vsub.f32 %v2091, %v2495
      %v2760 = vsub.f32 %v2093, %v2495
      %v2761 = vsub.f32 %v2095, %v2498
      %v2762 = vsub.f32 %v2097, %v2498
      %v2763 = vsub.f32 %v2101, %v2501
      %v2764 = vsub.f32 %v2103, %v2501
      %v2765 = vsub.f32 %v2105, %v2504
      %v2766 = vsub.f32 %v2107, %v2504
      %v2767 = vsub.f32 %v2111, %v2507
      %v2768 = vsub.f32 %v2113, %v2507
      %v2769 = vsub.f32 %v2115, %v2510
      %v2770 = vsub.f32 %v2117, %v2510
      %v2771 = vsub.f32 %v2121, %v2513
      %v2772 = vsub.f32 %v2123, %v2513
      %v2773 = vsub.f32 %v2125, %v2516
      %v2774 = vsub.f32 %v2127, %v2516
      %v2775 = vsub.f32 %v2131, %v2519
      %v2776 = vsub.f32 %v2133, %v2519
      %v2777 = vsub.f32 %v2135, %v2522
      %v2778 = vsub.f32 %v2137, %v2522
      %v2779 = vmul.f32 %v2523, 1.442695
      %v2780 = vpow.pop %v2779
      %v2781 = vmul.f32 %v2524, 1.442695
      %v2782 = vpow.pop %v2781
      %v2783 = vmul.f32 %v2525, 1.442695
      %v2784 = vpow.pop %v2783
      %v2785 = vmul.f32 %v2526, 1.442695
      %v2786 = vpow.pop %v2785
      %v2787 = vmul.f32 %v2527, 1.442695
      %v2788 = vpow.pop %v2787
      %v2789 = vmul.f32 %v2528, 1.442695
      %v2790 = vpow.pop %v2789
      %v2791 = vmul.f32 %v2529, 1.442695
      %v2792 = vpow.pop %v2791
      %v2793 = vmul.f32 %v2530, 1.442695
      %v2794 = vpow.pop %v2793
      %v2795 = vmul.f32 %v2531, 1.442695
      %v2796 = vpow.pop %v2795
      %v2797 = vmul.f32 %v2532, 1.442695
      %v2798 = vpow.pop %v2797
      %v2799 = vmul.f32 %v2533, 1.442695
      %v2800 = vpow.pop %v2799
      %v2801 = vmul.f32 %v2534, 1.442695
      %v2802 = vpow.pop %v2801
      %v2803 = vmul.f32 %v2535, 1.442695
      %v2804 = vpow.pop %v2803
      %v2805 = vmul.f32 %v2536, 1.442695
      %v2806 = vpow.pop %v2805
      %v2807 = vmul.f32 %v2537, 1.442695
      %v2808 = vpow.pop %v2807
      %v2809 = vmul.f32 %v2538, 1.442695
      %v2810 = vpow.pop %v2809
      %v2811 = vmul.f32 %v2539, 1.442695
      %v2812 = vpow.pop %v2811
      %v2813 = vmul.f32 %v2540, 1.442695
      %v2814 = vpow.pop %v2813
      %v2815 = vmul.f32 %v2541, 1.442695
      %v2816 = vpow.pop %v2815
      %v2817 = vmul.f32 %v2542, 1.442695
      %v2818 = vpow.pop %v2817
      %v2819 = vmul.f32 %v2543, 1.442695
      %v2820 = vpow.pop %v2819
      %v2821 = vmul.f32 %v2544, 1.442695
      %v2822 = vpow.pop %v2821
      %v2823 = vmul.f32 %v2545, 1.442695
      %v2824 = vpow.pop %v2823
      %v2825 = vmul.f32 %v2546, 1.442695
      %v2826 = vpow.pop %v2825
      %v2827 = vmul.f32 %v2547, 1.442695
      %v2828 = vpow.pop %v2827
      %v2829 = vmul.f32 %v2548, 1.442695
      %v2830 = vpow.pop %v2829
      %v2831 = vmul.f32 %v2549, 1.442695
      %v2832 = vpow.pop %v2831
      %v2833 = vmul.f32 %v2550, 1.442695
      %v2834 = vpow.pop %v2833
      %v2835 = vmul.f32 %v2551, 1.442695
      %v2836 = vpow.pop %v2835
      %v2837 = vmul.f32 %v2552, 1.442695
      %v2838 = vpow.pop %v2837
      %v2839 = vmul.f32 %v2553, 1.442695
      %v2840 = vpow.pop %v2839
      %v2841 = vmul.f32 %v2554, 1.442695
      %v2842 = vpow.pop %v2841
      %v2843 = vmul.f32 %v2555, 1.442695
      %v2844 = vpow.pop %v2843
      %v2845 = vmul.f32 %v2556, 1.442695
      %v2846 = vpow.pop %v2845
      %v2847 = vmul.f32 %v2557, 1.442695
      %v2848 = vpow.pop %v2847
      %v2849 = vmul.f32 %v2558, 1.442695
      %v2850 = vpow.pop %v2849
      %v2851 = vmul.f32 %v2559, 1.442695
      %v2852 = vpow.pop %v2851
      %v2853 = vmul.f32 %v2560, 1.442695
      %v2854 = vpow.pop %v2853
      %v2855 = vmul.f32 %v2561, 1.442695
      %v2856 = vpow.pop %v2855
      %v2857 = vmul.f32 %v2562, 1.442695
      %v2858 = vpow.pop %v2857
      %v2859 = vmul.f32 %v2563, 1.442695
      %v2860 = vpow.pop %v2859
      %v2861 = vmul.f32 %v2564, 1.442695
      %v2862 = vpow.pop %v2861
      %v2863 = vmul.f32 %v2565, 1.442695
      %v2864 = vpow.pop %v2863
      %v2865 = vmul.f32 %v2566, 1.442695
      %v2866 = vpow.pop %v2865
      %v2867 = vmul.f32 %v2567, 1.442695
      %v2868 = vpow.pop %v2867
      %v2869 = vmul.f32 %v2568, 1.442695
      %v2870 = vpow.pop %v2869
      %v2871 = vmul.f32 %v2569, 1.442695
      %v2872 = vpow.pop %v2871
      %v2873 = vmul.f32 %v2570, 1.442695
      %v2874 = vpow.pop %v2873
      %v2875 = vmul.f32 %v2571, 1.442695
      %v2876 = vpow.pop %v2875
      %v2877 = vmul.f32 %v2572, 1.442695
      %v2878 = vpow.pop %v2877
      %v2879 = vmul.f32 %v2573, 1.442695
      %v2880 = vpow.pop %v2879
      %v2881 = vmul.f32 %v2574, 1.442695
      %v2882 = vpow.pop %v2881
      %v2883 = vmul.f32 %v2575, 1.442695
      %v2884 = vpow.pop %v2883
      %v2885 = vmul.f32 %v2576, 1.442695
      %v2886 = vpow.pop %v2885
      %v2887 = vmul.f32 %v2577, 1.442695
      %v2888 = vpow.pop %v2887
      %v2889 = vmul.f32 %v2578, 1.442695
      %v2890 = vpow.pop %v2889
      %v2891 = vmul.f32 %v2579, 1.442695
      %v2892 = vpow.pop %v2891
      %v2893 = vmul.f32 %v2580, 1.442695
      %v2894 = vpow.pop %v2893
      %v2895 = vmul.f32 %v2581, 1.442695
      %v2896 = vpow.pop %v2895
      %v2897 = vmul.f32 %v2582, 1.442695
      %v2898 = vpow.pop %v2897
      %v2899 = vmul.f32 %v2583, 1.442695
      %v2900 = vpow.pop %v2899
      %v2901 = vmul.f32 %v2584, 1.442695
      %v2902 = vpow.pop %v2901
      %v2903 = vmul.f32 %v2585, 1.442695
      %v2904 = vpow.pop %v2903
      %v2905 = vmul.f32 %v2586, 1.442695
      %v2906 = vpow.pop %v2905
      %v2907 = vmul.f32 %v2587, 1.442695
      %v2908 = vpow.pop %v2907
      %v2909 = vmul.f32 %v2588, 1.442695
      %v2910 = vpow.pop %v2909
      %v2911 = vmul.f32 %v2589, 1.442695
      %v2912 = vpow.pop %v2911
      %v2913 = vmul.f32 %v2590, 1.442695
      %v2914 = vpow.pop %v2913
      %v2915 = vmul.f32 %v2591, 1.442695
      %v2916 = vpow.pop %v2915
      %v2917 = vmul.f32 %v2592, 1.442695
      %v2918 = vpow.pop %v2917
      %v2919 = vmul.f32 %v2593, 1.442695
      %v2920 = vpow.pop %v2919
      %v2921 = vmul.f32 %v2594, 1.442695
      %v2922 = vpow.pop %v2921
      %v2923 = vmul.f32 %v2595, 1.442695
      %v2924 = vpow.pop %v2923
      %v2925 = vmul.f32 %v2596, 1.442695
      %v2926 = vpow.pop %v2925
      %v2927 = vmul.f32 %v2597, 1.442695
      %v2928 = vpow.pop %v2927
      %v2929 = vmul.f32 %v2598, 1.442695
      %v2930 = vpow.pop %v2929
      %v2931 = vmul.f32 %v2599, 1.442695
      %v2932 = vpow.pop %v2931
      %v2933 = vmul.f32 %v2600, 1.442695
      %v2934 = vpow.pop %v2933
      %v2935 = vmul.f32 %v2601, 1.442695
      %v2936 = vpow.pop %v2935
      %v2937 = vmul.f32 %v2602, 1.442695
      %v2938 = vpow.pop %v2937
      %v2939 = vmul.f32 %v2603, 1.442695
      %v2940 = vpow.pop %v2939
      %v2941 = vmul.f32 %v2604, 1.442695
      %v2942 = vpow.pop %v2941
      %v2943 = vmul.f32 %v2605, 1.442695
      %v2944 = vpow.pop %v2943
      %v2945 = vmul.f32 %v2606, 1.442695
      %v2946 = vpow.pop %v2945
      %v2947 = vmul.f32 %v2607, 1.442695
      %v2948 = vpow.pop %v2947
      %v2949 = vmul.f32 %v2608, 1.442695
      %v2950 = vpow.pop %v2949
      %v2951 = vmul.f32 %v2609, 1.442695
      %v2952 = vpow.pop %v2951
      %v2953 = vmul.f32 %v2610, 1.442695
      %v2954 = vpow.pop %v2953
      %v2955 = vmul.f32 %v2611, 1.442695
      %v2956 = vpow.pop %v2955
      %v2957 = vmul.f32 %v2612, 1.442695
      %v2958 = vpow.pop %v2957
      %v2959 = vmul.f32 %v2613, 1.442695
      %v2960 = vpow.pop %v2959
      %v2961 = vmul.f32 %v2614, 1.442695
      %v2962 = vpow.pop %v2961
      %v2963 = vmul.f32 %v2615, 1.442695
      %v2964 = vpow.pop %v2963
      %v2965 = vmul.f32 %v2616, 1.442695
      %v2966 = vpow.pop %v2965
      %v2967 = vmul.f32 %v2617, 1.442695
      %v2968 = vpow.pop %v2967
      %v2969 = vmul.f32 %v2618, 1.442695
      %v2970 = vpow.pop %v2969
      %v2971 = vmul.f32 %v2619, 1.442695
      %v2972 = vpow.pop %v2971
      %v2973 = vmul.f32 %v2620, 1.442695
      %v2974 = vpow.pop %v2973
      %v2975 = vmul.f32 %v2621, 1.442695
      %v2976 = vpow.pop %v2975
      %v2977 = vmul.f32 %v2622, 1.442695
      %v2978 = vpow.pop %v2977
      %v2979 = vmul.f32 %v2623, 1.442695
      %v2980 = vpow.pop %v2979
      %v2981 = vmul.f32 %v2624, 1.442695
      %v2982 = vpow.pop %v2981
      %v2983 = vmul.f32 %v2625, 1.442695
      %v2984 = vpow.pop %v2983
      %v2985 = vmul.f32 %v2626, 1.442695
      %v2986 = vpow.pop %v2985
      %v2987 = vmul.f32 %v2627, 1.442695
      %v2988 = vpow.pop %v2987
      %v2989 = vmul.f32 %v2628, 1.442695
      %v2990 = vpow.pop %v2989
      %v2991 = vmul.f32 %v2629, 1.442695
      %v2992 = vpow.pop %v2991
      %v2993 = vmul.f32 %v2630, 1.442695
      %v2994 = vpow.pop %v2993
      %v2995 = vmul.f32 %v2631, 1.442695
      %v2996 = vpow.pop %v2995
      %v2997 = vmul.f32 %v2632, 1.442695
      %v2998 = vpow.pop %v2997
      %v2999 = vmul.f32 %v2633, 1.442695
      %v3000 = vpow.pop %v2999
      %v3001 = vmul.f32 %v2634, 1.442695
      %v3002 = vpow.pop %v3001
      %v3003 = vmul.f32 %v2635, 1.442695
      %v3004 = vpow.pop %v3003
      %v3005 = vmul.f32 %v2636, 1.442695
      %v3006 = vpow.pop %v3005
      %v3007 = vmul.f32 %v2637, 1.442695
      %v3008 = vpow.pop %v3007
      %v3009 = vmul.f32 %v2638, 1.442695
      %v3010 = vpow.pop %v3009
      %v3011 = vmul.f32 %v2639, 1.442695
      %v3012 = vpow.pop %v3011
      %v3013 = vmul.f32 %v2640, 1.442695
      %v3014 = vpow.pop %v3013
      %v3015 = vmul.f32 %v2641, 1.442695
      %v3016 = vpow.pop %v3015
      %v3017 = vmul.f32 %v2642, 1.442695
      %v3018 = vpow.pop %v3017
      %v3019 = vmul.f32 %v2643, 1.442695
      %v3020 = vpow.pop %v3019
      %v3021 = vmul.f32 %v2644, 1.442695
      %v3022 = vpow.pop %v3021
      %v3023 = vmul.f32 %v2645, 1.442695
      %v3024 = vpow.pop %v3023
      %v3025 = vmul.f32 %v2646, 1.442695
      %v3026 = vpow.pop %v3025
      %v3027 = vmul.f32 %v2647, 1.442695
      %v3028 = vpow.pop %v3027
      %v3029 = vmul.f32 %v2648, 1.442695
      %v3030 = vpow.pop %v3029
      %v3031 = vmul.f32 %v2649, 1.442695
      %v3032 = vpow.pop %v3031
      %v3033 = vmul.f32 %v2650, 1.442695
      %v3034 = vpow.pop %v3033
      %v3035 = vmul.f32 %v2651, 1.442695
      %v3036 = vpow.pop %v3035
      %v3037 = vmul.f32 %v2652, 1.442695
      %v3038 = vpow.pop %v3037
      %v3039 = vmul.f32 %v2653, 1.442695
      %v3040 = vpow.pop %v3039
      %v3041 = vmul.f32 %v2654, 1.442695
      %v3042 = vpow.pop %v3041
      %v3043 = vmul.f32 %v2655, 1.442695
      %v3044 = vpow.pop %v3043
      %v3045 = vmul.f32 %v2656, 1.442695
      %v3046 = vpow.pop %v3045
      %v3047 = vmul.f32 %v2657, 1.442695
      %v3048 = vpow.pop %v3047
      %v3049 = vmul.f32 %v2658, 1.442695
      %v3050 = vpow.pop %v3049
      %v3051 = vmul.f32 %v2659, 1.442695
      %v3052 = vpow.pop %v3051
      %v3053 = vmul.f32 %v2660, 1.442695
      %v3054 = vpow.pop %v3053
      %v3055 = vmul.f32 %v2661, 1.442695
      %v3056 = vpow.pop %v3055
      %v3057 = vmul.f32 %v2662, 1.442695
      %v3058 = vpow.pop %v3057
      %v3059 = vmul.f32 %v2663, 1.442695
      %v3060 = vpow.pop %v3059
      %v3061 = vmul.f32 %v2664, 1.442695
      %v3062 = vpow.pop %v3061
      %v3063 = vmul.f32 %v2665, 1.442695
      %v3064 = vpow.pop %v3063
      %v3065 = vmul.f32 %v2666, 1.442695
      %v3066 = vpow.pop %v3065
      %v3067 = vmul.f32 %v2667, 1.442695
      %v3068 = vpow.pop %v3067
      %v3069 = vmul.f32 %v2668, 1.442695
      %v3070 = vpow.pop %v3069
      %v3071 = vmul.f32 %v2669, 1.442695
      %v3072 = vpow.pop %v3071
      %v3073 = vmul.f32 %v2670, 1.442695
      %v3074 = vpow.pop %v3073
      %v3075 = vmul.f32 %v2671, 1.442695
      %v3076 = vpow.pop %v3075
      %v3077 = vmul.f32 %v2672, 1.442695
      %v3078 = vpow.pop %v3077
      %v3079 = vmul.f32 %v2673, 1.442695
      %v3080 = vpow.pop %v3079
      %v3081 = vmul.f32 %v2674, 1.442695
      %v3082 = vpow.pop %v3081
      %v3083 = vmul.f32 %v2675, 1.442695
      %v3084 = vpow.pop %v3083
      %v3085 = vmul.f32 %v2676, 1.442695
      %v3086 = vpow.pop %v3085
      %v3087 = vmul.f32 %v2677, 1.442695
      %v3088 = vpow.pop %v3087
      %v3089 = vmul.f32 %v2678, 1.442695
      %v3090 = vpow.pop %v3089
      %v3091 = vmul.f32 %v2679, 1.442695
      %v3092 = vpow.pop %v3091
      %v3093 = vmul.f32 %v2680, 1.442695
      %v3094 = vpow.pop %v3093
      %v3095 = vmul.f32 %v2681, 1.442695
      %v3096 = vpow.pop %v3095
      %v3097 = vmul.f32 %v2682, 1.442695
      %v3098 = vpow.pop %v3097
      %v3099 = vmul.f32 %v2683, 1.442695
      %v3100 = vpow.pop %v3099
      %v3101 = vmul.f32 %v2684, 1.442695
      %v3102 = vpow.pop %v3101
      %v3103 = vmul.f32 %v2685, 1.442695
      %v3104 = vpow.pop %v3103
      %v3105 = vmul.f32 %v2686, 1.442695
      %v3106 = vpow.pop %v3105
      %v3107 = vmul.f32 %v2687, 1.442695
      %v3108 = vpow.pop %v3107
      %v3109 = vmul.f32 %v2688, 1.442695
      %v3110 = vpow.pop %v3109
      %v3111 = vmul.f32 %v2689, 1.442695
      %v3112 = vpow.pop %v3111
      %v3113 = vmul.f32 %v2690, 1.442695
      %v3114 = vpow.pop %v3113
      %v3115 = vmul.f32 %v2691, 1.442695
      %v3116 = vpow.pop %v3115
      %v3117 = vmul.f32 %v2692, 1.442695
      %v3118 = vpow.pop %v3117
      %v3119 = vmul.f32 %v2693, 1.442695
      %v3120 = vpow.pop %v3119
      %v3121 = vmul.f32 %v2694, 1.442695
      %v3122 = vpow.pop %v3121
      %v3123 = vmul.f32 %v2695, 1.442695
      %v3124 = vpow.pop %v3123
      %v3125 = vmul.f32 %v2696, 1.442695
      %v3126 = vpow.pop %v3125
      %v3127 = vmul.f32 %v2697, 1.442695
      %v3128 = vpow.pop %v3127
      %v3129 = vmul.f32 %v2698, 1.442695
      %v3130 = vpow.pop %v3129
      %v3131 = vmul.f32 %v2699, 1.442695
      %v3132 = vpow.pop %v3131
      %v3133 = vmul.f32 %v2700, 1.442695
      %v3134 = vpow.pop %v3133
      %v3135 = vmul.f32 %v2701, 1.442695
      %v3136 = vpow.pop %v3135
      %v3137 = vmul.f32 %v2702, 1.442695
      %v3138 = vpow.pop %v3137
      %v3139 = vmul.f32 %v2703, 1.442695
      %v3140 = vpow.pop %v3139
      %v3141 = vmul.f32 %v2704, 1.442695
      %v3142 = vpow.pop %v3141
      %v3143 = vmul.f32 %v2705, 1.442695
      %v3144 = vpow.pop %v3143
      %v3145 = vmul.f32 %v2706, 1.442695
      %v3146 = vpow.pop %v3145
      %v3147 = vmul.f32 %v2707, 1.442695
      %v3148 = vpow.pop %v3147
      %v3149 = vmul.f32 %v2708, 1.442695
      %v3150 = vpow.pop %v3149
      %v3151 = vmul.f32 %v2709, 1.442695
      %v3152 = vpow.pop %v3151
      %v3153 = vmul.f32 %v2710, 1.442695
      %v3154 = vpow.pop %v3153
      %v3155 = vmul.f32 %v2711, 1.442695
      %v3156 = vpow.pop %v3155
      %v3157 = vmul.f32 %v2712, 1.442695
      %v3158 = vpow.pop %v3157
      %v3159 = vmul.f32 %v2713, 1.442695
      %v3160 = vpow.pop %v3159
      %v3161 = vmul.f32 %v2714, 1.442695
      %v3162 = vpow.pop %v3161
      %v3163 = vmul.f32 %v2715, 1.442695
      %v3164 = vpow.pop %v3163
      %v3165 = vmul.f32 %v2716, 1.442695
      %v3166 = vpow.pop %v3165
      %v3167 = vmul.f32 %v2717, 1.442695
      %v3168 = vpow.pop %v3167
      %v3169 = vmul.f32 %v2718, 1.442695
      %v3170 = vpow.pop %v3169
      %v3171 = vmul.f32 %v2719, 1.442695
      %v3172 = vpow.pop %v3171
      %v3173 = vmul.f32 %v2720, 1.442695
      %v3174 = vpow.pop %v3173
      %v3175 = vmul.f32 %v2721, 1.442695
      %v3176 = vpow.pop %v3175
      %v3177 = vmul.f32 %v2722, 1.442695
      %v3178 = vpow.pop %v3177
      %v3179 = vmul.f32 %v2723, 1.442695
      %v3180 = vpow.pop %v3179
      %v3181 = vmul.f32 %v2724, 1.442695
      %v3182 = vpow.pop %v3181
      %v3183 = vmul.f32 %v2725, 1.442695
      %v3184 = vpow.pop %v3183
      %v3185 = vmul.f32 %v2726, 1.442695
      %v3186 = vpow.pop %v3185
      %v3187 = vmul.f32 %v2727, 1.442695
      %v3188 = vpow.pop %v3187
      %v3189 = vmul.f32 %v2728, 1.442695
      %v3190 = vpow.pop %v3189
      %v3191 = vmul.f32 %v2729, 1.442695
      %v3192 = vpow.pop %v3191
      %v3193 = vmul.f32 %v2730, 1.442695
      %v3194 = vpow.pop %v3193
      %v3195 = vmul.f32 %v2731, 1.442695
      %v3196 = vpow.pop %v3195
      %v3197 = vmul.f32 %v2732, 1.442695
      %v3198 = vpow.pop %v3197
      %v3199 = vmul.f32 %v2733, 1.442695
      %v3200 = vpow.pop %v3199
      %v3201 = vmul.f32 %v2734, 1.442695
      %v3202 = vpow.pop %v3201
      %v3203 = vmul.f32 %v2735, 1.442695
      %v3204 = vpow.pop %v3203
      %v3205 = vmul.f32 %v2736, 1.442695
      %v3206 = vpow.pop %v3205
      %v3207 = vmul.f32 %v2737, 1.442695
      %v3208 = vpow.pop %v3207
      %v3209 = vmul.f32 %v2738, 1.442695
      %v3210 = vpow.pop %v3209
      %v3211 = vmul.f32 %v2739, 1.442695
      %v3212 = vpow.pop %v3211
      %v3213 = vmul.f32 %v2740, 1.442695
      %v3214 = vpow.pop %v3213
      %v3215 = vmul.f32 %v2741, 1.442695
      %v3216 = vpow.pop %v3215
      %v3217 = vmul.f32 %v2742, 1.442695
      %v3218 = vpow.pop %v3217
      %v3219 = vmul.f32 %v2743, 1.442695
      %v3220 = vpow.pop %v3219
      %v3221 = vmul.f32 %v2744, 1.442695
      %v3222 = vpow.pop %v3221
      %v3223 = vmul.f32 %v2745, 1.442695
      %v3224 = vpow.pop %v3223
      %v3225 = vmul.f32 %v2746, 1.442695
      %v3226 = vpow.pop %v3225
      %v3227 = vmul.f32 %v2747, 1.442695
      %v3228 = vpow.pop %v3227
      %v3229 = vmul.f32 %v2748, 1.442695
      %v3230 = vpow.pop %v3229
      %v3231 = vmul.f32 %v2749, 1.442695
      %v3232 = vpow.pop %v3231
      %v3233 = vmul.f32 %v2750, 1.442695
      %v3234 = vpow.pop %v3233
      %v3235 = vmul.f32 %v2751, 1.442695
      %v3236 = vpow.pop %v3235
      %v3237 = vmul.f32 %v2752, 1.442695
      %v3238 = vpow.pop %v3237
      %v3239 = vmul.f32 %v2753, 1.442695
      %v3240 = vpow.pop %v3239
      %v3241 = vmul.f32 %v2754, 1.442695
      %v3242 = vpow.pop %v3241
      %v3243 = vmul.f32 %v2755, 1.442695
      %v3244 = vpow.pop %v3243
      %v3245 = vmul.f32 %v2756, 1.442695
      %v3246 = vpow.pop %v3245
      %v3247 = vmul.f32 %v2757, 1.442695
      %v3248 = vpow.pop %v3247
      %v3249 = vmul.f32 %v2758, 1.442695
      %v3250 = vpow.pop %v3249
      %v3251 = vmul.f32 %v2759, 1.442695
      %v3252 = vpow.pop %v3251
      %v3253 = vmul.f32 %v2760, 1.442695
      %v3254 = vpow.pop %v3253
      %v3255 = vmul.f32 %v2761, 1.442695
      %v3256 = vpow.pop %v3255
      %v3257 = vmul.f32 %v2762, 1.442695
      %v3258 = vpow.pop %v3257
      %v3259 = vmul.f32 %v2763, 1.442695
      %v3260 = vpow.pop %v3259
      %v3261 = vmul.f32 %v2764, 1.442695
      %v3262 = vpow.pop %v3261
      %v3263 = vmul.f32 %v2765, 1.442695
      %v3264 = vpow.pop %v3263
      %v3265 = vmul.f32 %v2766, 1.442695
      %v3266 = vpow.pop %v3265
      %v3267 = vmul.f32 %v2767, 1.442695
      %v3268 = vpow.pop %v3267
      %v3269 = vmul.f32 %v2768, 1.442695
      %v3270 = vpow.pop %v3269
      %v3271 = vmul.f32 %v2769, 1.442695
      %v3272 = vpow.pop %v3271
      %v3273 = vmul.f32 %v2770, 1.442695
      %v3274 = vpow.pop %v3273
      %v3275 = vmul.f32 %v2771, 1.442695
      %v3276 = vpow.pop %v3275
      %v3277 = vmul.f32 %v2772, 1.442695
      %v3278 = vpow.pop %v3277
      %v3279 = vmul.f32 %v2773, 1.442695
      %v3280 = vpow.pop %v3279
      %v3281 = vmul.f32 %v2774, 1.442695
      %v3282 = vpow.pop %v3281
      %v3283 = vmul.f32 %v2775, 1.442695
      %v3284 = vpow.pop %v3283
      %v3285 = vmul.f32 %v2776, 1.442695
      %v3286 = vpow.pop %v3285
      %v3287 = vmul.f32 %v2777, 1.442695
      %v3288 = vpow.pop %v3287
      %v3289 = vmul.f32 %v2778, 1.442695
      %v3290 = vpow.pop %v3289
      %v3291 = vadd.f32 %v2780, %v2782
      %3292 = vadd.xlane.f32.xlu0 %v3291
      %v3293 = vpop.xlane.xlu0 %3292
      %v3294 = vadd.f32 %v2784, %v2786
      %3295 = vadd.xlane.f32.xlu0 %v3294
      %v3296 = vpop.xlane.xlu0 %3295
      %v3297 = vadd.f32 %v2788, %v2790
      %3298 = vadd.xlane.f32.xlu0 %v3297
      %v3299 = vpop.xlane.xlu0 %3298
      %v3300 = vadd.f32 %v2792, %v2794
      %3301 = vadd.xlane.f32.xlu0 %v3300
      %v3302 = vpop.xlane.xlu0 %3301
      %v3303 = vadd.f32 %v2796, %v2798
      %3304 = vadd.xlane.f32.xlu0 %v3303
      %v3305 = vpop.xlane.xlu0 %3304
      %v3306 = vadd.f32 %v2800, %v2802
      %3307 = vadd.xlane.f32.xlu0 %v3306
      %v3308 = vpop.xlane.xlu0 %3307
      %v3309 = vadd.f32 %v2804, %v2806
      %3310 = vadd.xlane.f32.xlu0 %v3309
      %v3311 = vpop.xlane.xlu0 %3310
      %v3312 = vadd.f32 %v2808, %v2810
      %3313 = vadd.xlane.f32.xlu0 %v3312
      %v3314 = vpop.xlane.xlu0 %3313
      %v3315 = vadd.f32 %v2812, %v2814
      %3316 = vadd.xlane.f32.xlu0 %v3315
      %v3317 = vpop.xlane.xlu0 %3316
      %v3318 = vadd.f32 %v2816, %v2818
      %3319 = vadd.xlane.f32.xlu0 %v3318
      %v3320 = vpop.xlane.xlu0 %3319
      %v3321 = vadd.f32 %v2820, %v2822
      %3322 = vadd.xlane.f32.xlu0 %v3321
      %v3323 = vpop.xlane.xlu0 %3322
      %v3324 = vadd.f32 %v2824, %v2826
      %3325 = vadd.xlane.f32.xlu0 %v3324
      %v3326 = vpop.xlane.xlu0 %3325
      %v3327 = vadd.f32 %v2828, %v2830
      %3328 = vadd.xlane.f32.xlu0 %v3327
      %v3329 = vpop.xlane.xlu0 %3328
      %v3330 = vadd.f32 %v2832, %v2834
      %3331 = vadd.xlane.f32.xlu0 %v3330
      %v3332 = vpop.xlane.xlu0 %3331
      %v3333 = vadd.f32 %v2836, %v2838
      %3334 = vadd.xlane.f32.xlu0 %v3333
      %v3335 = vpop.xlane.xlu0 %3334
      %v3336 = vadd.f32 %v2840, %v2842
      %3337 = vadd.xlane.f32.xlu0 %v3336
      %v3338 = vpop.xlane.xlu0 %3337
      %v3339 = vadd.f32 %v2844, %v2846
      %3340 = vadd.xlane.f32.xlu0 %v3339
      %v3341 = vpop.xlane.xlu0 %3340
      %v3342 = vadd.f32 %v2848, %v2850
      %3343 = vadd.xlane.f32.xlu0 %v3342
      %v3344 = vpop.xlane.xlu0 %3343
      %v3345 = vadd.f32 %v2852, %v2854
      %3346 = vadd.xlane.f32.xlu0 %v3345
      %v3347 = vpop.xlane.xlu0 %3346
      %v3348 = vadd.f32 %v2856, %v2858
      %3349 = vadd.xlane.f32.xlu0 %v3348
      %v3350 = vpop.xlane.xlu0 %3349
      %v3351 = vadd.f32 %v2860, %v2862
      %3352 = vadd.xlane.f32.xlu0 %v3351
      %v3353 = vpop.xlane.xlu0 %3352
      %v3354 = vadd.f32 %v2864, %v2866
      %3355 = vadd.xlane.f32.xlu0 %v3354
      %v3356 = vpop.xlane.xlu0 %3355
      %v3357 = vadd.f32 %v2868, %v2870
      %3358 = vadd.xlane.f32.xlu0 %v3357
      %v3359 = vpop.xlane.xlu0 %3358
      %v3360 = vadd.f32 %v2872, %v2874
      %3361 = vadd.xlane.f32.xlu0 %v3360
      %v3362 = vpop.xlane.xlu0 %3361
      %v3363 = vadd.f32 %v2876, %v2878
      %3364 = vadd.xlane.f32.xlu0 %v3363
      %v3365 = vpop.xlane.xlu0 %3364
      %v3366 = vadd.f32 %v2880, %v2882
      %3367 = vadd.xlane.f32.xlu0 %v3366
      %v3368 = vpop.xlane.xlu0 %3367
      %v3369 = vadd.f32 %v2884, %v2886
      %3370 = vadd.xlane.f32.xlu0 %v3369
      %v3371 = vpop.xlane.xlu0 %3370
      %v3372 = vadd.f32 %v2888, %v2890
      %3373 = vadd.xlane.f32.xlu0 %v3372
      %v3374 = vpop.xlane.xlu0 %3373
      %v3375 = vadd.f32 %v2892, %v2894
      %3376 = vadd.xlane.f32.xlu0 %v3375
      %v3377 = vpop.xlane.xlu0 %3376
      %v3378 = vadd.f32 %v2896, %v2898
      %3379 = vadd.xlane.f32.xlu0 %v3378
      %v3380 = vpop.xlane.xlu0 %3379
      %v3381 = vadd.f32 %v2900, %v2902
      %3382 = vadd.xlane.f32.xlu0 %v3381
      %v3383 = vpop.xlane.xlu0 %3382
      %v3384 = vadd.f32 %v2904, %v2906
      %3385 = vadd.xlane.f32.xlu0 %v3384
      %v3386 = vpop.xlane.xlu0 %3385
      %v3387 = vadd.f32 %v2908, %v2910
      %3388 = vadd.xlane.f32.xlu0 %v3387
      %v3389 = vpop.xlane.xlu0 %3388
      %v3390 = vadd.f32 %v2912, %v2914
      %3391 = vadd.xlane.f32.xlu0 %v3390
      %v3392 = vpop.xlane.xlu0 %3391
      %v3393 = vadd.f32 %v2916, %v2918
      %3394 = vadd.xlane.f32.xlu0 %v3393
      %v3395 = vpop.xlane.xlu0 %3394
      %v3396 = vadd.f32 %v2920, %v2922
      %3397 = vadd.xlane.f32.xlu0 %v3396
      %v3398 = vpop.xlane.xlu0 %3397
      %v3399 = vadd.f32 %v2924, %v2926
      %3400 = vadd.xlane.f32.xlu0 %v3399
      %v3401 = vpop.xlane.xlu0 %3400
      %v3402 = vadd.f32 %v2928, %v2930
      %3403 = vadd.xlane.f32.xlu0 %v3402
      %v3404 = vpop.xlane.xlu0 %3403
      %v3405 = vadd.f32 %v2932, %v2934
      %3406 = vadd.xlane.f32.xlu0 %v3405
      %v3407 = vpop.xlane.xlu0 %3406
      %v3408 = vadd.f32 %v2936, %v2938
      %3409 = vadd.xlane.f32.xlu0 %v3408
      %v3410 = vpop.xlane.xlu0 %3409
      %v3411 = vadd.f32 %v2940, %v2942
      %3412 = vadd.xlane.f32.xlu0 %v3411
      %v3413 = vpop.xlane.xlu0 %3412
      %v3414 = vadd.f32 %v2944, %v2946
      %3415 = vadd.xlane.f32.xlu0 %v3414
      %v3416 = vpop.xlane.xlu0 %3415
      %v3417 = vadd.f32 %v2948, %v2950
      %3418 = vadd.xlane.f32.xlu0 %v3417
      %v3419 = vpop.xlane.xlu0 %3418
      %v3420 = vadd.f32 %v2952, %v2954
      %3421 = vadd.xlane.f32.xlu0 %v3420
      %v3422 = vpop.xlane.xlu0 %3421
      %v3423 = vadd.f32 %v2956, %v2958
      %3424 = vadd.xlane.f32.xlu0 %v3423
      %v3425 = vpop.xlane.xlu0 %3424
      %v3426 = vadd.f32 %v2960, %v2962
      %3427 = vadd.xlane.f32.xlu0 %v3426
      %v3428 = vpop.xlane.xlu0 %3427
      %v3429 = vadd.f32 %v2964, %v2966
      %3430 = vadd.xlane.f32.xlu0 %v3429
      %v3431 = vpop.xlane.xlu0 %3430
      %v3432 = vadd.f32 %v2968, %v2970
      %3433 = vadd.xlane.f32.xlu0 %v3432
      %v3434 = vpop.xlane.xlu0 %3433
      %v3435 = vadd.f32 %v2972, %v2974
      %3436 = vadd.xlane.f32.xlu0 %v3435
      %v3437 = vpop.xlane.xlu0 %3436
      %v3438 = vadd.f32 %v2976, %v2978
      %3439 = vadd.xlane.f32.xlu0 %v3438
      %v3440 = vpop.xlane.xlu0 %3439
      %v3441 = vadd.f32 %v2980, %v2982
      %3442 = vadd.xlane.f32.xlu0 %v3441
      %v3443 = vpop.xlane.xlu0 %3442
      %v3444 = vadd.f32 %v2984, %v2986
      %3445 = vadd.xlane.f32.xlu0 %v3444
      %v3446 = vpop.xlane.xlu0 %3445
      %v3447 = vadd.f32 %v2988, %v2990
      %3448 = vadd.xlane.f32.xlu0 %v3447
      %v3449 = vpop.xlane.xlu0 %3448
      %v3450 = vadd.f32 %v2992, %v2994
      %3451 = vadd.xlane.f32.xlu0 %v3450
      %v3452 = vpop.xlane.xlu0 %3451
      %v3453 = vadd.f32 %v2996, %v2998
      %3454 = vadd.xlane.f32.xlu0 %v3453
      %v3455 = vpop.xlane.xlu0 %3454
      %v3456 = vadd.f32 %v3000, %v3002
      %3457 = vadd.xlane.f32.xlu0 %v3456
      %v3458 = vpop.xlane.xlu0 %3457
      %v3459 = vadd.f32 %v3004, %v3006
      %3460 = vadd.xlane.f32.xlu0 %v3459
      %v3461 = vpop.xlane.xlu0 %3460
      %v3462 = vadd.f32 %v3008, %v3010
      %3463 = vadd.xlane.f32.xlu0 %v3462
      %v3464 = vpop.xlane.xlu0 %3463
      %v3465 = vadd.f32 %v3012, %v3014
      %3466 = vadd.xlane.f32.xlu0 %v3465
      %v3467 = vpop.xlane.xlu0 %3466
      %v3468 = vadd.f32 %v3016, %v3018
      %3469 = vadd.xlane.f32.xlu0 %v3468
      %v3470 = vpop.xlane.xlu0 %3469
      %v3471 = vadd.f32 %v3020, %v3022
      %3472 = vadd.xlane.f32.xlu0 %v3471
      %v3473 = vpop.xlane.xlu0 %3472
      %v3474 = vadd.f32 %v3024, %v3026
      %3475 = vadd.xlane.f32.xlu0 %v3474
      %v3476 = vpop.xlane.xlu0 %3475
      %v3477 = vadd.f32 %v3028, %v3030
      %3478 = vadd.xlane.f32.xlu0 %v3477
      %v3479 = vpop.xlane.xlu0 %3478
      %v3480 = vadd.f32 %v3032, %v3034
      %3481 = vadd.xlane.f32.xlu0 %v3480
      %v3482 = vpop.xlane.xlu0 %3481
      %v3483 = vadd.f32 %v3036, %v3038
      %3484 = vadd.xlane.f32.xlu0 %v3483
      %v3485 = vpop.xlane.xlu0 %3484
      %v3486 = vadd.f32 %v3040, %v3042
      %3487 = vadd.xlane.f32.xlu0 %v3486
      %v3488 = vpop.xlane.xlu0 %3487
      %v3489 = vadd.f32 %v3044, %v3046
      %3490 = vadd.xlane.f32.xlu0 %v3489
      %v3491 = vpop.xlane.xlu0 %3490
      %v3492 = vadd.f32 %v3048, %v3050
      %3493 = vadd.xlane.f32.xlu0 %v3492
      %v3494 = vpop.xlane.xlu0 %3493
      %v3495 = vadd.f32 %v3052, %v3054
      %3496 = vadd.xlane.f32.xlu0 %v3495
      %v3497 = vpop.xlane.xlu0 %3496
      %v3498 = vadd.f32 %v3056, %v3058
      %3499 = vadd.xlane.f32.xlu0 %v3498
      %v3500 = vpop.xlane.xlu0 %3499
      %v3501 = vadd.f32 %v3060, %v3062
      %3502 = vadd.xlane.f32.xlu0 %v3501
      %v3503 = vpop.xlane.xlu0 %3502
      %v3504 = vadd.f32 %v3064, %v3066
      %3505 = vadd.xlane.f32.xlu0 %v3504
      %v3506 = vpop.xlane.xlu0 %3505
      %v3507 = vadd.f32 %v3068, %v3070
      %3508 = vadd.xlane.f32.xlu0 %v3507
      %v3509 = vpop.xlane.xlu0 %3508
      %v3510 = vadd.f32 %v3072, %v3074
      %3511 = vadd.xlane.f32.xlu0 %v3510
      %v3512 = vpop.xlane.xlu0 %3511
      %v3513 = vadd.f32 %v3076, %v3078
      %3514 = vadd.xlane.f32.xlu0 %v3513
      %v3515 = vpop.xlane.xlu0 %3514
      %v3516 = vadd.f32 %v3080, %v3082
      %3517 = vadd.xlane.f32.xlu0 %v3516
      %v3518 = vpop.xlane.xlu0 %3517
      %v3519 = vadd.f32 %v3084, %v3086
      %3520 = vadd.xlane.f32.xlu0 %v3519
      %v3521 = vpop.xlane.xlu0 %3520
      %v3522 = vadd.f32 %v3088, %v3090
      %3523 = vadd.xlane.f32.xlu0 %v3522
      %v3524 = vpop.xlane.xlu0 %3523
      %v3525 = vadd.f32 %v3092, %v3094
      %3526 = vadd.xlane.f32.xlu0 %v3525
      %v3527 = vpop.xlane.xlu0 %3526
      %v3528 = vadd.f32 %v3096, %v3098
      %3529 = vadd.xlane.f32.xlu0 %v3528
      %v3530 = vpop.xlane.xlu0 %3529
      %v3531 = vadd.f32 %v3100, %v3102
      %3532 = vadd.xlane.f32.xlu0 %v3531
      %v3533 = vpop.xlane.xlu0 %3532
      %v3534 = vadd.f32 %v3104, %v3106
      %3535 = vadd.xlane.f32.xlu0 %v3534
      %v3536 = vpop.xlane.xlu0 %3535
      %v3537 = vadd.f32 %v3108, %v3110
      %3538 = vadd.xlane.f32.xlu0 %v3537
      %v3539 = vpop.xlane.xlu0 %3538
      %v3540 = vadd.f32 %v3112, %v3114
      %3541 = vadd.xlane.f32.xlu0 %v3540
      %v3542 = vpop.xlane.xlu0 %3541
      %v3543 = vadd.f32 %v3116, %v3118
      %3544 = vadd.xlane.f32.xlu0 %v3543
      %v3545 = vpop.xlane.xlu0 %3544
      %v3546 = vadd.f32 %v3120, %v3122
      %3547 = vadd.xlane.f32.xlu0 %v3546
      %v3548 = vpop.xlane.xlu0 %3547
      %v3549 = vadd.f32 %v3124, %v3126
      %3550 = vadd.xlane.f32.xlu0 %v3549
      %v3551 = vpop.xlane.xlu0 %3550
      %v3552 = vadd.f32 %v3128, %v3130
      %3553 = vadd.xlane.f32.xlu0 %v3552
      %v3554 = vpop.xlane.xlu0 %3553
      %v3555 = vadd.f32 %v3132, %v3134
      %3556 = vadd.xlane.f32.xlu0 %v3555
      %v3557 = vpop.xlane.xlu0 %3556
      %v3558 = vadd.f32 %v3136, %v3138
      %3559 = vadd.xlane.f32.xlu0 %v3558
      %v3560 = vpop.xlane.xlu0 %3559
      %v3561 = vadd.f32 %v3140, %v3142
      %3562 = vadd.xlane.f32.xlu0 %v3561
      %v3563 = vpop.xlane.xlu0 %3562
      %v3564 = vadd.f32 %v3144, %v3146
      %3565 = vadd.xlane.f32.xlu0 %v3564
      %v3566 = vpop.xlane.xlu0 %3565
      %v3567 = vadd.f32 %v3148, %v3150
      %3568 = vadd.xlane.f32.xlu0 %v3567
      %v3569 = vpop.xlane.xlu0 %3568
      %v3570 = vadd.f32 %v3152, %v3154
      %3571 = vadd.xlane.f32.xlu0 %v3570
      %v3572 = vpop.xlane.xlu0 %3571
      %v3573 = vadd.f32 %v3156, %v3158
      %3574 = vadd.xlane.f32.xlu0 %v3573
      %v3575 = vpop.xlane.xlu0 %3574
      %v3576 = vadd.f32 %v3160, %v3162
      %3577 = vadd.xlane.f32.xlu0 %v3576
      %v3578 = vpop.xlane.xlu0 %3577
      %v3579 = vadd.f32 %v3164, %v3166
      %3580 = vadd.xlane.f32.xlu0 %v3579
      %v3581 = vpop.xlane.xlu0 %3580
      %v3582 = vadd.f32 %v3168, %v3170
      %3583 = vadd.xlane.f32.xlu0 %v3582
      %v3584 = vpop.xlane.xlu0 %3583
      %v3585 = vadd.f32 %v3172, %v3174
      %3586 = vadd.xlane.f32.xlu0 %v3585
      %v3587 = vpop.xlane.xlu0 %3586
      %v3588 = vadd.f32 %v3176, %v3178
      %3589 = vadd.xlane.f32.xlu0 %v3588
      %v3590 = vpop.xlane.xlu0 %3589
      %v3591 = vadd.f32 %v3180, %v3182
      %3592 = vadd.xlane.f32.xlu0 %v3591
      %v3593 = vpop.xlane.xlu0 %3592
      %v3594 = vadd.f32 %v3184, %v3186
      %3595 = vadd.xlane.f32.xlu0 %v3594
      %v3596 = vpop.xlane.xlu0 %3595
      %v3597 = vadd.f32 %v3188, %v3190
      %3598 = vadd.xlane.f32.xlu0 %v3597
      %v3599 = vpop.xlane.xlu0 %3598
      %v3600 = vadd.f32 %v3192, %v3194
      %3601 = vadd.xlane.f32.xlu0 %v3600
      %v3602 = vpop.xlane.xlu0 %3601
      %v3603 = vadd.f32 %v3196, %v3198
      %3604 = vadd.xlane.f32.xlu0 %v3603
      %v3605 = vpop.xlane.xlu0 %3604
      %v3606 = vadd.f32 %v3200, %v3202
      %3607 = vadd.xlane.f32.xlu0 %v3606
      %v3608 = vpop.xlane.xlu0 %3607
      %v3609 = vadd.f32 %v3204, %v3206
      %3610 = vadd.xlane.f32.xlu0 %v3609
      %v3611 = vpop.xlane.xlu0 %3610
      %v3612 = vadd.f32 %v3208, %v3210
      %3613 = vadd.xlane.f32.xlu0 %v3612
      %v3614 = vpop.xlane.xlu0 %3613
      %v3615 = vadd.f32 %v3212, %v3214
      %3616 = vadd.xlane.f32.xlu0 %v3615
      %v3617 = vpop.xlane.xlu0 %3616
      %v3618 = vadd.f32 %v3216, %v3218
      %3619 = vadd.xlane.f32.xlu0 %v3618
      %v3620 = vpop.xlane.xlu0 %3619
      %v3621 = vadd.f32 %v3220, %v3222
      %3622 = vadd.xlane.f32.xlu0 %v3621
      %v3623 = vpop.xlane.xlu0 %3622
      %v3624 = vadd.f32 %v3224, %v3226
      %3625 = vadd.xlane.f32.xlu0 %v3624
      %v3626 = vpop.xlane.xlu0 %3625
      %v3627 = vadd.f32 %v3228, %v3230
      %3628 = vadd.xlane.f32.xlu0 %v3627
      %v3629 = vpop.xlane.xlu0 %3628
      %v3630 = vadd.f32 %v3232, %v3234
      %3631 = vadd.xlane.f32.xlu0 %v3630
      %v3632 = vpop.xlane.xlu0 %3631
      %v3633 = vadd.f32 %v3236, %v3238
      %3634 = vadd.xlane.f32.xlu0 %v3633
      %v3635 = vpop.xlane.xlu0 %3634
      %v3636 = vadd.f32 %v3240, %v3242
      %3637 = vadd.xlane.f32.xlu0 %v3636
      %v3638 = vpop.xlane.xlu0 %3637
      %v3639 = vadd.f32 %v3244, %v3246
      %3640 = vadd.xlane.f32.xlu0 %v3639
      %v3641 = vpop.xlane.xlu0 %3640
      %v3642 = vadd.f32 %v3248, %v3250
      %3643 = vadd.xlane.f32.xlu0 %v3642
      %v3644 = vpop.xlane.xlu0 %3643
      %v3645 = vadd.f32 %v3252, %v3254
      %3646 = vadd.xlane.f32.xlu0 %v3645
      %v3647 = vpop.xlane.xlu0 %3646
      %v3648 = vadd.f32 %v3256, %v3258
      %3649 = vadd.xlane.f32.xlu0 %v3648
      %v3650 = vpop.xlane.xlu0 %3649
      %v3651 = vadd.f32 %v3260, %v3262
      %3652 = vadd.xlane.f32.xlu0 %v3651
      %v3653 = vpop.xlane.xlu0 %3652
      %v3654 = vadd.f32 %v3264, %v3266
      %3655 = vadd.xlane.f32.xlu0 %v3654
      %v3656 = vpop.xlane.xlu0 %3655
      %v3657 = vadd.f32 %v3268, %v3270
      %3658 = vadd.xlane.f32.xlu0 %v3657
      %v3659 = vpop.xlane.xlu0 %3658
      %v3660 = vadd.f32 %v3272, %v3274
      %3661 = vadd.xlane.f32.xlu0 %v3660
      %v3662 = vpop.xlane.xlu0 %3661
      %v3663 = vadd.f32 %v3276, %v3278
      %3664 = vadd.xlane.f32.xlu0 %v3663
      %v3665 = vpop.xlane.xlu0 %3664
      %v3666 = vadd.f32 %v3280, %v3282
      %3667 = vadd.xlane.f32.xlu0 %v3666
      %v3668 = vpop.xlane.xlu0 %3667
      %v3669 = vadd.f32 %v3284, %v3286
      %3670 = vadd.xlane.f32.xlu0 %v3669
      %v3671 = vpop.xlane.xlu0 %3670
      %v3672 = vadd.f32 %v3288, %v3290
      %3673 = vadd.xlane.f32.xlu0 %v3672
      %v3674 = vpop.xlane.xlu0 %3673
      %v3675 = vpack.c.bf16 %v2784, %v2780
      %v3676 = vpack.c.bf16 %v2786, %v2782
      %v3677 = vpack.c.bf16 %v2792, %v2788
      %v3678 = vpack.c.bf16 %v2794, %v2790
      %v3679 = vpack.c.bf16 %v2800, %v2796
      %v3680 = vpack.c.bf16 %v2802, %v2798
      %v3681 = vpack.c.bf16 %v2808, %v2804
      %v3682 = vpack.c.bf16 %v2810, %v2806
      %v3683 = vpack.c.bf16 %v2816, %v2812
      %v3684 = vpack.c.bf16 %v2818, %v2814
      %v3685 = vpack.c.bf16 %v2824, %v2820
      %v3686 = vpack.c.bf16 %v2826, %v2822
      %v3687 = vpack.c.bf16 %v2832, %v2828
      %v3688 = vpack.c.bf16 %v2834, %v2830
      %v3689 = vpack.c.bf16 %v2840, %v2836
      %v3690 = vpack.c.bf16 %v2842, %v2838
      %v3691 = vpack.c.bf16 %v2848, %v2844
      %v3692 = vpack.c.bf16 %v2850, %v2846
      %v3693 = vpack.c.bf16 %v2856, %v2852
      %v3694 = vpack.c.bf16 %v2858, %v2854
      %v3695 = vpack.c.bf16 %v2864, %v2860
      %v3696 = vpack.c.bf16 %v2866, %v2862
      %v3697 = vpack.c.bf16 %v2872, %v2868
      %v3698 = vpack.c.bf16 %v2874, %v2870
      %v3699 = vpack.c.bf16 %v2880, %v2876
      %v3700 = vpack.c.bf16 %v2882, %v2878
      %v3701 = vpack.c.bf16 %v2888, %v2884
      %v3702 = vpack.c.bf16 %v2890, %v2886
      %v3703 = vpack.c.bf16 %v2896, %v2892
      %v3704 = vpack.c.bf16 %v2898, %v2894
      %v3705 = vpack.c.bf16 %v2904, %v2900
      %v3706 = vpack.c.bf16 %v2906, %v2902
      %v3707 = vpack.c.bf16 %v2912, %v2908
      %v3708 = vpack.c.bf16 %v2914, %v2910
      %v3709 = vpack.c.bf16 %v2920, %v2916
      %v3710 = vpack.c.bf16 %v2922, %v2918
      %v3711 = vpack.c.bf16 %v2928, %v2924
      %v3712 = vpack.c.bf16 %v2930, %v2926
      %v3713 = vpack.c.bf16 %v2936, %v2932
      %v3714 = vpack.c.bf16 %v2938, %v2934
      %v3715 = vpack.c.bf16 %v2944, %v2940
      %v3716 = vpack.c.bf16 %v2946, %v2942
      %v3717 = vpack.c.bf16 %v2952, %v2948
      %v3718 = vpack.c.bf16 %v2954, %v2950
      %v3719 = vpack.c.bf16 %v2960, %v2956
      %v3720 = vpack.c.bf16 %v2962, %v2958
      %v3721 = vpack.c.bf16 %v2968, %v2964
      %v3722 = vpack.c.bf16 %v2970, %v2966
      %v3723 = vpack.c.bf16 %v2976, %v2972
      %v3724 = vpack.c.bf16 %v2978, %v2974
      %v3725 = vpack.c.bf16 %v2984, %v2980
      %v3726 = vpack.c.bf16 %v2986, %v2982
      %v3727 = vpack.c.bf16 %v2992, %v2988
      %v3728 = vpack.c.bf16 %v2994, %v2990
      %v3729 = vpack.c.bf16 %v3000, %v2996
      %v3730 = vpack.c.bf16 %v3002, %v2998
      %v3731 = vpack.c.bf16 %v3008, %v3004
      %v3732 = vpack.c.bf16 %v3010, %v3006
      %v3733 = vpack.c.bf16 %v3016, %v3012
      %v3734 = vpack.c.bf16 %v3018, %v3014
      %v3735 = vpack.c.bf16 %v3024, %v3020
      %v3736 = vpack.c.bf16 %v3026, %v3022
      %v3737 = vpack.c.bf16 %v3032, %v3028
      %v3738 = vpack.c.bf16 %v3034, %v3030
      %v3739 = vpack.c.bf16 %v3040, %v3036
      %v3740 = vpack.c.bf16 %v3042, %v3038
      %v3741 = vpack.c.bf16 %v3048, %v3044
      %v3742 = vpack.c.bf16 %v3050, %v3046
      %v3743 = vpack.c.bf16 %v3056, %v3052
      %v3744 = vpack.c.bf16 %v3058, %v3054
      %v3745 = vpack.c.bf16 %v3064, %v3060
      %v3746 = vpack.c.bf16 %v3066, %v3062
      %v3747 = vpack.c.bf16 %v3072, %v3068
      %v3748 = vpack.c.bf16 %v3074, %v3070
      %v3749 = vpack.c.bf16 %v3080, %v3076
      %v3750 = vpack.c.bf16 %v3082, %v3078
      %v3751 = vpack.c.bf16 %v3088, %v3084
      %v3752 = vpack.c.bf16 %v3090, %v3086
      %v3753 = vpack.c.bf16 %v3096, %v3092
      %v3754 = vpack.c.bf16 %v3098, %v3094
      %v3755 = vpack.c.bf16 %v3104, %v3100
      %v3756 = vpack.c.bf16 %v3106, %v3102
      %v3757 = vpack.c.bf16 %v3112, %v3108
      %v3758 = vpack.c.bf16 %v3114, %v3110
      %v3759 = vpack.c.bf16 %v3120, %v3116
      %v3760 = vpack.c.bf16 %v3122, %v3118
      %v3761 = vpack.c.bf16 %v3128, %v3124
      %v3762 = vpack.c.bf16 %v3130, %v3126
      %v3763 = vpack.c.bf16 %v3136, %v3132
      %v3764 = vpack.c.bf16 %v3138, %v3134
      %v3765 = vpack.c.bf16 %v3144, %v3140
      %v3766 = vpack.c.bf16 %v3146, %v3142
      %v3767 = vpack.c.bf16 %v3152, %v3148
      %v3768 = vpack.c.bf16 %v3154, %v3150
      %v3769 = vpack.c.bf16 %v3160, %v3156
      %v3770 = vpack.c.bf16 %v3162, %v3158
      %v3771 = vpack.c.bf16 %v3168, %v3164
      %v3772 = vpack.c.bf16 %v3170, %v3166
      %v3773 = vpack.c.bf16 %v3176, %v3172
      %v3774 = vpack.c.bf16 %v3178, %v3174
      %v3775 = vpack.c.bf16 %v3184, %v3180
      %v3776 = vpack.c.bf16 %v3186, %v3182
      %v3777 = vpack.c.bf16 %v3192, %v3188
      %v3778 = vpack.c.bf16 %v3194, %v3190
      %v3779 = vpack.c.bf16 %v3200, %v3196
      %v3780 = vpack.c.bf16 %v3202, %v3198
      %v3781 = vpack.c.bf16 %v3208, %v3204
      %v3782 = vpack.c.bf16 %v3210, %v3206
      %v3783 = vpack.c.bf16 %v3216, %v3212
      %v3784 = vpack.c.bf16 %v3218, %v3214
      %v3785 = vpack.c.bf16 %v3224, %v3220
      %v3786 = vpack.c.bf16 %v3226, %v3222
      %v3787 = vpack.c.bf16 %v3232, %v3228
      %v3788 = vpack.c.bf16 %v3234, %v3230
      %v3789 = vpack.c.bf16 %v3240, %v3236
      %v3790 = vpack.c.bf16 %v3242, %v3238
      %v3791 = vpack.c.bf16 %v3248, %v3244
      %v3792 = vpack.c.bf16 %v3250, %v3246
      %v3793 = vpack.c.bf16 %v3256, %v3252
      %v3794 = vpack.c.bf16 %v3258, %v3254
      %v3795 = vpack.c.bf16 %v3264, %v3260
      %v3796 = vpack.c.bf16 %v3266, %v3262
      %v3797 = vpack.c.bf16 %v3272, %v3268
      %v3798 = vpack.c.bf16 %v3274, %v3270
      %v3799 = vpack.c.bf16 %v3280, %v3276
      %v3800 = vpack.c.bf16 %v3282, %v3278
      %v3801 = vpack.c.bf16 %v3288, %v3284
      %v3802 = vpack.c.bf16 %v3290, %v3286
      %3803 = vmatprep.subr.bf16.mxu0 %v3690
      %3804 = vmatpush1.bf16.xpose.msra.mxu0 %v3689
      %3805 = vmatprep.subr.bf16.mxu0 %v3688
      %3806 = vmatpush1.bf16.xpose.msra.mxu0 %v3687
      %3807 = vmatprep.subr.bf16.mxu0 %v3686
      %3808 = vmatpush1.bf16.xpose.msra.mxu0 %v3685
      %3809 = vmatprep.subr.bf16.mxu0 %v3684
      %3810 = vmatpush1.bf16.xpose.msra.mxu0 %v3683
      %3811 = vmatprep.subr.bf16.mxu0 %v3682
      %3812 = vmatpush1.bf16.xpose.msra.mxu0 %v3681
      %3813 = vmatprep.subr.bf16.mxu0 %v3680
      %3814 = vmatpush1.bf16.xpose.msra.mxu0 %v3679
      %3815 = vmatprep.subr.bf16.mxu0 %v3678
      %3816 = vmatpush1.bf16.xpose.msra.mxu0 %v3677
      %3817 = vmatprep.subr.bf16.mxu0 %v3676
      %3818 = vmatpush1.bf16.xpose.msra.mxu0 %v3675
      %3819 = vmatprep.subr.bf16.mxu0 %v3706
      %3820 = vmatpush2.bf16.xpose.msra.mxu0 %v3705
      %3821 = vmatprep.subr.bf16.mxu0 %v3704
      %3822 = vmatpush2.bf16.xpose.msra.mxu0 %v3703
      %3823 = vmatprep.subr.bf16.mxu0 %v3702
      %3824 = vmatpush2.bf16.xpose.msra.mxu0 %v3701
      %3825 = vmatprep.subr.bf16.mxu0 %v3700
      %3826 = vmatpush2.bf16.xpose.msra.mxu0 %v3699
      %3827 = vmatprep.subr.bf16.mxu0 %v3698
      %3828 = vmatpush2.bf16.xpose.msra.mxu0 %v3697
      %3829 = vmatprep.subr.bf16.mxu0 %v3696
      %3830 = vmatpush2.bf16.xpose.msra.mxu0 %v3695
      %3831 = vmatprep.subr.bf16.mxu0 %v3694
      %3832 = vmatpush2.bf16.xpose.msra.mxu0 %v3693
      %3833 = vmatprep.subr.bf16.mxu0 %v3692
      %3834 = vmatpush2.bf16.xpose.msra.mxu0 %v3691
      %3835 = vmatprep.mubr.bf16.mxu0 %v1142
      %3836 = vmatmul.mubr.bf16.gmra.mxu0 %v1141
      %v3837 = vpop.f32.mrf.mxu0
      %v3838 = vadd.f32 0.0, %v3837
      %v3839 = vpop.f32.mrf.mxu0
      %v3840 = vadd.f32 0.0, %v3839
      %v3841 = vpop.f32.mrf.mxu0
      %v3842 = vpop.f32.mrf.mxu0
      %3843 = vdwg.mxu0
      %3844 = vmatprep.subr.bf16.mxu0 %v3722
      %3845 = vmatpush1.bf16.xpose.msra.mxu0 %v3721
      %3846 = vmatprep.subr.bf16.mxu0 %v3720
      %3847 = vmatpush1.bf16.xpose.msra.mxu0 %v3719
      %3848 = vmatprep.subr.bf16.mxu0 %v3718
      %3849 = vmatpush1.bf16.xpose.msra.mxu0 %v3717
      %3850 = vmatprep.subr.bf16.mxu0 %v3716
      %3851 = vmatpush1.bf16.xpose.msra.mxu0 %v3715
      %3852 = vmatprep.subr.bf16.mxu0 %v3714
      %3853 = vmatpush1.bf16.xpose.msra.mxu0 %v3713
      %3854 = vmatprep.subr.bf16.mxu0 %v3712
      %3855 = vmatpush1.bf16.xpose.msra.mxu0 %v3711
      %3856 = vmatprep.subr.bf16.mxu0 %v3710
      %3857 = vmatpush1.bf16.xpose.msra.mxu0 %v3709
      %3858 = vmatprep.subr.bf16.mxu0 %v3708
      %3859 = vmatpush1.bf16.xpose.msra.mxu0 %v3707
      %3860 = vmatprep.subr.bf16.mxu0 %v3738
      %3861 = vmatpush2.bf16.xpose.msra.mxu0 %v3737
      %3862 = vmatprep.subr.bf16.mxu0 %v3736
      %3863 = vmatpush2.bf16.xpose.msra.mxu0 %v3735
      %3864 = vmatprep.subr.bf16.mxu0 %v3734
      %3865 = vmatpush2.bf16.xpose.msra.mxu0 %v3733
      %3866 = vmatprep.subr.bf16.mxu0 %v3732
      %3867 = vmatpush2.bf16.xpose.msra.mxu0 %v3731
      %3868 = vmatprep.subr.bf16.mxu0 %v3730
      %3869 = vmatpush2.bf16.xpose.msra.mxu0 %v3729
      %3870 = vmatprep.subr.bf16.mxu0 %v3728
      %3871 = vmatpush2.bf16.xpose.msra.mxu0 %v3727
      %3872 = vmatprep.subr.bf16.mxu0 %v3726
      %3873 = vmatpush2.bf16.xpose.msra.mxu0 %v3725
      %3874 = vmatprep.subr.bf16.mxu0 %v3724
      %3875 = vmatpush2.bf16.xpose.msra.mxu0 %v3723
      %3876 = vmatprep.mubr.bf16.mxu0 %v1144
      %3877 = vmatmul.mubr.bf16.gmra.mxu0 %v1143
      %v3878 = vpop.f32.mrf.mxu0
      %v3879 = vadd.f32 0.0, %v3878
      %v3880 = vpop.f32.mrf.mxu0
      %v3881 = vadd.f32 0.0, %v3880
      %v3882 = vpop.f32.mrf.mxu0
      %v3883 = vpop.f32.mrf.mxu0
      %3884 = vdwg.mxu0
      %3885 = vmatprep.subr.bf16.mxu0 %v3754
      %3886 = vmatpush1.bf16.xpose.msra.mxu0 %v3753
      %3887 = vmatprep.subr.bf16.mxu0 %v3752
      %3888 = vmatpush1.bf16.xpose.msra.mxu0 %v3751
      %3889 = vmatprep.subr.bf16.mxu0 %v3750
      %3890 = vmatpush1.bf16.xpose.msra.mxu0 %v3749
      %3891 = vmatprep.subr.bf16.mxu0 %v3748
      %3892 = vmatpush1.bf16.xpose.msra.mxu0 %v3747
      %3893 = vmatprep.subr.bf16.mxu0 %v3746
      %3894 = vmatpush1.bf16.xpose.msra.mxu0 %v3745
      %3895 = vmatprep.subr.bf16.mxu0 %v3744
      %3896 = vmatpush1.bf16.xpose.msra.mxu0 %v3743
      %3897 = vmatprep.subr.bf16.mxu0 %v3742
      %3898 = vmatpush1.bf16.xpose.msra.mxu0 %v3741
      %3899 = vmatprep.subr.bf16.mxu0 %v3740
      %3900 = vmatpush1.bf16.xpose.msra.mxu0 %v3739
      %3901 = vmatprep.subr.bf16.mxu0 %v3770
      %3902 = vmatpush2.bf16.xpose.msra.mxu0 %v3769
      %3903 = vmatprep.subr.bf16.mxu0 %v3768
      %3904 = vmatpush2.bf16.xpose.msra.mxu0 %v3767
      %3905 = vmatprep.subr.bf16.mxu0 %v3766
      %3906 = vmatpush2.bf16.xpose.msra.mxu0 %v3765
      %3907 = vmatprep.subr.bf16.mxu0 %v3764
      %3908 = vmatpush2.bf16.xpose.msra.mxu0 %v3763
      %3909 = vmatprep.subr.bf16.mxu0 %v3762
      %3910 = vmatpush2.bf16.xpose.msra.mxu0 %v3761
      %3911 = vmatprep.subr.bf16.mxu0 %v3760
      %3912 = vmatpush2.bf16.xpose.msra.mxu0 %v3759
      %3913 = vmatprep.subr.bf16.mxu0 %v3758
      %3914 = vmatpush2.bf16.xpose.msra.mxu0 %v3757
      %3915 = vmatprep.subr.bf16.mxu0 %v3756
      %3916 = vmatpush2.bf16.xpose.msra.mxu0 %v3755
      %3917 = vmatprep.mubr.bf16.mxu0 %v1146
      %3918 = vmatmul.mubr.bf16.gmra.mxu0 %v1145
      %v3919 = vpop.f32.mrf.mxu0
      %v3920 = vadd.f32 0.0, %v3919
      %v3921 = vpop.f32.mrf.mxu0
      %v3922 = vadd.f32 0.0, %v3921
      %v3923 = vpop.f32.mrf.mxu0
      %v3924 = vpop.f32.mrf.mxu0
      %3925 = vdwg.mxu0
      %3926 = vmatprep.subr.bf16.mxu0 %v3786
      %3927 = vmatpush1.bf16.xpose.msra.mxu0 %v3785
      %3928 = vmatprep.subr.bf16.mxu0 %v3784
      %3929 = vmatpush1.bf16.xpose.msra.mxu0 %v3783
      %3930 = vmatprep.subr.bf16.mxu0 %v3782
      %3931 = vmatpush1.bf16.xpose.msra.mxu0 %v3781
      %3932 = vmatprep.subr.bf16.mxu0 %v3780
      %3933 = vmatpush1.bf16.xpose.msra.mxu0 %v3779
      %3934 = vmatprep.subr.bf16.mxu0 %v3778
      %3935 = vmatpush1.bf16.xpose.msra.mxu0 %v3777
      %3936 = vmatprep.subr.bf16.mxu0 %v3776
      %3937 = vmatpush1.bf16.xpose.msra.mxu0 %v3775
      %3938 = vmatprep.subr.bf16.mxu0 %v3774
      %3939 = vmatpush1.bf16.xpose.msra.mxu0 %v3773
      %3940 = vmatprep.subr.bf16.mxu0 %v3772
      %3941 = vmatpush1.bf16.xpose.msra.mxu0 %v3771
      %3942 = vmatprep.subr.bf16.mxu0 %v3802
      %3943 = vmatpush2.bf16.xpose.msra.mxu0 %v3801
      %3944 = vmatprep.subr.bf16.mxu0 %v3800
      %3945 = vmatpush2.bf16.xpose.msra.mxu0 %v3799
      %3946 = vmatprep.subr.bf16.mxu0 %v3798
      %3947 = vmatpush2.bf16.xpose.msra.mxu0 %v3797
      %3948 = vmatprep.subr.bf16.mxu0 %v3796
      %3949 = vmatpush2.bf16.xpose.msra.mxu0 %v3795
      %3950 = vmatprep.subr.bf16.mxu0 %v3794
      %3951 = vmatpush2.bf16.xpose.msra.mxu0 %v3793
      %3952 = vmatprep.subr.bf16.mxu0 %v3792
      %3953 = vmatpush2.bf16.xpose.msra.mxu0 %v3791
      %3954 = vmatprep.subr.bf16.mxu0 %v3790
      %3955 = vmatpush2.bf16.xpose.msra.mxu0 %v3789
      %3956 = vmatprep.subr.bf16.mxu0 %v3788
      %3957 = vmatpush2.bf16.xpose.msra.mxu0 %v3787
      %3958 = vmatprep.mubr.bf16.mxu0 %v1148
      %3959 = vmatmul.mubr.bf16.gmra.mxu0 %v1147
      %v3960 = vpop.f32.mrf.mxu0
      %v3961 = vadd.f32 0.0, %v3960
      %v3962 = vpop.f32.mrf.mxu0
      %v3963 = vadd.f32 0.0, %v3962
      %v3964 = vpop.f32.mrf.mxu0
      %v3965 = vpop.f32.mrf.mxu0
      %3966 = vdwg.mxu0
      %v3967 = vrcp.pop %v3293
      %v3968 = vrcp.pop %v3296
      %v3969 = vrcp.pop %v3299
      %v3970 = vrcp.pop %v3302
      %v3971 = vrcp.pop %v3305
      %v3972 = vrcp.pop %v3308
      %v3973 = vrcp.pop %v3311
      %v3974 = vrcp.pop %v3314
      %v3975 = vrcp.pop %v3317
      %v3976 = vrcp.pop %v3320
      %v3977 = vrcp.pop %v3323
      %v3978 = vrcp.pop %v3326
      %v3979 = vrcp.pop %v3329
      %v3980 = vrcp.pop %v3332
      %v3981 = vrcp.pop %v3335
      %v3982 = vrcp.pop %v3338
      %v3983 = vrcp.pop %v3341
      %v3984 = vrcp.pop %v3344
      %v3985 = vrcp.pop %v3347
      %v3986 = vrcp.pop %v3350
      %v3987 = vrcp.pop %v3353
      %v3988 = vrcp.pop %v3356
      %v3989 = vrcp.pop %v3359
      %v3990 = vrcp.pop %v3362
      %v3991 = vrcp.pop %v3365
      %v3992 = vrcp.pop %v3368
      %v3993 = vrcp.pop %v3371
      %v3994 = vrcp.pop %v3374
      %v3995 = vrcp.pop %v3377
      %v3996 = vrcp.pop %v3380
      %v3997 = vrcp.pop %v3383
      %v3998 = vrcp.pop %v3386
      %v3999 = vrcp.pop %v3389
      %v4000 = vrcp.pop %v3392
      %v4001 = vrcp.pop %v3395
      %v4002 = vrcp.pop %v3398
      %v4003 = vrcp.pop %v3401
      %v4004 = vrcp.pop %v3404
      %v4005 = vrcp.pop %v3407
      %v4006 = vrcp.pop %v3410
      %v4007 = vrcp.pop %v3413
      %v4008 = vrcp.pop %v3416
      %v4009 = vrcp.pop %v3419
      %v4010 = vrcp.pop %v3422
      %v4011 = vrcp.pop %v3425
      %v4012 = vrcp.pop %v3428
      %v4013 = vrcp.pop %v3431
      %v4014 = vrcp.pop %v3434
      %v4015 = vrcp.pop %v3437
      %v4016 = vrcp.pop %v3440
      %v4017 = vrcp.pop %v3443
      %v4018 = vrcp.pop %v3446
      %v4019 = vrcp.pop %v3449
      %v4020 = vrcp.pop %v3452
      %v4021 = vrcp.pop %v3455
      %v4022 = vrcp.pop %v3458
      %v4023 = vrcp.pop %v3461
      %v4024 = vrcp.pop %v3464
      %v4025 = vrcp.pop %v3467
      %v4026 = vrcp.pop %v3470
      %v4027 = vrcp.pop %v3473
      %v4028 = vrcp.pop %v3476
      %v4029 = vrcp.pop %v3479
      %v4030 = vrcp.pop %v3482
      %v4031 = vrcp.pop %v3485
      %v4032 = vrcp.pop %v3488
      %v4033 = vrcp.pop %v3491
      %v4034 = vrcp.pop %v3494
      %v4035 = vrcp.pop %v3497
      %v4036 = vrcp.pop %v3500
      %v4037 = vrcp.pop %v3503
      %v4038 = vrcp.pop %v3506
      %v4039 = vrcp.pop %v3509
      %v4040 = vrcp.pop %v3512
      %v4041 = vrcp.pop %v3515
      %v4042 = vrcp.pop %v3518
      %v4043 = vrcp.pop %v3521
      %v4044 = vrcp.pop %v3524
      %v4045 = vrcp.pop %v3527
      %v4046 = vrcp.pop %v3530
      %v4047 = vrcp.pop %v3533
      %v4048 = vrcp.pop %v3536
      %v4049 = vrcp.pop %v3539
      %v4050 = vrcp.pop %v3542
      %v4051 = vrcp.pop %v3545
      %v4052 = vrcp.pop %v3548
      %v4053 = vrcp.pop %v3551
      %v4054 = vrcp.pop %v3554
      %v4055 = vrcp.pop %v3557
      %v4056 = vrcp.pop %v3560
      %v4057 = vrcp.pop %v3563
      %v4058 = vrcp.pop %v3566
      %v4059 = vrcp.pop %v3569
      %v4060 = vrcp.pop %v3572
      %v4061 = vrcp.pop %v3575
      %v4062 = vrcp.pop %v3578
      %v4063 = vrcp.pop %v3581
      %v4064 = vrcp.pop %v3584
      %v4065 = vrcp.pop %v3587
      %v4066 = vrcp.pop %v3590
      %v4067 = vrcp.pop %v3593
      %v4068 = vrcp.pop %v3596
      %v4069 = vrcp.pop %v3599
      %v4070 = vrcp.pop %v3602
      %v4071 = vrcp.pop %v3605
      %v4072 = vrcp.pop %v3608
      %v4073 = vrcp.pop %v3611
      %v4074 = vrcp.pop %v3614
      %v4075 = vrcp.pop %v3617
      %v4076 = vrcp.pop %v3620
      %v4077 = vrcp.pop %v3623
      %v4078 = vrcp.pop %v3626
      %v4079 = vrcp.pop %v3629
      %v4080 = vrcp.pop %v3632
      %v4081 = vrcp.pop %v3635
      %v4082 = vrcp.pop %v3638
      %v4083 = vrcp.pop %v3641
      %v4084 = vrcp.pop %v3644
      %v4085 = vrcp.pop %v3647
      %v4086 = vrcp.pop %v3650
      %v4087 = vrcp.pop %v3653
      %v4088 = vrcp.pop %v3656
      %v4089 = vrcp.pop %v3659
      %v4090 = vrcp.pop %v3662
      %v4091 = vrcp.pop %v3665
      %v4092 = vrcp.pop %v3668
      %v4093 = vrcp.pop %v3671
      %v4094 = vrcp.pop %v3674
      %v4223 = vlaneseq
      %v4224 = vand.u32 %v4223, 127
      %v4225 = vlaneseq
      %v4226 = vshrl.u32 %v4225, 7
      %v4227 = vsub.s32 %v4224, %v4226
      %v4228 = vrot.slane %v3967, %v4227
      %v4229 = vadd.s32 %v4224, 4294967288
      %v4230 = vlaneseq
      %v4231 = vshrl.u32 %v4230, 7
      %v4232 = vsub.s32 %v4229, %v4231
      %v4233 = vrot.slane %v3968, %v4232
      %vm4234 = vcmask 130112
      %v4235 = vsel %vm4234, %v4233, %v4228
      %v4236 = vadd.s32 %v4224, 4294967280
      %v4237 = vlaneseq
      %v4238 = vshrl.u32 %v4237, 7
      %v4239 = vsub.s32 %v4236, %v4238
      %v4240 = vrot.slane %v3969, %v4239
      %vm4241 = vcmask 195712
      %v4242 = vsel %vm4241, %v4240, %v4235
      %v4243 = vadd.s32 %v4224, 4294967272
      %v4244 = vlaneseq
      %v4245 = vshrl.u32 %v4244, 7
      %v4246 = vsub.s32 %v4243, %v4245
      %v4247 = vrot.slane %v3970, %v4246
      %vm4248 = vcmask 261312
      %v4249 = vsel %vm4248, %v4247, %v4242
      %v4250 = vadd.s32 %v4224, 4294967264
      %v4251 = vlaneseq
      %v4252 = vshrl.u32 %v4251, 7
      %v4253 = vsub.s32 %v4250, %v4252
      %v4254 = vrot.slane %v3971, %v4253
      %vm4255 = vcmask 326912
      %v4256 = vsel %vm4255, %v4254, %v4249
      %v4257 = vadd.s32 %v4224, 4294967256
      %v4258 = vlaneseq
      %v4259 = vshrl.u32 %v4258, 7
      %v4260 = vsub.s32 %v4257, %v4259
      %v4261 = vrot.slane %v3972, %v4260
      %vm4262 = vcmask 392512
      %v4263 = vsel %vm4262, %v4261, %v4256
      %v4264 = vadd.s32 %v4224, 4294967248
      %v4265 = vlaneseq
      %v4266 = vshrl.u32 %v4265, 7
      %v4267 = vsub.s32 %v4264, %v4266
      %v4268 = vrot.slane %v3973, %v4267
      %vm4269 = vcmask 458112
      %v4270 = vsel %vm4269, %v4268, %v4263
      %v4271 = vadd.s32 %v4224, 4294967240
      %v4272 = vlaneseq
      %v4273 = vshrl.u32 %v4272, 7
      %v4274 = vsub.s32 %v4271, %v4273
      %v4275 = vrot.slane %v3974, %v4274
      %vm4276 = vcmask 523712
      %v4277 = vsel %vm4276, %v4275, %v4270
      %v4278 = vadd.s32 %v4224, 4294967232
      %v4279 = vlaneseq
      %v4280 = vshrl.u32 %v4279, 7
      %v4281 = vsub.s32 %v4278, %v4280
      %v4282 = vrot.slane %v3975, %v4281
      %vm4283 = vcmask 589312
      %v4284 = vsel %vm4283, %v4282, %v4277
      %v4285 = vadd.s32 %v4224, 4294967224
      %v4286 = vlaneseq
      %v4287 = vshrl.u32 %v4286, 7
      %v4288 = vsub.s32 %v4285, %v4287
      %v4289 = vrot.slane %v3976, %v4288
      %vm4290 = vcmask 654912
      %v4291 = vsel %vm4290, %v4289, %v4284
      %v4292 = vadd.s32 %v4224, 4294967216
      %v4293 = vlaneseq
      %v4294 = vshrl.u32 %v4293, 7
      %v4295 = vsub.s32 %v4292, %v4294
      %v4296 = vrot.slane %v3977, %v4295
      %vm4297 = vcmask 720512
      %v4298 = vsel %vm4297, %v4296, %v4291
      %v4299 = vadd.s32 %v4224, 4294967208
      %v4300 = vlaneseq
      %v4301 = vshrl.u32 %v4300, 7
      %v4302 = vsub.s32 %v4299, %v4301
      %v4303 = vrot.slane %v3978, %v4302
      %vm4304 = vcmask 786112
      %v4305 = vsel %vm4304, %v4303, %v4298
      %v4306 = vadd.s32 %v4224, 4294967200
      %v4307 = vlaneseq
      %v4308 = vshrl.u32 %v4307, 7
      %v4309 = vsub.s32 %v4306, %v4308
      %v4310 = vrot.slane %v3979, %v4309
      %vm4311 = vcmask 851712
      %v4312 = vsel %vm4311, %v4310, %v4305
      %v4313 = vadd.s32 %v4224, 4294967192
      %v4314 = vlaneseq
      %v4315 = vshrl.u32 %v4314, 7
      %v4316 = vsub.s32 %v4313, %v4315
      %v4317 = vrot.slane %v3980, %v4316
      %vm4318 = vcmask 917312
      %v4319 = vsel %vm4318, %v4317, %v4312
      %v4320 = vadd.s32 %v4224, 4294967184
      %v4321 = vlaneseq
      %v4322 = vshrl.u32 %v4321, 7
      %v4323 = vsub.s32 %v4320, %v4322
      %v4324 = vrot.slane %v3981, %v4323
      %vm4325 = vcmask 982912
      %v4326 = vsel %vm4325, %v4324, %v4319
      %v4327 = vadd.s32 %v4224, 4294967176
      %v4328 = vlaneseq
      %v4329 = vshrl.u32 %v4328, 7
      %v4330 = vsub.s32 %v4327, %v4329
      %v4331 = vrot.slane %v3982, %v4330
      %vm4332 = vcmask 1048512
      %v4333 = vsel %vm4332, %v4331, %v4326
      %v4334 = vlaneseq
      %v4335 = vshrl.u32 %v4334, 7
      %v4336 = vsub.s32 %v4224, %v4335
      %v4337 = vrot.slane %v3983, %v4336
      %v4338 = vlaneseq
      %v4339 = vshrl.u32 %v4338, 7
      %v4340 = vsub.s32 %v4229, %v4339
      %v4341 = vrot.slane %v3984, %v4340
      %v4342 = vsel %vm4234, %v4341, %v4337
      %v4343 = vlaneseq
      %v4344 = vshrl.u32 %v4343, 7
      %v4345 = vsub.s32 %v4236, %v4344
      %v4346 = vrot.slane %v3985, %v4345
      %v4347 = vsel %vm4241, %v4346, %v4342
      %v4348 = vlaneseq
      %v4349 = vshrl.u32 %v4348, 7
      %v4350 = vsub.s32 %v4243, %v4349
      %v4351 = vrot.slane %v3986, %v4350
      %v4352 = vsel %vm4248, %v4351, %v4347
      %v4353 = vlaneseq
      %v4354 = vshrl.u32 %v4353, 7
      %v4355 = vsub.s32 %v4250, %v4354
      %v4356 = vrot.slane %v3987, %v4355
      %v4357 = vsel %vm4255, %v4356, %v4352
      %v4358 = vlaneseq
      %v4359 = vshrl.u32 %v4358, 7
      %v4360 = vsub.s32 %v4257, %v4359
      %v4361 = vrot.slane %v3988, %v4360
      %v4362 = vsel %vm4262, %v4361, %v4357
      %v4363 = vlaneseq
      %v4364 = vshrl.u32 %v4363, 7
      %v4365 = vsub.s32 %v4264, %v4364
      %v4366 = vrot.slane %v3989, %v4365
      %v4367 = vsel %vm4269, %v4366, %v4362
      %v4368 = vlaneseq
      %v4369 = vshrl.u32 %v4368, 7
      %v4370 = vsub.s32 %v4271, %v4369
      %v4371 = vrot.slane %v3990, %v4370
      %v4372 = vsel %vm4276, %v4371, %v4367
      %v4373 = vlaneseq
      %v4374 = vshrl.u32 %v4373, 7
      %v4375 = vsub.s32 %v4278, %v4374
      %v4376 = vrot.slane %v3991, %v4375
      %v4377 = vsel %vm4283, %v4376, %v4372
      %v4378 = vlaneseq
      %v4379 = vshrl.u32 %v4378, 7
      %v4380 = vsub.s32 %v4285, %v4379
      %v4381 = vrot.slane %v3992, %v4380
      %v4382 = vsel %vm4290, %v4381, %v4377
      %v4383 = vlaneseq
      %v4384 = vshrl.u32 %v4383, 7
      %v4385 = vsub.s32 %v4292, %v4384
      %v4386 = vrot.slane %v3993, %v4385
      %v4387 = vsel %vm4297, %v4386, %v4382
      %v4388 = vlaneseq
      %v4389 = vshrl.u32 %v4388, 7
      %v4390 = vsub.s32 %v4299, %v4389
      %v4391 = vrot.slane %v3994, %v4390
      %v4392 = vsel %vm4304, %v4391, %v4387
      %v4393 = vlaneseq
      %v4394 = vshrl.u32 %v4393, 7
      %v4395 = vsub.s32 %v4306, %v4394
      %v4396 = vrot.slane %v3995, %v4395
      %v4397 = vsel %vm4311, %v4396, %v4392
      %v4398 = vlaneseq
      %v4399 = vshrl.u32 %v4398, 7
      %v4400 = vsub.s32 %v4313, %v4399
      %v4401 = vrot.slane %v3996, %v4400
      %v4402 = vsel %vm4318, %v4401, %v4397
      %v4403 = vlaneseq
      %v4404 = vshrl.u32 %v4403, 7
      %v4405 = vsub.s32 %v4320, %v4404
      %v4406 = vrot.slane %v3997, %v4405
      %v4407 = vsel %vm4325, %v4406, %v4402
      %v4408 = vlaneseq
      %v4409 = vshrl.u32 %v4408, 7
      %v4410 = vsub.s32 %v4327, %v4409
      %v4411 = vrot.slane %v3998, %v4410
      %v4412 = vsel %vm4332, %v4411, %v4407
      %v4413 = vlaneseq
      %v4414 = vshrl.u32 %v4413, 7
      %v4415 = vsub.s32 %v4224, %v4414
      %v4416 = vrot.slane %v3999, %v4415
      %v4417 = vlaneseq
      %v4418 = vshrl.u32 %v4417, 7
      %v4419 = vsub.s32 %v4229, %v4418
      %v4420 = vrot.slane %v4000, %v4419
      %v4421 = vsel %vm4234, %v4420, %v4416
      %v4422 = vlaneseq
      %v4423 = vshrl.u32 %v4422, 7
      %v4424 = vsub.s32 %v4236, %v4423
      %v4425 = vrot.slane %v4001, %v4424
      %v4426 = vsel %vm4241, %v4425, %v4421
      %v4427 = vlaneseq
      %v4428 = vshrl.u32 %v4427, 7
      %v4429 = vsub.s32 %v4243, %v4428
      %v4430 = vrot.slane %v4002, %v4429
      %v4431 = vsel %vm4248, %v4430, %v4426
      %v4432 = vlaneseq
      %v4433 = vshrl.u32 %v4432, 7
      %v4434 = vsub.s32 %v4250, %v4433
      %v4435 = vrot.slane %v4003, %v4434
      %v4436 = vsel %vm4255, %v4435, %v4431
      %v4437 = vlaneseq
      %v4438 = vshrl.u32 %v4437, 7
      %v4439 = vsub.s32 %v4257, %v4438
      %v4440 = vrot.slane %v4004, %v4439
      %v4441 = vsel %vm4262, %v4440, %v4436
      %v4442 = vlaneseq
      %v4443 = vshrl.u32 %v4442, 7
      %v4444 = vsub.s32 %v4264, %v4443
      %v4445 = vrot.slane %v4005, %v4444
      %v4446 = vsel %vm4269, %v4445, %v4441
      %v4447 = vlaneseq
      %v4448 = vshrl.u32 %v4447, 7
      %v4449 = vsub.s32 %v4271, %v4448
      %v4450 = vrot.slane %v4006, %v4449
      %v4451 = vsel %vm4276, %v4450, %v4446
      %v4452 = vlaneseq
      %v4453 = vshrl.u32 %v4452, 7
      %v4454 = vsub.s32 %v4278, %v4453
      %v4455 = vrot.slane %v4007, %v4454
      %v4456 = vsel %vm4283, %v4455, %v4451
      %v4457 = vlaneseq
      %v4458 = vshrl.u32 %v4457, 7
      %v4459 = vsub.s32 %v4285, %v4458
      %v4460 = vrot.slane %v4008, %v4459
      %v4461 = vsel %vm4290, %v4460, %v4456
      %v4462 = vlaneseq
      %v4463 = vshrl.u32 %v4462, 7
      %v4464 = vsub.s32 %v4292, %v4463
      %v4465 = vrot.slane %v4009, %v4464
      %v4466 = vsel %vm4297, %v4465, %v4461
      %v4467 = vlaneseq
      %v4468 = vshrl.u32 %v4467, 7
      %v4469 = vsub.s32 %v4299, %v4468
      %v4470 = vrot.slane %v4010, %v4469
      %v4471 = vsel %vm4304, %v4470, %v4466
      %v4472 = vlaneseq
      %v4473 = vshrl.u32 %v4472, 7
      %v4474 = vsub.s32 %v4306, %v4473
      %v4475 = vrot.slane %v4011, %v4474
      %v4476 = vsel %vm4311, %v4475, %v4471
      %v4477 = vlaneseq
      %v4478 = vshrl.u32 %v4477, 7
      %v4479 = vsub.s32 %v4313, %v4478
      %v4480 = vrot.slane %v4012, %v4479
      %v4481 = vsel %vm4318, %v4480, %v4476
      %v4482 = vlaneseq
      %v4483 = vshrl.u32 %v4482, 7
      %v4484 = vsub.s32 %v4320, %v4483
      %v4485 = vrot.slane %v4013, %v4484
      %v4486 = vsel %vm4325, %v4485, %v4481
      %v4487 = vlaneseq
      %v4488 = vshrl.u32 %v4487, 7
      %v4489 = vsub.s32 %v4327, %v4488
      %v4490 = vrot.slane %v4014, %v4489
      %v4491 = vsel %vm4332, %v4490, %v4486
      %v4492 = vlaneseq
      %v4493 = vshrl.u32 %v4492, 7
      %v4494 = vsub.s32 %v4224, %v4493
      %v4495 = vrot.slane %v4015, %v4494
      %v4496 = vlaneseq
      %v4497 = vshrl.u32 %v4496, 7
      %v4498 = vsub.s32 %v4229, %v4497
      %v4499 = vrot.slane %v4016, %v4498
      %v4500 = vsel %vm4234, %v4499, %v4495
      %v4501 = vlaneseq
      %v4502 = vshrl.u32 %v4501, 7
      %v4503 = vsub.s32 %v4236, %v4502
      %v4504 = vrot.slane %v4017, %v4503
      %v4505 = vsel %vm4241, %v4504, %v4500
      %v4506 = vlaneseq
      %v4507 = vshrl.u32 %v4506, 7
      %v4508 = vsub.s32 %v4243, %v4507
      %v4509 = vrot.slane %v4018, %v4508
      %v4510 = vsel %vm4248, %v4509, %v4505
      %v4511 = vlaneseq
      %v4512 = vshrl.u32 %v4511, 7
      %v4513 = vsub.s32 %v4250, %v4512
      %v4514 = vrot.slane %v4019, %v4513
      %v4515 = vsel %vm4255, %v4514, %v4510
      %v4516 = vlaneseq
      %v4517 = vshrl.u32 %v4516, 7
      %v4518 = vsub.s32 %v4257, %v4517
      %v4519 = vrot.slane %v4020, %v4518
      %v4520 = vsel %vm4262, %v4519, %v4515
      %v4521 = vlaneseq
      %v4522 = vshrl.u32 %v4521, 7
      %v4523 = vsub.s32 %v4264, %v4522
      %v4524 = vrot.slane %v4021, %v4523
      %v4525 = vsel %vm4269, %v4524, %v4520
      %v4526 = vlaneseq
      %v4527 = vshrl.u32 %v4526, 7
      %v4528 = vsub.s32 %v4271, %v4527
      %v4529 = vrot.slane %v4022, %v4528
      %v4530 = vsel %vm4276, %v4529, %v4525
      %v4531 = vlaneseq
      %v4532 = vshrl.u32 %v4531, 7
      %v4533 = vsub.s32 %v4278, %v4532
      %v4534 = vrot.slane %v4023, %v4533
      %v4535 = vsel %vm4283, %v4534, %v4530
      %v4536 = vlaneseq
      %v4537 = vshrl.u32 %v4536, 7
      %v4538 = vsub.s32 %v4285, %v4537
      %v4539 = vrot.slane %v4024, %v4538
      %v4540 = vsel %vm4290, %v4539, %v4535
      %v4541 = vlaneseq
      %v4542 = vshrl.u32 %v4541, 7
      %v4543 = vsub.s32 %v4292, %v4542
      %v4544 = vrot.slane %v4025, %v4543
      %v4545 = vsel %vm4297, %v4544, %v4540
      %v4546 = vlaneseq
      %v4547 = vshrl.u32 %v4546, 7
      %v4548 = vsub.s32 %v4299, %v4547
      %v4549 = vrot.slane %v4026, %v4548
      %v4550 = vsel %vm4304, %v4549, %v4545
      %v4551 = vlaneseq
      %v4552 = vshrl.u32 %v4551, 7
      %v4553 = vsub.s32 %v4306, %v4552
      %v4554 = vrot.slane %v4027, %v4553
      %v4555 = vsel %vm4311, %v4554, %v4550
      %v4556 = vlaneseq
      %v4557 = vshrl.u32 %v4556, 7
      %v4558 = vsub.s32 %v4313, %v4557
      %v4559 = vrot.slane %v4028, %v4558
      %v4560 = vsel %vm4318, %v4559, %v4555
      %v4561 = vlaneseq
      %v4562 = vshrl.u32 %v4561, 7
      %v4563 = vsub.s32 %v4320, %v4562
      %v4564 = vrot.slane %v4029, %v4563
      %v4565 = vsel %vm4325, %v4564, %v4560
      %v4566 = vlaneseq
      %v4567 = vshrl.u32 %v4566, 7
      %v4568 = vsub.s32 %v4327, %v4567
      %v4569 = vrot.slane %v4030, %v4568
      %v4570 = vsel %vm4332, %v4569, %v4565
      %v4571 = vlaneseq
      %v4572 = vshrl.u32 %v4571, 7
      %v4573 = vsub.s32 %v4224, %v4572
      %v4574 = vrot.slane %v4031, %v4573
      %v4575 = vlaneseq
      %v4576 = vshrl.u32 %v4575, 7
      %v4577 = vsub.s32 %v4229, %v4576
      %v4578 = vrot.slane %v4032, %v4577
      %v4579 = vsel %vm4234, %v4578, %v4574
      %v4580 = vlaneseq
      %v4581 = vshrl.u32 %v4580, 7
      %v4582 = vsub.s32 %v4236, %v4581
      %v4583 = vrot.slane %v4033, %v4582
      %v4584 = vsel %vm4241, %v4583, %v4579
      %v4585 = vlaneseq
      %v4586 = vshrl.u32 %v4585, 7
      %v4587 = vsub.s32 %v4243, %v4586
      %v4588 = vrot.slane %v4034, %v4587
      %v4589 = vsel %vm4248, %v4588, %v4584
      %v4590 = vlaneseq
      %v4591 = vshrl.u32 %v4590, 7
      %v4592 = vsub.s32 %v4250, %v4591
      %v4593 = vrot.slane %v4035, %v4592
      %v4594 = vsel %vm4255, %v4593, %v4589
      %v4595 = vlaneseq
      %v4596 = vshrl.u32 %v4595, 7
      %v4597 = vsub.s32 %v4257, %v4596
      %v4598 = vrot.slane %v4036, %v4597
      %v4599 = vsel %vm4262, %v4598, %v4594
      %v4600 = vlaneseq
      %v4601 = vshrl.u32 %v4600, 7
      %v4602 = vsub.s32 %v4264, %v4601
      %v4603 = vrot.slane %v4037, %v4602
      %v4604 = vsel %vm4269, %v4603, %v4599
      %v4605 = vlaneseq
      %v4606 = vshrl.u32 %v4605, 7
      %v4607 = vsub.s32 %v4271, %v4606
      %v4608 = vrot.slane %v4038, %v4607
      %v4609 = vsel %vm4276, %v4608, %v4604
      %v4610 = vlaneseq
      %v4611 = vshrl.u32 %v4610, 7
      %v4612 = vsub.s32 %v4278, %v4611
      %v4613 = vrot.slane %v4039, %v4612
      %v4614 = vsel %vm4283, %v4613, %v4609
      %v4615 = vlaneseq
      %v4616 = vshrl.u32 %v4615, 7
      %v4617 = vsub.s32 %v4285, %v4616
      %v4618 = vrot.slane %v4040, %v4617
      %v4619 = vsel %vm4290, %v4618, %v4614
      %v4620 = vlaneseq
      %v4621 = vshrl.u32 %v4620, 7
      %v4622 = vsub.s32 %v4292, %v4621
      %v4623 = vrot.slane %v4041, %v4622
      %v4624 = vsel %vm4297, %v4623, %v4619
      %v4625 = vlaneseq
      %v4626 = vshrl.u32 %v4625, 7
      %v4627 = vsub.s32 %v4299, %v4626
      %v4628 = vrot.slane %v4042, %v4627
      %v4629 = vsel %vm4304, %v4628, %v4624
      %v4630 = vlaneseq
      %v4631 = vshrl.u32 %v4630, 7
      %v4632 = vsub.s32 %v4306, %v4631
      %v4633 = vrot.slane %v4043, %v4632
      %v4634 = vsel %vm4311, %v4633, %v4629
      %v4635 = vlaneseq
      %v4636 = vshrl.u32 %v4635, 7
      %v4637 = vsub.s32 %v4313, %v4636
      %v4638 = vrot.slane %v4044, %v4637
      %v4639 = vsel %vm4318, %v4638, %v4634
      %v4640 = vlaneseq
      %v4641 = vshrl.u32 %v4640, 7
      %v4642 = vsub.s32 %v4320, %v4641
      %v4643 = vrot.slane %v4045, %v4642
      %v4644 = vsel %vm4325, %v4643, %v4639
      %v4645 = vlaneseq
      %v4646 = vshrl.u32 %v4645, 7
      %v4647 = vsub.s32 %v4327, %v4646
      %v4648 = vrot.slane %v4046, %v4647
      %v4649 = vsel %vm4332, %v4648, %v4644
      %v4650 = vlaneseq
      %v4651 = vshrl.u32 %v4650, 7
      %v4652 = vsub.s32 %v4224, %v4651
      %v4653 = vrot.slane %v4047, %v4652
      %v4654 = vlaneseq
      %v4655 = vshrl.u32 %v4654, 7
      %v4656 = vsub.s32 %v4229, %v4655
      %v4657 = vrot.slane %v4048, %v4656
      %v4658 = vsel %vm4234, %v4657, %v4653
      %v4659 = vlaneseq
      %v4660 = vshrl.u32 %v4659, 7
      %v4661 = vsub.s32 %v4236, %v4660
      %v4662 = vrot.slane %v4049, %v4661
      %v4663 = vsel %vm4241, %v4662, %v4658
      %v4664 = vlaneseq
      %v4665 = vshrl.u32 %v4664, 7
      %v4666 = vsub.s32 %v4243, %v4665
      %v4667 = vrot.slane %v4050, %v4666
      %v4668 = vsel %vm4248, %v4667, %v4663
      %v4669 = vlaneseq
      %v4670 = vshrl.u32 %v4669, 7
      %v4671 = vsub.s32 %v4250, %v4670
      %v4672 = vrot.slane %v4051, %v4671
      %v4673 = vsel %vm4255, %v4672, %v4668
      %v4674 = vlaneseq
      %v4675 = vshrl.u32 %v4674, 7
      %v4676 = vsub.s32 %v4257, %v4675
      %v4677 = vrot.slane %v4052, %v4676
      %v4678 = vsel %vm4262, %v4677, %v4673
      %v4679 = vlaneseq
      %v4680 = vshrl.u32 %v4679, 7
      %v4681 = vsub.s32 %v4264, %v4680
      %v4682 = vrot.slane %v4053, %v4681
      %v4683 = vsel %vm4269, %v4682, %v4678
      %v4684 = vlaneseq
      %v4685 = vshrl.u32 %v4684, 7
      %v4686 = vsub.s32 %v4271, %v4685
      %v4687 = vrot.slane %v4054, %v4686
      %v4688 = vsel %vm4276, %v4687, %v4683
      %v4689 = vlaneseq
      %v4690 = vshrl.u32 %v4689, 7
      %v4691 = vsub.s32 %v4278, %v4690
      %v4692 = vrot.slane %v4055, %v4691
      %v4693 = vsel %vm4283, %v4692, %v4688
      %v4694 = vlaneseq
      %v4695 = vshrl.u32 %v4694, 7
      %v4696 = vsub.s32 %v4285, %v4695
      %v4697 = vrot.slane %v4056, %v4696
      %v4698 = vsel %vm4290, %v4697, %v4693
      %v4699 = vlaneseq
      %v4700 = vshrl.u32 %v4699, 7
      %v4701 = vsub.s32 %v4292, %v4700
      %v4702 = vrot.slane %v4057, %v4701
      %v4703 = vsel %vm4297, %v4702, %v4698
      %v4704 = vlaneseq
      %v4705 = vshrl.u32 %v4704, 7
      %v4706 = vsub.s32 %v4299, %v4705
      %v4707 = vrot.slane %v4058, %v4706
      %v4708 = vsel %vm4304, %v4707, %v4703
      %v4709 = vlaneseq
      %v4710 = vshrl.u32 %v4709, 7
      %v4711 = vsub.s32 %v4306, %v4710
      %v4712 = vrot.slane %v4059, %v4711
      %v4713 = vsel %vm4311, %v4712, %v4708
      %v4714 = vlaneseq
      %v4715 = vshrl.u32 %v4714, 7
      %v4716 = vsub.s32 %v4313, %v4715
      %v4717 = vrot.slane %v4060, %v4716
      %v4718 = vsel %vm4318, %v4717, %v4713
      %v4719 = vlaneseq
      %v4720 = vshrl.u32 %v4719, 7
      %v4721 = vsub.s32 %v4320, %v4720
      %v4722 = vrot.slane %v4061, %v4721
      %v4723 = vsel %vm4325, %v4722, %v4718
      %v4724 = vlaneseq
      %v4725 = vshrl.u32 %v4724, 7
      %v4726 = vsub.s32 %v4327, %v4725
      %v4727 = vrot.slane %v4062, %v4726
      %v4728 = vsel %vm4332, %v4727, %v4723
      %v4729 = vlaneseq
      %v4730 = vshrl.u32 %v4729, 7
      %v4731 = vsub.s32 %v4224, %v4730
      %v4732 = vrot.slane %v4063, %v4731
      %v4733 = vlaneseq
      %v4734 = vshrl.u32 %v4733, 7
      %v4735 = vsub.s32 %v4229, %v4734
      %v4736 = vrot.slane %v4064, %v4735
      %v4737 = vsel %vm4234, %v4736, %v4732
      %v4738 = vlaneseq
      %v4739 = vshrl.u32 %v4738, 7
      %v4740 = vsub.s32 %v4236, %v4739
      %v4741 = vrot.slane %v4065, %v4740
      %v4742 = vsel %vm4241, %v4741, %v4737
      %v4743 = vlaneseq
      %v4744 = vshrl.u32 %v4743, 7
      %v4745 = vsub.s32 %v4243, %v4744
      %v4746 = vrot.slane %v4066, %v4745
      %v4747 = vsel %vm4248, %v4746, %v4742
      %v4748 = vlaneseq
      %v4749 = vshrl.u32 %v4748, 7
      %v4750 = vsub.s32 %v4250, %v4749
      %v4751 = vrot.slane %v4067, %v4750
      %v4752 = vsel %vm4255, %v4751, %v4747
      %v4753 = vlaneseq
      %v4754 = vshrl.u32 %v4753, 7
      %v4755 = vsub.s32 %v4257, %v4754
      %v4756 = vrot.slane %v4068, %v4755
      %v4757 = vsel %vm4262, %v4756, %v4752
      %v4758 = vlaneseq
      %v4759 = vshrl.u32 %v4758, 7
      %v4760 = vsub.s32 %v4264, %v4759
      %v4761 = vrot.slane %v4069, %v4760
      %v4762 = vsel %vm4269, %v4761, %v4757
      %v4763 = vlaneseq
      %v4764 = vshrl.u32 %v4763, 7
      %v4765 = vsub.s32 %v4271, %v4764
      %v4766 = vrot.slane %v4070, %v4765
      %v4767 = vsel %vm4276, %v4766, %v4762
      %v4768 = vlaneseq
      %v4769 = vshrl.u32 %v4768, 7
      %v4770 = vsub.s32 %v4278, %v4769
      %v4771 = vrot.slane %v4071, %v4770
      %v4772 = vsel %vm4283, %v4771, %v4767
      %v4773 = vlaneseq
      %v4774 = vshrl.u32 %v4773, 7
      %v4775 = vsub.s32 %v4285, %v4774
      %v4776 = vrot.slane %v4072, %v4775
      %v4777 = vsel %vm4290, %v4776, %v4772
      %v4778 = vlaneseq
      %v4779 = vshrl.u32 %v4778, 7
      %v4780 = vsub.s32 %v4292, %v4779
      %v4781 = vrot.slane %v4073, %v4780
      %v4782 = vsel %vm4297, %v4781, %v4777
      %v4783 = vlaneseq
      %v4784 = vshrl.u32 %v4783, 7
      %v4785 = vsub.s32 %v4299, %v4784
      %v4786 = vrot.slane %v4074, %v4785
      %v4787 = vsel %vm4304, %v4786, %v4782
      %v4788 = vlaneseq
      %v4789 = vshrl.u32 %v4788, 7
      %v4790 = vsub.s32 %v4306, %v4789
      %v4791 = vrot.slane %v4075, %v4790
      %v4792 = vsel %vm4311, %v4791, %v4787
      %v4793 = vlaneseq
      %v4794 = vshrl.u32 %v4793, 7
      %v4795 = vsub.s32 %v4313, %v4794
      %v4796 = vrot.slane %v4076, %v4795
      %v4797 = vsel %vm4318, %v4796, %v4792
      %v4798 = vlaneseq
      %v4799 = vshrl.u32 %v4798, 7
      %v4800 = vsub.s32 %v4320, %v4799
      %v4801 = vrot.slane %v4077, %v4800
      %v4802 = vsel %vm4325, %v4801, %v4797
      %v4803 = vlaneseq
      %v4804 = vshrl.u32 %v4803, 7
      %v4805 = vsub.s32 %v4327, %v4804
      %v4806 = vrot.slane %v4078, %v4805
      %v4807 = vsel %vm4332, %v4806, %v4802
      %v4808 = vlaneseq
      %v4809 = vshrl.u32 %v4808, 7
      %v4810 = vsub.s32 %v4224, %v4809
      %v4811 = vrot.slane %v4079, %v4810
      %v4812 = vlaneseq
      %v4813 = vshrl.u32 %v4812, 7
      %v4814 = vsub.s32 %v4229, %v4813
      %v4815 = vrot.slane %v4080, %v4814
      %v4816 = vsel %vm4234, %v4815, %v4811
      %v4817 = vlaneseq
      %v4818 = vshrl.u32 %v4817, 7
      %v4819 = vsub.s32 %v4236, %v4818
      %v4820 = vrot.slane %v4081, %v4819
      %v4821 = vsel %vm4241, %v4820, %v4816
      %v4822 = vlaneseq
      %v4823 = vshrl.u32 %v4822, 7
      %v4824 = vsub.s32 %v4243, %v4823
      %v4825 = vrot.slane %v4082, %v4824
      %v4826 = vsel %vm4248, %v4825, %v4821
      %v4827 = vlaneseq
      %v4828 = vshrl.u32 %v4827, 7
      %v4829 = vsub.s32 %v4250, %v4828
      %v4830 = vrot.slane %v4083, %v4829
      %v4831 = vsel %vm4255, %v4830, %v4826
      %v4832 = vlaneseq
      %v4833 = vshrl.u32 %v4832, 7
      %v4834 = vsub.s32 %v4257, %v4833
      %v4835 = vrot.slane %v4084, %v4834
      %v4836 = vsel %vm4262, %v4835, %v4831
      %v4837 = vlaneseq
      %v4838 = vshrl.u32 %v4837, 7
      %v4839 = vsub.s32 %v4264, %v4838
      %v4840 = vrot.slane %v4085, %v4839
      %v4841 = vsel %vm4269, %v4840, %v4836
      %v4842 = vlaneseq
      %v4843 = vshrl.u32 %v4842, 7
      %v4844 = vsub.s32 %v4271, %v4843
      %v4845 = vrot.slane %v4086, %v4844
      %v4846 = vsel %vm4276, %v4845, %v4841
      %v4847 = vlaneseq
      %v4848 = vshrl.u32 %v4847, 7
      %v4849 = vsub.s32 %v4278, %v4848
      %v4850 = vrot.slane %v4087, %v4849
      %v4851 = vsel %vm4283, %v4850, %v4846
      %v4852 = vlaneseq
      %v4853 = vshrl.u32 %v4852, 7
      %v4854 = vsub.s32 %v4285, %v4853
      %v4855 = vrot.slane %v4088, %v4854
      %v4856 = vsel %vm4290, %v4855, %v4851
      %v4857 = vlaneseq
      %v4858 = vshrl.u32 %v4857, 7
      %v4859 = vsub.s32 %v4292, %v4858
      %v4860 = vrot.slane %v4089, %v4859
      %v4861 = vsel %vm4297, %v4860, %v4856
      %v4862 = vlaneseq
      %v4863 = vshrl.u32 %v4862, 7
      %v4864 = vsub.s32 %v4299, %v4863
      %v4865 = vrot.slane %v4090, %v4864
      %v4866 = vsel %vm4304, %v4865, %v4861
      %v4867 = vlaneseq
      %v4868 = vshrl.u32 %v4867, 7
      %v4869 = vsub.s32 %v4306, %v4868
      %v4870 = vrot.slane %v4091, %v4869
      %v4871 = vsel %vm4311, %v4870, %v4866
      %v4872 = vlaneseq
      %v4873 = vshrl.u32 %v4872, 7
      %v4874 = vsub.s32 %v4313, %v4873
      %v4875 = vrot.slane %v4092, %v4874
      %v4876 = vsel %vm4318, %v4875, %v4871
      %v4877 = vlaneseq
      %v4878 = vshrl.u32 %v4877, 7
      %v4879 = vsub.s32 %v4320, %v4878
      %v4880 = vrot.slane %v4093, %v4879
      %v4881 = vsel %vm4325, %v4880, %v4876
      %v4882 = vlaneseq
      %v4883 = vshrl.u32 %v4882, 7
      %v4884 = vsub.s32 %v4327, %v4883
      %v4885 = vrot.slane %v4094, %v4884
      %v4886 = vsel %vm4332, %v4885, %v4881
      %vm4887 = vcmask 1042434
      %v4888 = vsel %vm4887, %v4333, %v4333
      %vm4889 = vcmask 1043459
      %v4890 = vsel %vm4889, %v4333, %v4888
      %vm4891 = vcmask 1044484
      %v4892 = vsel %vm4891, %v4333, %v4890
      %vm4893 = vcmask 1045509
      %v4894 = vsel %vm4893, %v4333, %v4892
      %vm4895 = vcmask 1046534
      %v4896 = vsel %vm4895, %v4333, %v4894
      %vm4897 = vcmask 1047559
      %v4898 = vsel %vm4897, %v4333, %v4896
      %v4899 = vsel %vm4887, %v4412, %v4412
      %v4900 = vsel %vm4889, %v4412, %v4899
      %v4901 = vsel %vm4891, %v4412, %v4900
      %v4902 = vsel %vm4893, %v4412, %v4901
      %v4903 = vsel %vm4895, %v4412, %v4902
      %v4904 = vsel %vm4897, %v4412, %v4903
      %v4905 = vsel %vm4887, %v4491, %v4491
      %v4906 = vsel %vm4889, %v4491, %v4905
      %v4907 = vsel %vm4891, %v4491, %v4906
      %v4908 = vsel %vm4893, %v4491, %v4907
      %v4909 = vsel %vm4895, %v4491, %v4908
      %v4910 = vsel %vm4897, %v4491, %v4909
      %v4911 = vsel %vm4887, %v4570, %v4570
      %v4912 = vsel %vm4889, %v4570, %v4911
      %v4913 = vsel %vm4891, %v4570, %v4912
      %v4914 = vsel %vm4893, %v4570, %v4913
      %v4915 = vsel %vm4895, %v4570, %v4914
      %v4916 = vsel %vm4897, %v4570, %v4915
      %v4917 = vsel %vm4887, %v4649, %v4649
      %v4918 = vsel %vm4889, %v4649, %v4917
      %v4919 = vsel %vm4891, %v4649, %v4918
      %v4920 = vsel %vm4893, %v4649, %v4919
      %v4921 = vsel %vm4895, %v4649, %v4920
      %v4922 = vsel %vm4897, %v4649, %v4921
      %v4923 = vsel %vm4887, %v4728, %v4728
      %v4924 = vsel %vm4889, %v4728, %v4923
      %v4925 = vsel %vm4891, %v4728, %v4924
      %v4926 = vsel %vm4893, %v4728, %v4925
      %v4927 = vsel %vm4895, %v4728, %v4926
      %v4928 = vsel %vm4897, %v4728, %v4927
      %v4929 = vsel %vm4887, %v4807, %v4807
      %v4930 = vsel %vm4889, %v4807, %v4929
      %v4931 = vsel %vm4891, %v4807, %v4930
      %v4932 = vsel %vm4893, %v4807, %v4931
      %v4933 = vsel %vm4895, %v4807, %v4932
      %v4934 = vsel %vm4897, %v4807, %v4933
      %v4935 = vsel %vm4887, %v4886, %v4886
      %v4936 = vsel %vm4889, %v4886, %v4935
      %v4937 = vsel %vm4891, %v4886, %v4936
      %v4938 = vsel %vm4893, %v4886, %v4937
      %v4939 = vsel %vm4895, %v4886, %v4938
      %v4940 = vsel %vm4897, %v4886, %v4939
      %v4949 = vmul.f32 %v3838, %v4898
      %v4950 = vmul.f32 %v3840, %v4904
      %v4951 = vmul.f32 %v3879, %v4910
      %v4952 = vmul.f32 %v3881, %v4916
      %v4953 = vmul.f32 %v3920, %v4922
      %v4954 = vmul.f32 %v3922, %v4928
      %v4955 = vmul.f32 %v3961, %v4934
      %v4956 = vmul.f32 %v3963, %v4940
      %v4957 = vld [vmem:[%s5] sm:$0xf]
      %v4958 = vld [vmem:[%s5 + $0x4] sm:$0xf]
      %v4959 = vld [vmem:[%s5 + $0x8] sm:$0xf]
      %v4960 = vld [vmem:[%s5 + $0xc] sm:$0xf]
      %v4961 = vpack.c.bf16 %v4951, %v4949
      %v4962 = vpack.c.bf16 %v4952, %v4950
      %v4963 = vpack.c.bf16 %v4955, %v4953
      %v4964 = vpack.c.bf16 %v4956, %v4954
      %v4965 = vld [vmem:[%s6] sm:$0xff]
      %v4966 = vld [vmem:[%s6 + $0x8] sm:$0xff]
      %v4967 = vld [vmem:[%s6 + $0x10] sm:$0xff]
      %v4968 = vld [vmem:[%s6 + $0x18] sm:$0xff]
      %4970 = vset.pattern.permute.xlu0 0
      %4971 = vperm.xlu0 %4970, %v4965
      %v4972 = vpop.permute.xlu0 %4971
      %4975 = vset.pattern.permute.xlu0 0
      %4976 = vperm.xlu0 %4975, %v4966
      %v4977 = vpop.permute.xlu0 %4976
      %4980 = vset.pattern.permute.xlu0 0
      %4981 = vperm.xlu0 %4980, %v4967
      %v4982 = vpop.permute.xlu0 %4981
      %4985 = vset.pattern.permute.xlu0 0
      %4986 = vperm.xlu0 %4985, %v4968
      %v4987 = vpop.permute.xlu0 %4986
      %v4993 = vunpack.c.l.b16 %v4957
      %v4994 = vunpack.c.l.b16 %v4958
      %v4995 = vunpack.c.l.b16 %v4959
      %v4996 = vunpack.c.l.b16 %v4960
      %v4997 = vpack.c.b16 %v4994, %v4993
      %v4998 = vpack.c.b16 %v4996, %v4995
      %v5000 = vsel %vm701, %v4997, 0
      %v5003 = vsel %vm701, %v4998, 0
      %5005 = vmatprep.subr.bf16.mxu0 0
      %5006 = vmatpush1.bf16.msra.mxu0 0
      %5007 = vmatprep.subr.bf16.mxu0 0
      %5008 = vmatpush1.bf16.msra.mxu0 0
      %5009 = vmatprep.subr.bf16.mxu0 0
      %5010 = vmatpush1.bf16.msra.mxu0 0
      %5011 = vmatprep.subr.bf16.mxu0 0
      %5012 = vmatpush1.bf16.msra.mxu0 0
      %5013 = vmatprep.subr.bf16.mxu0 0
      %5014 = vmatpush1.bf16.msra.mxu0 0
      %5015 = vmatprep.subr.bf16.mxu0 0
      %5016 = vmatpush1.bf16.msra.mxu0 0
      %5017 = vmatprep.subr.bf16.mxu0 %v4964
      %5018 = vmatpush1.bf16.msra.mxu0 %v4963
      %5019 = vmatprep.subr.bf16.mxu0 %v4962
      %5020 = vmatpush1.bf16.msra.mxu0 %v4961
      %5021 = vmatprep.subr.bf16.mxu0 0
      %5022 = vmatpush2.bf16.msra.mxu0 0
      %5023 = vmatprep.subr.bf16.mxu0 0
      %5024 = vmatpush2.bf16.msra.mxu0 0
      %5025 = vmatprep.subr.bf16.mxu0 0
      %5026 = vmatpush2.bf16.msra.mxu0 0
      %5027 = vmatprep.subr.bf16.mxu0 0
      %5028 = vmatpush2.bf16.msra.mxu0 0
      %5029 = vmatprep.subr.bf16.mxu0 0
      %5030 = vmatpush2.bf16.msra.mxu0 0
      %5031 = vmatprep.subr.bf16.mxu0 0
      %5032 = vmatpush2.bf16.msra.mxu0 0
      %5033 = vmatprep.subr.bf16.mxu0 0
      %5034 = vmatpush2.bf16.msra.mxu0 0
      %5035 = vmatprep.subr.bf16.mxu0 0
      %5036 = vmatpush2.bf16.msra.mxu0 0
      %5037 = vmatprep.mubr.bf16.mxu0 0
      %5038 = vmatmul.mubr.bf16.gmra.mxu0 %v5000
      %v5039 = vpop.f32.mrf.mxu0
      %v5040 = vadd.f32 %v4972, %v5039
      %v5041 = vpop.f32.mrf.mxu0
      %v5042 = vadd.f32 %v4972, %v5041
      %v5043 = vpop.f32.mrf.mxu0
      %v5044 = vadd.f32 %v4977, %v5043
      %v5045 = vpop.f32.mrf.mxu0
      %v5046 = vadd.f32 %v4977, %v5045
      %5047 = vmatprep.mubr.bf16.mxu0 0
      %5048 = vmatmul.mubr.bf16.gmra.mxu0 %v5003
      %v5049 = vpop.f32.mrf.mxu0
      %v5050 = vadd.f32 %v4982, %v5049
      %v5051 = vpop.f32.mrf.mxu0
      %v5052 = vadd.f32 %v4982, %v5051
      %v5053 = vpop.f32.mrf.mxu0
      %v5054 = vadd.f32 %v4987, %v5053
      %v5055 = vpop.f32.mrf.mxu0
      %v5056 = vadd.f32 %v4987, %v5055
      %5057 = vdwg.mxu0
      %v5058 = vadd.f32 %v5040, %v442
      %v5059 = vadd.f32 %v5042, %v443
      %v5060 = vadd.f32 %v5044, %v444
      %v5061 = vadd.f32 %v5046, %v445
      %v5062 = vadd.f32 %v5050, %v446
      %v5063 = vadd.f32 %v5052, %v447
      %v5064 = vadd.f32 %v5054, %v448
      %v5065 = vadd.f32 %v5056, %v449
      %v5066 = vld [vmem:[%s7] sm:$0xff]
      %v5067 = vld [vmem:[%s7 + $0x8] sm:$0xff]
      %v5068 = vld [vmem:[%s7 + $0x10] sm:$0xff]
      %v5069 = vld [vmem:[%s7 + $0x18] sm:$0xff]
      %v5070 = vld [vmem:[%s8] sm:$0xff]
      %v5071 = vld [vmem:[%s8 + $0x8] sm:$0xff]
      %v5072 = vld [vmem:[%s8 + $0x10] sm:$0xff]
      %v5073 = vld [vmem:[%s8 + $0x18] sm:$0xff]
      %v5074 = vadd.f32 %v5058, %v5060
      %v5075 = vadd.f32 %v5074, %v5062
      %v5076 = vadd.f32 %v5075, %v5064
      %v5077 = vrot.slane %v5076, 4
      %v5078 = vadd.f32 %v5076, %v5077
      %v5079 = vrot.slane %v5078, 2
      %v5080 = vadd.f32 %v5078, %v5079
      %v5081 = vrot.slane %v5080, 1
      %v5082 = vadd.f32 %v5080, %v5081
      %v5083 = vadd.f32 %v5059, %v5061
      %v5084 = vadd.f32 %v5083, %v5063
      %v5085 = vadd.f32 %v5084, %v5065
      %v5086 = vrot.slane %v5085, 4
      %v5087 = vadd.f32 %v5085, %v5086
      %v5088 = vrot.slane %v5087, 2
      %v5089 = vadd.f32 %v5087, %v5088
      %v5090 = vrot.slane %v5089, 1
      %v5091 = vadd.f32 %v5089, %v5090
      %v5092 = vmul.f32 %v5082, %v476
      %v5093 = vmul.f32 %v5091, %v476
      %v5094 = vsub.f32 %v5058, %v5092
      %v5095 = vsub.f32 %v5059, %v5093
      %v5096 = vsub.f32 %v5060, %v5092
      %v5097 = vsub.f32 %v5061, %v5093
      %v5098 = vsub.f32 %v5062, %v5092
      %v5099 = vsub.f32 %v5063, %v5093
      %v5100 = vsub.f32 %v5064, %v5092
      %v5101 = vsub.f32 %v5065, %v5093
      %v5102 = vmul.f32 %v5094, %v5094
      %v5103 = vmul.f32 %v5095, %v5095
      %v5104 = vmul.f32 %v5096, %v5096
      %v5105 = vmul.f32 %v5097, %v5097
      %v5106 = vmul.f32 %v5098, %v5098
      %v5107 = vmul.f32 %v5099, %v5099
      %v5108 = vmul.f32 %v5100, %v5100
      %v5109 = vmul.f32 %v5101, %v5101
      %v5110 = vadd.f32 %v5102, %v5104
      %v5111 = vadd.f32 %v5110, %v5106
      %v5112 = vadd.f32 %v5111, %v5108
      %v5113 = vrot.slane %v5112, 4
      %v5114 = vadd.f32 %v5112, %v5113
      %v5115 = vrot.slane %v5114, 2
      %v5116 = vadd.f32 %v5114, %v5115
      %v5117 = vrot.slane %v5116, 1
      %v5118 = vadd.f32 %v5116, %v5117
      %v5119 = vadd.f32 %v5103, %v5105
      %v5120 = vadd.f32 %v5119, %v5107
      %v5121 = vadd.f32 %v5120, %v5109
      %v5122 = vrot.slane %v5121, 4
      %v5123 = vadd.f32 %v5121, %v5122
      %v5124 = vrot.slane %v5123, 2
      %v5125 = vadd.f32 %v5123, %v5124
      %v5126 = vrot.slane %v5125, 1
      %v5127 = vadd.f32 %v5125, %v5126
      %v5128 = vmul.f32 %v5118, %v476
      %v5129 = vmul.f32 %v5127, %v476
      %v5130 = vadd.f32 %v5128, 1e-05
      %v5131 = vadd.f32 %v5129, 1e-05
      %v5132 = vrsqrt.pop %v5130
      %v5133 = vrsqrt.pop %v5131
      %v5134 = vmul.f32 %v5094, %v5132
      %v5135 = vmul.f32 %v5095, %v5133
      %v5136 = vmul.f32 %v5096, %v5132
      %v5137 = vmul.f32 %v5097, %v5133
      %v5138 = vmul.f32 %v5098, %v5132
      %v5139 = vmul.f32 %v5099, %v5133
      %v5140 = vmul.f32 %v5100, %v5132
      %v5141 = vmul.f32 %v5101, %v5133
      %5143 = vset.pattern.permute.xlu0 0
      %5144 = vperm.xlu0 %5143, %v5066
      %v5145 = vpop.permute.xlu0 %5144
      %5148 = vset.pattern.permute.xlu0 0
      %5149 = vperm.xlu0 %5148, %v5067
      %v5150 = vpop.permute.xlu0 %5149
      %5153 = vset.pattern.permute.xlu0 0
      %5154 = vperm.xlu0 %5153, %v5068
      %v5155 = vpop.permute.xlu0 %5154
      %5158 = vset.pattern.permute.xlu0 0
      %5159 = vperm.xlu0 %5158, %v5069
      %v5160 = vpop.permute.xlu0 %5159
      %v5162 = vmul.f32 %v5134, %v5145
      %v5163 = vmul.f32 %v5135, %v5145
      %v5164 = vmul.f32 %v5136, %v5150
      %v5165 = vmul.f32 %v5137, %v5150
      %v5166 = vmul.f32 %v5138, %v5155
      %v5167 = vmul.f32 %v5139, %v5155
      %v5168 = vmul.f32 %v5140, %v5160
      %v5169 = vmul.f32 %v5141, %v5160
      %5171 = vset.pattern.permute.xlu0 0
      %5172 = vperm.xlu0 %5171, %v5070
      %v5173 = vpop.permute.xlu0 %5172
      %5176 = vset.pattern.permute.xlu0 0
      %5177 = vperm.xlu0 %5176, %v5071
      %v5178 = vpop.permute.xlu0 %5177
      %5181 = vset.pattern.permute.xlu0 0
      %5182 = vperm.xlu0 %5181, %v5072
      %v5183 = vpop.permute.xlu0 %5182
      %5186 = vset.pattern.permute.xlu0 0
      %5187 = vperm.xlu0 %5186, %v5073
      %v5188 = vpop.permute.xlu0 %5187
      %v5190 = vadd.f32 %v5162, %v5173
      %v5191 = vadd.f32 %v5163, %v5173
      %v5192 = vadd.f32 %v5164, %v5178
      %v5193 = vadd.f32 %v5165, %v5178
      %v5194 = vadd.f32 %v5166, %v5183
      %v5195 = vadd.f32 %v5167, %v5183
      %v5196 = vadd.f32 %v5168, %v5188
      %v5197 = vadd.f32 %v5169, %v5188
      %v5198 = vld [vmem:[%s9] sm:$0xf]
      %v5199 = vld [vmem:[%s9 + $0x4] sm:$0xf]
      %v5200 = vld [vmem:[%s9 + $0x8] sm:$0xf]
      %v5201 = vld [vmem:[%s9 + $0xc] sm:$0xf]
      %v5202 = vpack.c.bf16 %v5192, %v5190
      %v5203 = vpack.c.bf16 %v5193, %v5191
      %v5204 = vpack.c.bf16 %v5196, %v5194
      %v5205 = vpack.c.bf16 %v5197, %v5195
      %v5206 = vld [vmem:[%s10] sm:$0xff]
      %v5207 = vld [vmem:[%s10 + $0x8] sm:$0xff]
      %v5208 = vld [vmem:[%s10 + $0x10] sm:$0xff]
      %v5209 = vld [vmem:[%s10 + $0x18] sm:$0xff]
      %5211 = vset.pattern.permute.xlu0 0
      %5212 = vperm.xlu0 %5211, %v5206
      %v5213 = vpop.permute.xlu0 %5212
      %5216 = vset.pattern.permute.xlu0 0
      %5217 = vperm.xlu0 %5216, %v5207
      %v5218 = vpop.permute.xlu0 %5217
      %5221 = vset.pattern.permute.xlu0 0
      %5222 = vperm.xlu0 %5221, %v5208
      %v5223 = vpop.permute.xlu0 %5222
      %5226 = vset.pattern.permute.xlu0 0
      %5227 = vperm.xlu0 %5226, %v5209
      %v5228 = vpop.permute.xlu0 %5227
      %v5234 = vunpack.c.l.b16 %v5198
      %v5235 = vunpack.c.l.b16 %v5199
      %v5236 = vunpack.c.l.b16 %v5200
      %v5237 = vunpack.c.l.b16 %v5201
      %v5238 = vpack.c.b16 %v5235, %v5234
      %v5239 = vpack.c.b16 %v5237, %v5236
      %v5241 = vsel %vm701, %v5238, 0
      %v5244 = vsel %vm701, %v5239, 0
      %5246 = vmatprep.subr.bf16.mxu0 0
      %5247 = vmatpush1.bf16.msra.mxu0 0
      %5248 = vmatprep.subr.bf16.mxu0 0
      %5249 = vmatpush1.bf16.msra.mxu0 0
      %5250 = vmatprep.subr.bf16.mxu0 0
      %5251 = vmatpush1.bf16.msra.mxu0 0
      %5252 = vmatprep.subr.bf16.mxu0 0
      %5253 = vmatpush1.bf16.msra.mxu0 0
      %5254 = vmatprep.subr.bf16.mxu0 0
      %5255 = vmatpush1.bf16.msra.mxu0 0
      %5256 = vmatprep.subr.bf16.mxu0 0
      %5257 = vmatpush1.bf16.msra.mxu0 0
      %5258 = vmatprep.subr.bf16.mxu0 %v5205
      %5259 = vmatpush1.bf16.msra.mxu0 %v5204
      %5260 = vmatprep.subr.bf16.mxu0 %v5203
      %5261 = vmatpush1.bf16.msra.mxu0 %v5202
      %5262 = vmatprep.subr.bf16.mxu0 0
      %5263 = vmatpush2.bf16.msra.mxu0 0
      %5264 = vmatprep.subr.bf16.mxu0 0
      %5265 = vmatpush2.bf16.msra.mxu0 0
      %5266 = vmatprep.subr.bf16.mxu0 0
      %5267 = vmatpush2.bf16.msra.mxu0 0
      %5268 = vmatprep.subr.bf16.mxu0 0
      %5269 = vmatpush2.bf16.msra.mxu0 0
      %5270 = vmatprep.subr.bf16.mxu0 0
      %5271 = vmatpush2.bf16.msra.mxu0 0
      %5272 = vmatprep.subr.bf16.mxu0 0
      %5273 = vmatpush2.bf16.msra.mxu0 0
      %5274 = vmatprep.subr.bf16.mxu0 0
      %5275 = vmatpush2.bf16.msra.mxu0 0
      %5276 = vmatprep.subr.bf16.mxu0 0
      %5277 = vmatpush2.bf16.msra.mxu0 0
      %5278 = vmatprep.mubr.bf16.mxu0 0
      %5279 = vmatmul.mubr.bf16.gmra.mxu0 %v5241
      %v5280 = vpop.f32.mrf.mxu0
      %v5281 = vadd.f32 %v5213, %v5280
      %v5282 = vpop.f32.mrf.mxu0
      %v5283 = vadd.f32 %v5213, %v5282
      %v5284 = vpop.f32.mrf.mxu0
      %v5285 = vadd.f32 %v5218, %v5284
      %v5286 = vpop.f32.mrf.mxu0
      %v5287 = vadd.f32 %v5218, %v5286
      %5288 = vmatprep.mubr.bf16.mxu0 0
      %5289 = vmatmul.mubr.bf16.gmra.mxu0 %v5244
      %v5290 = vpop.f32.mrf.mxu0
      %v5291 = vadd.f32 %v5223, %v5290
      %v5292 = vpop.f32.mrf.mxu0
      %v5293 = vadd.f32 %v5223, %v5292
      %v5294 = vpop.f32.mrf.mxu0
      %v5295 = vadd.f32 %v5228, %v5294
      %v5296 = vpop.f32.mrf.mxu0
      %v5297 = vadd.f32 %v5228, %v5296
      %5298 = vdwg.mxu0
      %v5299 = vmul.f32 %v5281, %v5281
      %v5300 = vmul.f32 %v5283, %v5283
      %v5301 = vmul.f32 %v5285, %v5285
      %v5302 = vmul.f32 %v5287, %v5287
      %v5303 = vmul.f32 %v5291, %v5291
      %v5304 = vmul.f32 %v5293, %v5293
      %v5305 = vmul.f32 %v5295, %v5295
      %v5306 = vmul.f32 %v5297, %v5297
      %v5307 = vmul.f32 %v5281, %v5299
      %v5308 = vmul.f32 %v5283, %v5300
      %v5309 = vmul.f32 %v5285, %v5301
      %v5310 = vmul.f32 %v5287, %v5302
      %v5311 = vmul.f32 %v5291, %v5303
      %v5312 = vmul.f32 %v5293, %v5304
      %v5313 = vmul.f32 %v5295, %v5305
      %v5314 = vmul.f32 %v5297, %v5306
      %v5315 = vmul.f32 %v5307, 0.044715
      %v5316 = vmul.f32 %v5308, 0.044715
      %v5317 = vmul.f32 %v5309, 0.044715
      %v5318 = vmul.f32 %v5310, 0.044715
      %v5319 = vmul.f32 %v5311, 0.044715
      %v5320 = vmul.f32 %v5312, 0.044715
      %v5321 = vmul.f32 %v5313, 0.044715
      %v5322 = vmul.f32 %v5314, 0.044715
      %v5323 = vadd.f32 %v5281, %v5315
      %v5324 = vadd.f32 %v5283, %v5316
      %v5325 = vadd.f32 %v5285, %v5317
      %v5326 = vadd.f32 %v5287, %v5318
      %v5327 = vadd.f32 %v5291, %v5319
      %v5328 = vadd.f32 %v5293, %v5320
      %v5329 = vadd.f32 %v5295, %v5321
      %v5330 = vadd.f32 %v5297, %v5322
      %v5331 = vmul.f32 %v5323, 0.7978846
      %v5332 = vmul.f32 %v5324, 0.7978846
      %v5333 = vmul.f32 %v5325, 0.7978846
      %v5334 = vmul.f32 %v5326, 0.7978846
      %v5335 = vmul.f32 %v5327, 0.7978846
      %v5336 = vmul.f32 %v5328, 0.7978846
      %v5337 = vmul.f32 %v5329, 0.7978846
      %v5338 = vmul.f32 %v5330, 0.7978846
      %v5339 = vtanh.pop %v5331
      %v5340 = vtanh.pop %v5332
      %v5341 = vtanh.pop %v5333
      %v5342 = vtanh.pop %v5334
      %v5343 = vtanh.pop %v5335
      %v5344 = vtanh.pop %v5336
      %v5345 = vtanh.pop %v5337
      %v5346 = vtanh.pop %v5338
      %v5347 = vadd.f32 %v5339, 1.0
      %v5348 = vadd.f32 %v5340, 1.0
      %v5349 = vadd.f32 %v5341, 1.0
      %v5350 = vadd.f32 %v5342, 1.0
      %v5351 = vadd.f32 %v5343, 1.0
      %v5352 = vadd.f32 %v5344, 1.0
      %v5353 = vadd.f32 %v5345, 1.0
      %v5354 = vadd.f32 %v5346, 1.0
      %v5355 = vmul.f32 %v5347, 0.5
      %v5356 = vmul.f32 %v5348, 0.5
      %v5357 = vmul.f32 %v5349, 0.5
      %v5358 = vmul.f32 %v5350, 0.5
      %v5359 = vmul.f32 %v5351, 0.5
      %v5360 = vmul.f32 %v5352, 0.5
      %v5361 = vmul.f32 %v5353, 0.5
      %v5362 = vmul.f32 %v5354, 0.5
      %v5363 = vmul.f32 %v5281, %v5355
      %v5364 = vmul.f32 %v5283, %v5356
      %v5365 = vmul.f32 %v5285, %v5357
      %v5366 = vmul.f32 %v5287, %v5358
      %v5367 = vmul.f32 %v5291, %v5359
      %v5368 = vmul.f32 %v5293, %v5360
      %v5369 = vmul.f32 %v5295, %v5361
      %v5370 = vmul.f32 %v5297, %v5362
      %v5371 = vld [vmem:[%s11] sm:$0xf]
      %v5372 = vld [vmem:[%s11 + $0x4] sm:$0xf]
      %v5373 = vld [vmem:[%s11 + $0x8] sm:$0xf]
      %v5374 = vld [vmem:[%s11 + $0xc] sm:$0xf]
      %v5375 = vpack.c.bf16 %v5365, %v5363
      %v5376 = vpack.c.bf16 %v5366, %v5364
      %v5377 = vpack.c.bf16 %v5369, %v5367
      %v5378 = vpack.c.bf16 %v5370, %v5368
      %v5379 = vld [vmem:[%s12] sm:$0xff]
      %v5380 = vld [vmem:[%s12 + $0x8] sm:$0xff]
      %v5381 = vld [vmem:[%s12 + $0x10] sm:$0xff]
      %v5382 = vld [vmem:[%s12 + $0x18] sm:$0xff]
      %5384 = vset.pattern.permute.xlu0 0
      %5385 = vperm.xlu0 %5384, %v5379
      %v5386 = vpop.permute.xlu0 %5385
      %5389 = vset.pattern.permute.xlu0 0
      %5390 = vperm.xlu0 %5389, %v5380
      %v5391 = vpop.permute.xlu0 %5390
      %5394 = vset.pattern.permute.xlu0 0
      %5395 = vperm.xlu0 %5394, %v5381
      %v5396 = vpop.permute.xlu0 %5395
      %5399 = vset.pattern.permute.xlu0 0
      %5400 = vperm.xlu0 %5399, %v5382
      %v5401 = vpop.permute.xlu0 %5400
      %v5407 = vunpack.c.l.b16 %v5371
      %v5408 = vunpack.c.l.b16 %v5372
      %v5409 = vunpack.c.l.b16 %v5373
      %v5410 = vunpack.c.l.b16 %v5374
      %v5411 = vpack.c.b16 %v5408, %v5407
      %v5412 = vpack.c.b16 %v5410, %v5409
      %v5414 = vsel %vm701, %v5411, 0
      %v5417 = vsel %vm701, %v5412, 0
      %5419 = vmatprep.subr.bf16.mxu0 0
      %5420 = vmatpush1.bf16.msra.mxu0 0
      %5421 = vmatprep.subr.bf16.mxu0 0
      %5422 = vmatpush1.bf16.msra.mxu0 0
      %5423 = vmatprep.subr.bf16.mxu0 0
      %5424 = vmatpush1.bf16.msra.mxu0 0
      %5425 = vmatprep.subr.bf16.mxu0 0
      %5426 = vmatpush1.bf16.msra.mxu0 0
      %5427 = vmatprep.subr.bf16.mxu0 0
      %5428 = vmatpush1.bf16.msra.mxu0 0
      %5429 = vmatprep.subr.bf16.mxu0 0
      %5430 = vmatpush1.bf16.msra.mxu0 0
      %5431 = vmatprep.subr.bf16.mxu0 %v5378
      %5432 = vmatpush1.bf16.msra.mxu0 %v5377
      %5433 = vmatprep.subr.bf16.mxu0 %v5376
      %5434 = vmatpush1.bf16.msra.mxu0 %v5375
      %5435 = vmatprep.subr.bf16.mxu0 0
      %5436 = vmatpush2.bf16.msra.mxu0 0
      %5437 = vmatprep.subr.bf16.mxu0 0
      %5438 = vmatpush2.bf16.msra.mxu0 0
      %5439 = vmatprep.subr.bf16.mxu0 0
      %5440 = vmatpush2.bf16.msra.mxu0 0
      %5441 = vmatprep.subr.bf16.mxu0 0
      %5442 = vmatpush2.bf16.msra.mxu0 0
      %5443 = vmatprep.subr.bf16.mxu0 0
      %5444 = vmatpush2.bf16.msra.mxu0 0
      %5445 = vmatprep.subr.bf16.mxu0 0
      %5446 = vmatpush2.bf16.msra.mxu0 0
      %5447 = vmatprep.subr.bf16.mxu0 0
      %5448 = vmatpush2.bf16.msra.mxu0 0
      %5449 = vmatprep.subr.bf16.mxu0 0
      %5450 = vmatpush2.bf16.msra.mxu0 0
      %5451 = vmatprep.mubr.bf16.mxu0 0
      %5452 = vmatmul.mubr.bf16.gmra.mxu0 %v5414
      %v5453 = vpop.f32.mrf.mxu0
      %v5454 = vadd.f32 %v5386, %v5453
      %v5455 = vpop.f32.mrf.mxu0
      %v5456 = vadd.f32 %v5386, %v5455
      %v5457 = vpop.f32.mrf.mxu0
      %v5458 = vadd.f32 %v5391, %v5457
      %v5459 = vpop.f32.mrf.mxu0
      %v5460 = vadd.f32 %v5391, %v5459
      %5461 = vmatprep.mubr.bf16.mxu0 0
      %5462 = vmatmul.mubr.bf16.gmra.mxu0 %v5417
      %v5463 = vpop.f32.mrf.mxu0
      %v5464 = vadd.f32 %v5396, %v5463
      %v5465 = vpop.f32.mrf.mxu0
      %v5466 = vadd.f32 %v5396, %v5465
      %v5467 = vpop.f32.mrf.mxu0
      %v5468 = vadd.f32 %v5401, %v5467
      %v5469 = vpop.f32.mrf.mxu0
      %v5470 = vadd.f32 %v5401, %v5469
      %5471 = vdwg.mxu0
      %v5472 = vadd.f32 %v5454, %v5058
      %v5473 = vadd.f32 %v5456, %v5059
      %v5474 = vadd.f32 %v5458, %v5060
      %v5475 = vadd.f32 %v5460, %v5061
      %v5476 = vadd.f32 %v5464, %v5062
      %v5477 = vadd.f32 %v5466, %v5063
      %v5478 = vadd.f32 %v5468, %v5064
      %v5479 = vadd.f32 %v5470, %v5065
      %5480 = vst [vmem:[%s440] sm:$0xff] %v5472
      %5481 = vst [vmem:[%s440 + $0x8] sm:$0xff] %v5473
      %5482 = vst [vmem:[%s440 + $0x10] sm:$0xff] %v5474
      %5483 = vst [vmem:[%s440 + $0x18] sm:$0xff] %v5475
      %5484 = vst [vmem:[%s440 + $0x20] sm:$0xff] %v5476
      %5485 = vst [vmem:[%s440 + $0x28] sm:$0xff] %v5477
      %5486 = vst [vmem:[%s440 + $0x30] sm:$0xff] %v5478
      %5487 = vst [vmem:[%s440 + $0x38] sm:$0xff] %v5479
      %p5488 = scmp.lt.s32.totalorder %s24, 1
      %s5489 = scalar_select %p5488, %s24, 1
      %s5490 = smul.addr %s5489, 8
      %s5491 = smul.addr %s5490, 8
      %s5492 = scalar_lea.vmem %s13, %s5491
      // Predicated region
      $region73: #{self_attention.1} parent=71 // pred_check
        %p5493 = pneg %p320
      $region74: #{self_attention.1} parent=71 // pred_check_branch
        %5495 = sbr.rel (%p5493) target = $region76
      $region75: #{self_attention.1} parent=71 // pred_region
        _
      $region76: #{self_attention.1} parent=71 // pred_fallthru
        _
    $region72: #{self_attention.1} parent=5 // pred_fallthru
      _
    %p5496 = scmp.le.s32.totalorder 2, %s19
    // Predicated region
    $region77: #{self_attention.1} parent=5 // pred_check
      %p5497 = pneg %p5496
    $region78: #{self_attention.1} parent=5 // pred_check_branch
      %5499 = sbr.rel (%p5497) target = $region80
    $region79: #{self_attention.1} parent=5 // pred_region
      %s5500 = ssub.s32 %s19, 2
      // Predicated region
      $region81: #{self_attention.1} parent=79 // pred_check
        %p5501 = pneg %p326
      $region82: #{self_attention.1} parent=79 // pred_check_branch
        %5503 = sbr.rel (%p5501) target = $region84
      $region83: #{self_attention.1} parent=79 // pred_region
        %p5504 = scmp.lt.s32.totalorder %s25, 1
        %s5505 = scalar_select %p5504, %s25, 1
        %s5506 = smul.addr %s5505, 8
        %s5507 = smul.addr %s5506, 8
        %s5508 = scalar_lea.vmem %s13, %s5507
      $region84: #{self_attention.1} parent=79 // pred_fallthru
        _
    $region80: #{self_attention.1} parent=5 // pred_fallthru
      _
  $region6: #{self_attention.1} parent=0 // loop_footer
    %s23 = sadd.s32 1, %s19
  $region7: #{self_attention.1} parent=0 // loop_footer_branch
    %18 = sbr.rel target = $region3
  $region8: #{self_attention.1} parent=0 // loop_exit
    _

</llo_original>
